<compile_context>
chip_gen: v7x
topology: tpu7x:2x2x1
jax: 0.10.0
libtpu: 0.0.40
codegen_flags: <defaults>
</compile_context>

<pallas_src>
import jax
import jax.numpy as jnp
from jax.experimental import pallas as pl
from jax.experimental.pallas import tpu as pltpu


# ----------------------------------------------------------------------------
# Weight packing: one (rows, lanes) f32 slab + static layout (name -> slice)
# ----------------------------------------------------------------------------
def _pack_weights(entries):
    """entries: list of (name, 1D/2D array). Returns (packed_slab, layout)."""
    lanes = 0
    for _, a in entries:
        lanes = max(lanes, a.shape[-1])
    lanes = -(-lanes // 128) * 128          # lane-dense packing width

    layout = {}
    blocks = []
    off = 0
    for name, a in entries:
        a2 = jnp.asarray(a, jnp.float32)
        if a2.ndim == 1:
            a2 = a2[None, :]
        r, c = a2.shape
        rpad = -(-r // 8) * 8               # keep every block 8-sublane aligned
        block = jnp.zeros((rpad, lanes), jnp.float32).at[:r, :c].set(a2)
        blocks.append(block)
        layout[name] = (off, r, c)          # static Python ints
        off += rpad
    return jnp.concatenate(blocks, axis=0), layout


# ----------------------------------------------------------------------------
# Fused kernel factory (specialized to num_layers=2, bidirectional LSTM)
# ----------------------------------------------------------------------------
def _make_kernel(T, B, H, layout):
    G = 4 * H
    f32 = jnp.float32

    def kernel(x_ref, w_ref, out_ref):
        # Static-offset view into the packed weight slab (no runtime cost).
        def W(name):
            off, r, c = layout[name]
            return w_ref[off:off + r, :c]

        def cell(g, c_prev):
            # Whole-slab nonlinearities: 1 sigmoid + 1 tanh EUP pass per step.
            sg = jax.nn.sigmoid(g)                     # (B, 4H)
            th = jnp.tanh(g)                           # (B, 4H)
            i_g = sg[:, 0 * H:1 * H]
            f_g = sg[:, 1 * H:2 * H]
            o_g = sg[:, 3 * H:4 * H]
            g_g = th[:, 2 * H:3 * H]
            c_new = f_g * c_prev + i_g * g_g
            h_new = o_g * jnp.tanh(c_new)
            return h_new, c_new

        def bidir_layer(gin, whh_f, whh_b):
            # gin: (T*B, 2*4H) pre-projected gate inputs (+bias), fwd|bwd lanes.
            h_f = jnp.zeros((B, H), f32)
            c_f = jnp.zeros((B, H), f32)
            h_b = jnp.zeros((B, H), f32)
            c_b = jnp.zeros((B, H), f32)
            fwd = [None] * T
            bwd = [None] * T
            # Fully unrolled; the two independent serial chains (fwd step t,
            # bwd step T-1-t) are interleaved so MXU/EUP pipelines overlap.
            for s in range(T):
                tf, tb = s, T - 1 - s
                g_f = gin[tf * B:(tf + 1) * B, 0:G] + jnp.dot(
                    h_f, whh_f, preferred_element_type=f32)
                g_b = gin[tb * B:(tb + 1) * B, G:2 * G] + jnp.dot(
                    h_b, whh_b, preferred_element_type=f32)
                h_f, c_f = cell(g_f, c_f)
                h_b, c_b = cell(g_b, c_b)
                fwd[tf] = h_f
                bwd[tb] = h_b
            # Re-stack to a (T*B, H) slab (row = t*B + b) for the next slab matmul.
            return jnp.concatenate(fwd, axis=0), jnp.concatenate(bwd, axis=0)

        # --- init_linear on the full (T*B, I) slab (one matmul, one bias) ----
        x0 = jnp.dot(x_ref[...], W("w0"), preferred_element_type=f32) + W("b0")

        # --- layer 0: fused fwd|bwd input projection, then recurrence --------
        gin0 = jnp.dot(x0, W("wih0"), preferred_element_type=f32) + W("b_l0")
        f0, r0 = bidir_layer(gin0, W("whh_f0"), W("whh_b0"))

        # --- layer 1: split-weight projection (no lane concat of [f0|r0]) ----
        gin1 = (jnp.dot(f0, W("w1_top"), preferred_element_type=f32)
                + jnp.dot(r0, W("w1_bot"), preferred_element_type=f32)
                + W("b_l1"))
        f1, r1 = bidir_layer(gin1, W("whh_f1"), W("whh_b1"))

        # --- final Linear on every timestep, one lane-dense (T*B, 128) store -
        out = (jnp.dot(f1, W("wfc_top"), preferred_element_type=f32)
               + jnp.dot(r1, W("wfc_bot"), preferred_element_type=f32)
               + W("bfc"))
        out_ref[...] = out.astype(out_ref.dtype)

    return kernel


# ----------------------------------------------------------------------------
# Wrapper: layout prep (slab-ify x, pre-transpose / fuse / split weights)
# ----------------------------------------------------------------------------
def bi_rnn_forward(x, w0, b0, lstm_params, fc_w, fc_b):
    """x: (B, T, input_dim) -> (B, T, output_dim). Equivalent to Bi_RNN.forward."""
    assert len(lstm_params) == 2, "kernel is specialized to num_layers=2"
    B, T, I = x.shape
    C = fc_w.shape[0]
    H = lstm_params[0][0][1].shape[1]          # w_hh: (4H, H)
    CPAD = -(-C // 128) * 128                  # pad FC output lanes to 128

    # Time-major activation slab: row index = t*B + b.
    x_slab = jnp.transpose(x, (1, 0, 2)).reshape(T * B, I).astype(jnp.float32)

    (w_ih_f0, w_hh_f0, b_ih_f0, b_hh_f0), (w_ih_b0, w_hh_b0, b_ih_b0, b_hh_b0) = lstm_params[0]
    (w_ih_f1, w_hh_f1, b_ih_f1, b_hh_f1), (w_ih_b1, w_hh_b1, b_ih_b1, b_hh_b1) = lstm_params[1]

    # Final-FC weights: row-split (fwd/bwd halves) and lane-pad C -> CPAD.
    fc_wt = jnp.asarray(fc_w, jnp.float32).T                       # (2H, C)
    wfc_top = jnp.zeros((H, CPAD), jnp.float32).at[:, :C].set(fc_wt[:H])
    wfc_bot = jnp.zeros((H, CPAD), jnp.float32).at[:, :C].set(fc_wt[H:])
    bfc_pad = jnp.zeros((CPAD,), jnp.float32).at[:C].set(fc_b)

    entries = [
        # init_linear
        ("w0", w0.T), ("b0", b0),
        # layer 0: fwd|bwd input weights fused along lanes -> (I, 8H)
        ("wih0", jnp.concatenate([w_ih_f0.T, w_ih_b0.T], axis=1)),
        ("b_l0", jnp.concatenate([b_ih_f0 + b_hh_f0, b_ih_b0 + b_hh_b0])),
        ("whh_f0", w_hh_f0.T), ("whh_b0", w_hh_b0.T),
        # layer 1: split rows (top multiplies fwd0, bot multiplies bwd0),
        #          fwd|bwd directions fused along lanes -> (H, 8H) each
        ("w1_top", jnp.concatenate([w_ih_f1.T[:H], w_ih_b1.T[:H]], axis=1)),
        ("w1_bot", jnp.concatenate([w_ih_f1.T[H:], w_ih_b1.T[H:]], axis=1)),
        ("b_l1", jnp.concatenate([b_ih_f1 + b_hh_f1, b_ih_b1 + b_hh_b1])),
        ("whh_f1", w_hh_f1.T), ("whh_b1", w_hh_b1.T),
        # final Linear (split rows, lane-padded)
        ("wfc_top", wfc_top), ("wfc_bot", wfc_bot), ("bfc", bfc_pad),
    ]
    packed, layout = _pack_weights(entries)

    kernel = _make_kernel(T, B, H, layout)
    vmem_spec = pl.BlockSpec(memory_space=pltpu.MemorySpace.VMEM)
    out_slab = pl.pallas_call(
        kernel,
        out_shape=jax.ShapeDtypeStruct((T * B, CPAD), jnp.float32),
        in_specs=[vmem_spec, vmem_spec],      # 2 input DMAs total
        out_specs=vmem_spec,
    )(x_slab, packed)

    # (T*B, CPAD) -> (B, T, C)
    out = out_slab.reshape(T, B, CPAD)[:, :, :C]
    return jnp.transpose(out, (1, 0, 2))


# ----------------------------------------------------------------------------
# Pure-JAX reference (PyTorch semantics) for the numerical check
# ----------------------------------------------------------------------------
def _reference_forward(x, w0, b0, lstm_params, fc_w, fc_b):
    B, T, _ = x.shape
    seq = x @ w0.T + b0                                         # init_linear
    for (fwd_par, bwd_par) in lstm_params:
        outs = []
        for (w_ih, w_hh, b_ih, b_hh), reverse in ((fwd_par, False),
                                                  (bwd_par, True)):
            H = w_hh.shape[1]
            h = jnp.zeros((B, H), jnp.float32)
            c = jnp.zeros((B, H), jnp.float32)
            ys = [None] * T
            order = range(T - 1, -1, -1) if reverse else range(T)
            for t in order:
                g = seq[:, t, :] @ w_ih.T + h @ w_hh.T + b_ih + b_hh
                i = jax.nn.sigmoid(g[:, :H])
                f = jax.nn.sigmoid(g[:, H:2 * H])
                gg = jnp.tanh(g[:, 2 * H:3 * H])
                o = jax.nn.sigmoid(g[:, 3 * H:])
                c = f * c + i * gg
                h = o * jnp.tanh(c)
                ys[t] = h
            outs.append(jnp.stack(ys, axis=1))                  # (B, T, H)
        seq = jnp.concatenate(outs, axis=-1)                    # (B, T, 2H)
    return seq @ fc_w.T + fc_b                                  # (B, T, C)


# ----------------------------------------------------------------------------
# Deterministic parameter construction (PyTorch-style uniform init)
# ----------------------------------------------------------------------------
def make_params(key, input_dim, hidden_dim, num_layers, output_dim):
    def uniform(k, shape, bound):
        return jax.random.uniform(k, shape, jnp.float32, -bound, bound)

    ki = input_dim ** -0.5
    key, k1, k2 = jax.random.split(key, 3)
    w0 = uniform(k1, (input_dim, input_dim), ki)
    b0 = uniform(k2, (input_dim,), ki)

    kh = hidden_dim ** -0.5
    lstm_params = []
    for layer in range(num_layers):
        in_sz = input_dim if layer == 0 else 2 * hidden_dim
        dirs = []
        for _ in range(2):                                      # fwd, bwd
            key, a, b, c, d = jax.random.split(key, 5)
            dirs.append((uniform(a, (4 * hidden_dim, in_sz), kh),
                         uniform(b, (4 * hidden_dim, hidden_dim), kh),
                         uniform(c, (4 * hidden_dim,), kh),
                         uniform(d, (4 * hidden_dim,), kh)))
        lstm_params.append(tuple(dirs))

    kf = (2 * hidden_dim) ** -0.5
    key, kf1, kf2 = jax.random.split(key, 3)
    fc_w = uniform(kf1, (output_dim, 2 * hidden_dim), kf)
    fc_b = uniform(kf2, (output_dim,), kf)
    return w0, b0, tuple(lstm_params), fc_w, fc_b


if __name__ == "__main__":
    INPUT_DIM = 16
    HIDDEN_DIM = 32
    NUM_LAYERS = 2
    OUTPUT_DIM = 11          # PyTorch default output_dim
    BATCH = 2
    SEQ = 8

    key = jax.random.PRNGKey(0)
    key, kx = jax.random.split(key)
    x = jax.random.normal(kx, (BATCH, SEQ, INPUT_DIM), jnp.float32)
    w0, b0, lstm_params, fc_w, fc_b = make_params(
        key, INPUT_DIM, HIDDEN_DIM, NUM_LAYERS, OUTPUT_DIM)

    fwd = jax.jit(bi_rnn_forward)
    out = fwd(x, w0, b0, lstm_params, fc_w, fc_b)
    jax.block_until_ready(out)
    assert out.shape == (BATCH, SEQ, OUTPUT_DIM), out.shape

    ref = _reference_forward(x, w0, b0, lstm_params, fc_w, fc_b)
    err = float(jnp.max(jnp.abs(out - ref)))
    assert err < 1e-3, f"max abs error vs reference: {err}"
    print("KERNEL_OK")
</pallas_src>

<mosaic_0001>
module attributes {stable_mosaic.version = 11 : i64} {
  func.func @kernel(%arg0: memref<16x16xf32, #tpu.memory_space<vmem>>, %arg1: memref<320x256xf32, #tpu.memory_space<vmem>>, %arg2: memref<16x128xf32, #tpu.memory_space<vmem>>) attributes {dimension_semantics = [], scalar_prefetch = 0 : i64, scratch_operands = 0 : i64, tpu.core_type = #tpu.core_type<tc>} {
    %c0 = arith.constant 0 : index
    %c0_0 = arith.constant 0 : index
    %0 = vector.load %arg0[%c0, %c0_0] : memref<16x16xf32, #tpu.memory_space<vmem>>, vector<16x16xf32>
    %c0_1 = arith.constant 0 : index
    %c0_2 = arith.constant 0 : index
    %1 = vector.load %arg1[%c0_1, %c0_2] : memref<320x256xf32, #tpu.memory_space<vmem>>, vector<16x16xf32>
    %cst = arith.constant dense<0.000000e+00> : vector<16x16xf32>
    %2 = tpu.matmul %0, %1, %cst {dimension_numbers = #tpu.dot_dimension_numbers<[1], [0], [0], [1], [0, 0, 1, 1], [], []>} : vector<16x16xf32>, vector<16x16xf32>, vector<16x16xf32> -> vector<16x16xf32>
    %c16 = arith.constant 16 : index
    %c0_3 = arith.constant 0 : index
    %3 = vector.load %arg1[%c16, %c0_3] : memref<320x256xf32, #tpu.memory_space<vmem>>, vector<1x16xf32>
    %4 = vector.broadcast %3 : vector<1x16xf32> to vector<16x16xf32>
    %5 = arith.addf %2, %4 : vector<16x16xf32>
    %c24 = arith.constant 24 : index
    %c0_4 = arith.constant 0 : index
    %6 = vector.load %arg1[%c24, %c0_4] : memref<320x256xf32, #tpu.memory_space<vmem>>, vector<16x256xf32>
    %cst_5 = arith.constant dense<0.000000e+00> : vector<16x256xf32>
    %7 = tpu.matmul %5, %6, %cst_5 {dimension_numbers = #tpu.dot_dimension_numbers<[1], [0], [0], [1], [0, 0, 1, 1], [], []>} : vector<16x16xf32>, vector<16x256xf32>, vector<16x256xf32> -> vector<16x256xf32>
    %c40 = arith.constant 40 : index
    %c0_6 = arith.constant 0 : index
    %8 = vector.load %arg1[%c40, %c0_6] : memref<320x256xf32, #tpu.memory_space<vmem>>, vector<1x256xf32>
    %9 = vector.broadcast %8 : vector<1x256xf32> to vector<16x256xf32>
    %10 = arith.addf %7, %9 : vector<16x256xf32>
    %c48 = arith.constant 48 : index
    %c0_7 = arith.constant 0 : index
    %11 = vector.load %arg1[%c48, %c0_7] : memref<320x256xf32, #tpu.memory_space<vmem>>, vector<32x128xf32>
    %c80 = arith.constant 80 : index
    %c0_8 = arith.constant 0 : index
    %12 = vector.load %arg1[%c80, %c0_8] : memref<320x256xf32, #tpu.memory_space<vmem>>, vector<32x128xf32>
    %cst_9 = arith.constant 0.000000e+00 : f32
    %13 = vector.broadcast %cst_9 : f32 to vector<2x32xf32>
    %cst_10 = arith.constant 0.000000e+00 : f32
    %14 = vector.broadcast %cst_10 : f32 to vector<2x32xf32>
    %cst_11 = arith.constant 0.000000e+00 : f32
    %15 = vector.broadcast %cst_11 : f32 to vector<2x32xf32>
    %cst_12 = arith.constant 0.000000e+00 : f32
    %16 = vector.broadcast %cst_12 : f32 to vector<2x32xf32>
    %17 = vector.extract_strided_slice %10 {offsets = [0, 0], sizes = [2, 128], strides = [1, 1]} : vector<16x256xf32> to vector<2x128xf32>
    %cst_13 = arith.constant dense<0.000000e+00> : vector<2x128xf32>
    %18 = tpu.matmul %13, %11, %cst_13 {dimension_numbers = #tpu.dot_dimension_numbers<[1], [0], [0], [1], [0, 0, 1, 1], [], []>} : vector<2x32xf32>, vector<32x128xf32>, vector<2x128xf32> -> vector<2x128xf32>
    %19 = arith.addf %17, %18 : vector<2x128xf32>
    %20 = vector.extract_strided_slice %10 {offsets = [14, 128], sizes = [2, 128], strides = [1, 1]} : vector<16x256xf32> to vector<2x128xf32>
    %cst_14 = arith.constant dense<0.000000e+00> : vector<2x128xf32>
    %21 = tpu.matmul %15, %12, %cst_14 {dimension_numbers = #tpu.dot_dimension_numbers<[1], [0], [0], [1], [0, 0, 1, 1], [], []>} : vector<2x32xf32>, vector<32x128xf32>, vector<2x128xf32> -> vector<2x128xf32>
    %22 = arith.addf %20, %21 : vector<2x128xf32>
    %23 = arith.negf %19 : vector<2x128xf32>
    %24 = math.exp %23 : vector<2x128xf32>
    %cst_15 = arith.constant 1.000000e+00 : f32
    %25 = vector.broadcast %cst_15 : f32 to vector<2x128xf32>
    %26 = arith.addf %25, %24 : vector<2x128xf32>
    %27 = arith.divf %25, %26 : vector<2x128xf32>
    %28 = math.tanh %19 : vector<2x128xf32>
    %29 = vector.extract_strided_slice %27 {offsets = [0, 0], sizes = [2, 32], strides = [1, 1]} : vector<2x128xf32> to vector<2x32xf32>
    %30 = vector.extract_strided_slice %27 {offsets = [0, 32], sizes = [2, 32], strides = [1, 1]} : vector<2x128xf32> to vector<2x32xf32>
    %31 = vector.extract_strided_slice %27 {offsets = [0, 96], sizes = [2, 32], strides = [1, 1]} : vector<2x128xf32> to vector<2x32xf32>
    %32 = vector.extract_strided_slice %28 {offsets = [0, 64], sizes = [2, 32], strides = [1, 1]} : vector<2x128xf32> to vector<2x32xf32>
    %33 = arith.mulf %30, %14 : vector<2x32xf32>
    %34 = arith.mulf %29, %32 : vector<2x32xf32>
    %35 = arith.addf %33, %34 : vector<2x32xf32>
    %36 = math.tanh %35 : vector<2x32xf32>
    %37 = arith.mulf %31, %36 : vector<2x32xf32>
    %38 = arith.negf %22 : vector<2x128xf32>
    %39 = math.exp %38 : vector<2x128xf32>
    %cst_16 = arith.constant 1.000000e+00 : f32
    %40 = vector.broadcast %cst_16 : f32 to vector<2x128xf32>
    %41 = arith.addf %40, %39 : vector<2x128xf32>
    %42 = arith.divf %40, %41 : vector<2x128xf32>
    %43 = math.tanh %22 : vector<2x128xf32>
    %44 = vector.extract_strided_slice %42 {offsets = [0, 0], sizes = [2, 32], strides = [1, 1]} : vector<2x128xf32> to vector<2x32xf32>
    %45 = vector.extract_strided_slice %42 {offsets = [0, 32], sizes = [2, 32], strides = [1, 1]} : vector<2x128xf32> to vector<2x32xf32>
    %46 = vector.extract_strided_slice %42 {offsets = [0, 96], sizes = [2, 32], strides = [1, 1]} : vector<2x128xf32> to vector<2x32xf32>
    %47 = vector.extract_strided_slice %43 {offsets = [0, 64], sizes = [2, 32], strides = [1, 1]} : vector<2x128xf32> to vector<2x32xf32>
    %48 = arith.mulf %45, %16 : vector<2x32xf32>
    %49 = arith.mulf %44, %47 : vector<2x32xf32>
    %50 = arith.addf %48, %49 : vector<2x32xf32>
    %51 = math.tanh %50 : vector<2x32xf32>
    %52 = arith.mulf %46, %51 : vector<2x32xf32>
    %53 = vector.extract_strided_slice %10 {offsets = [2, 0], sizes = [2, 128], strides = [1, 1]} : vector<16x256xf32> to vector<2x128xf32>
    %cst_17 = arith.constant dense<0.000000e+00> : vector<2x128xf32>
    %54 = tpu.matmul %37, %11, %cst_17 {dimension_numbers = #tpu.dot_dimension_numbers<[1], [0], [0], [1], [0, 0, 1, 1], [], []>} : vector<2x32xf32>, vector<32x128xf32>, vector<2x128xf32> -> vector<2x128xf32>
    %55 = arith.addf %53, %54 : vector<2x128xf32>
    %56 = vector.extract_strided_slice %10 {offsets = [12, 128], sizes = [2, 128], strides = [1, 1]} : vector<16x256xf32> to vector<2x128xf32>
    %cst_18 = arith.constant dense<0.000000e+00> : vector<2x128xf32>
    %57 = tpu.matmul %52, %12, %cst_18 {dimension_numbers = #tpu.dot_dimension_numbers<[1], [0], [0], [1], [0, 0, 1, 1], [], []>} : vector<2x32xf32>, vector<32x128xf32>, vector<2x128xf32> -> vector<2x128xf32>
    %58 = arith.addf %56, %57 : vector<2x128xf32>
    %59 = arith.negf %55 : vector<2x128xf32>
    %60 = math.exp %59 : vector<2x128xf32>
    %cst_19 = arith.constant 1.000000e+00 : f32
    %61 = vector.broadcast %cst_19 : f32 to vector<2x128xf32>
    %62 = arith.addf %61, %60 : vector<2x128xf32>
    %63 = arith.divf %61, %62 : vector<2x128xf32>
    %64 = math.tanh %55 : vector<2x128xf32>
    %65 = vector.extract_strided_slice %63 {offsets = [0, 0], sizes = [2, 32], strides = [1, 1]} : vector<2x128xf32> to vector<2x32xf32>
    %66 = vector.extract_strided_slice %63 {offsets = [0, 32], sizes = [2, 32], strides = [1, 1]} : vector<2x128xf32> to vector<2x32xf32>
    %67 = vector.extract_strided_slice %63 {offsets = [0, 96], sizes = [2, 32], strides = [1, 1]} : vector<2x128xf32> to vector<2x32xf32>
    %68 = vector.extract_strided_slice %64 {offsets = [0, 64], sizes = [2, 32], strides = [1, 1]} : vector<2x128xf32> to vector<2x32xf32>
    %69 = arith.mulf %66, %35 : vector<2x32xf32>
    %70 = arith.mulf %65, %68 : vector<2x32xf32>
    %71 = arith.addf %69, %70 : vector<2x32xf32>
    %72 = math.tanh %71 : vector<2x32xf32>
    %73 = arith.mulf %67, %72 : vector<2x32xf32>
    %74 = arith.negf %58 : vector<2x128xf32>
    %75 = math.exp %74 : vector<2x128xf32>
    %cst_20 = arith.constant 1.000000e+00 : f32
    %76 = vector.broadcast %cst_20 : f32 to vector<2x128xf32>
    %77 = arith.addf %76, %75 : vector<2x128xf32>
    %78 = arith.divf %76, %77 : vector<2x128xf32>
    %79 = math.tanh %58 : vector<2x128xf32>
    %80 = vector.extract_strided_slice %78 {offsets = [0, 0], sizes = [2, 32], strides = [1, 1]} : vector<2x128xf32> to vector<2x32xf32>
    %81 = vector.extract_strided_slice %78 {offsets = [0, 32], sizes = [2, 32], strides = [1, 1]} : vector<2x128xf32> to vector<2x32xf32>
    %82 = vector.extract_strided_slice %78 {offsets = [0, 96], sizes = [2, 32], strides = [1, 1]} : vector<2x128xf32> to vector<2x32xf32>
    %83 = vector.extract_strided_slice %79 {offsets = [0, 64], sizes = [2, 32], strides = [1, 1]} : vector<2x128xf32> to vector<2x32xf32>
    %84 = arith.mulf %81, %50 : vector<2x32xf32>
    %85 = arith.mulf %80, %83 : vector<2x32xf32>
    %86 = arith.addf %84, %85 : vector<2x32xf32>
    %87 = math.tanh %86 : vector<2x32xf32>
    %88 = arith.mulf %82, %87 : vector<2x32xf32>
    %89 = vector.extract_strided_slice %10 {offsets = [4, 0], sizes = [2, 128], strides = [1, 1]} : vector<16x256xf32> to vector<2x128xf32>
    %cst_21 = arith.constant dense<0.000000e+00> : vector<2x128xf32>
    %90 = tpu.matmul %73, %11, %cst_21 {dimension_numbers = #tpu.dot_dimension_numbers<[1], [0], [0], [1], [0, 0, 1, 1], [], []>} : vector<2x32xf32>, vector<32x128xf32>, vector<2x128xf32> -> vector<2x128xf32>
    %91 = arith.addf %89, %90 : vector<2x128xf32>
    %92 = vector.extract_strided_slice %10 {offsets = [10, 128], sizes = [2, 128], strides = [1, 1]} : vector<16x256xf32> to vector<2x128xf32>
    %cst_22 = arith.constant dense<0.000000e+00> : vector<2x128xf32>
    %93 = tpu.matmul %88, %12, %cst_22 {dimension_numbers = #tpu.dot_dimension_numbers<[1], [0], [0], [1], [0, 0, 1, 1], [], []>} : vector<2x32xf32>, vector<32x128xf32>, vector<2x128xf32> -> vector<2x128xf32>
    %94 = arith.addf %92, %93 : vector<2x128xf32>
    %95 = arith.negf %91 : vector<2x128xf32>
    %96 = math.exp %95 : vector<2x128xf32>
    %cst_23 = arith.constant 1.000000e+00 : f32
    %97 = vector.broadcast %cst_23 : f32 to vector<2x128xf32>
    %98 = arith.addf %97, %96 : vector<2x128xf32>
    %99 = arith.divf %97, %98 : vector<2x128xf32>
    %100 = math.tanh %91 : vector<2x128xf32>
    %101 = vector.extract_strided_slice %99 {offsets = [0, 0], sizes = [2, 32], strides = [1, 1]} : vector<2x128xf32> to vector<2x32xf32>
    %102 = vector.extract_strided_slice %99 {offsets = [0, 32], sizes = [2, 32], strides = [1, 1]} : vector<2x128xf32> to vector<2x32xf32>
    %103 = vector.extract_strided_slice %99 {offsets = [0, 96], sizes = [2, 32], strides = [1, 1]} : vector<2x128xf32> to vector<2x32xf32>
    %104 = vector.extract_strided_slice %100 {offsets = [0, 64], sizes = [2, 32], strides = [1, 1]} : vector<2x128xf32> to vector<2x32xf32>
    %105 = arith.mulf %102, %71 : vector<2x32xf32>
    %106 = arith.mulf %101, %104 : vector<2x32xf32>
    %107 = arith.addf %105, %106 : vector<2x32xf32>
    %108 = math.tanh %107 : vector<2x32xf32>
    %109 = arith.mulf %103, %108 : vector<2x32xf32>
    %110 = arith.negf %94 : vector<2x128xf32>
    %111 = math.exp %110 : vector<2x128xf32>
    %cst_24 = arith.constant 1.000000e+00 : f32
    %112 = vector.broadcast %cst_24 : f32 to vector<2x128xf32>
    %113 = arith.addf %112, %111 : vector<2x128xf32>
    %114 = arith.divf %112, %113 : vector<2x128xf32>
    %115 = math.tanh %94 : vector<2x128xf32>
    %116 = vector.extract_strided_slice %114 {offsets = [0, 0], sizes = [2, 32], strides = [1, 1]} : vector<2x128xf32> to vector<2x32xf32>
    %117 = vector.extract_strided_slice %114 {offsets = [0, 32], sizes = [2, 32], strides = [1, 1]} : vector<2x128xf32> to vector<2x32xf32>
    %118 = vector.extract_strided_slice %114 {offsets = [0, 96], sizes = [2, 32], strides = [1, 1]} : vector<2x128xf32> to vector<2x32xf32>
    %119 = vector.extract_strided_slice %115 {offsets = [0, 64], sizes = [2, 32], strides = [1, 1]} : vector<2x128xf32> to vector<2x32xf32>
    %120 = arith.mulf %117, %86 : vector<2x32xf32>
    %121 = arith.mulf %116, %119 : vector<2x32xf32>
    %122 = arith.addf %120, %121 : vector<2x32xf32>
    %123 = math.tanh %122 : vector<2x32xf32>
    %124 = arith.mulf %118, %123 : vector<2x32xf32>
    %125 = vector.extract_strided_slice %10 {offsets = [6, 0], sizes = [2, 128], strides = [1, 1]} : vector<16x256xf32> to vector<2x128xf32>
    %cst_25 = arith.constant dense<0.000000e+00> : vector<2x128xf32>
    %126 = tpu.matmul %109, %11, %cst_25 {dimension_numbers = #tpu.dot_dimension_numbers<[1], [0], [0], [1], [0, 0, 1, 1], [], []>} : vector<2x32xf32>, vector<32x128xf32>, vector<2x128xf32> -> vector<2x128xf32>
    %127 = arith.addf %125, %126 : vector<2x128xf32>
    %128 = vector.extract_strided_slice %10 {offsets = [8, 128], sizes = [2, 128], strides = [1, 1]} : vector<16x256xf32> to vector<2x128xf32>
    %cst_26 = arith.constant dense<0.000000e+00> : vector<2x128xf32>
    %129 = tpu.matmul %124, %12, %cst_26 {dimension_numbers = #tpu.dot_dimension_numbers<[1], [0], [0], [1], [0, 0, 1, 1], [], []>} : vector<2x32xf32>, vector<32x128xf32>, vector<2x128xf32> -> vector<2x128xf32>
    %130 = arith.addf %128, %129 : vector<2x128xf32>
    %131 = arith.negf %127 : vector<2x128xf32>
    %132 = math.exp %131 : vector<2x128xf32>
    %cst_27 = arith.constant 1.000000e+00 : f32
    %133 = vector.broadcast %cst_27 : f32 to vector<2x128xf32>
    %134 = arith.addf %133, %132 : vector<2x128xf32>
    %135 = arith.divf %133, %134 : vector<2x128xf32>
    %136 = math.tanh %127 : vector<2x128xf32>
    %137 = vector.extract_strided_slice %135 {offsets = [0, 0], sizes = [2, 32], strides = [1, 1]} : vector<2x128xf32> to vector<2x32xf32>
    %138 = vector.extract_strided_slice %135 {offsets = [0, 32], sizes = [2, 32], strides = [1, 1]} : vector<2x128xf32> to vector<2x32xf32>
    %139 = vector.extract_strided_slice %135 {offsets = [0, 96], sizes = [2, 32], strides = [1, 1]} : vector<2x128xf32> to vector<2x32xf32>
    %140 = vector.extract_strided_slice %136 {offsets = [0, 64], sizes = [2, 32], strides = [1, 1]} : vector<2x128xf32> to vector<2x32xf32>
    %141 = arith.mulf %138, %107 : vector<2x32xf32>
    %142 = arith.mulf %137, %140 : vector<2x32xf32>
    %143 = arith.addf %141, %142 : vector<2x32xf32>
    %144 = math.tanh %143 : vector<2x32xf32>
    %145 = arith.mulf %139, %144 : vector<2x32xf32>
    %146 = arith.negf %130 : vector<2x128xf32>
    %147 = math.exp %146 : vector<2x128xf32>
    %cst_28 = arith.constant 1.000000e+00 : f32
    %148 = vector.broadcast %cst_28 : f32 to vector<2x128xf32>
    %149 = arith.addf %148, %147 : vector<2x128xf32>
    %150 = arith.divf %148, %149 : vector<2x128xf32>
    %151 = math.tanh %130 : vector<2x128xf32>
    %152 = vector.extract_strided_slice %150 {offsets = [0, 0], sizes = [2, 32], strides = [1, 1]} : vector<2x128xf32> to vector<2x32xf32>
    %153 = vector.extract_strided_slice %150 {offsets = [0, 32], sizes = [2, 32], strides = [1, 1]} : vector<2x128xf32> to vector<2x32xf32>
    %154 = vector.extract_strided_slice %150 {offsets = [0, 96], sizes = [2, 32], strides = [1, 1]} : vector<2x128xf32> to vector<2x32xf32>
    %155 = vector.extract_strided_slice %151 {offsets = [0, 64], sizes = [2, 32], strides = [1, 1]} : vector<2x128xf32> to vector<2x32xf32>
    %156 = arith.mulf %153, %122 : vector<2x32xf32>
    %157 = arith.mulf %152, %155 : vector<2x32xf32>
    %158 = arith.addf %156, %157 : vector<2x32xf32>
    %159 = math.tanh %158 : vector<2x32xf32>
    %160 = arith.mulf %154, %159 : vector<2x32xf32>
    %161 = vector.extract_strided_slice %10 {offsets = [8, 0], sizes = [2, 128], strides = [1, 1]} : vector<16x256xf32> to vector<2x128xf32>
    %cst_29 = arith.constant dense<0.000000e+00> : vector<2x128xf32>
    %162 = tpu.matmul %145, %11, %cst_29 {dimension_numbers = #tpu.dot_dimension_numbers<[1], [0], [0], [1], [0, 0, 1, 1], [], []>} : vector<2x32xf32>, vector<32x128xf32>, vector<2x128xf32> -> vector<2x128xf32>
    %163 = arith.addf %161, %162 : vector<2x128xf32>
    %164 = vector.extract_strided_slice %10 {offsets = [6, 128], sizes = [2, 128], strides = [1, 1]} : vector<16x256xf32> to vector<2x128xf32>
    %cst_30 = arith.constant dense<0.000000e+00> : vector<2x128xf32>
    %165 = tpu.matmul %160, %12, %cst_30 {dimension_numbers = #tpu.dot_dimension_numbers<[1], [0], [0], [1], [0, 0, 1, 1], [], []>} : vector<2x32xf32>, vector<32x128xf32>, vector<2x128xf32> -> vector<2x128xf32>
    %166 = arith.addf %164, %165 : vector<2x128xf32>
    %167 = arith.negf %163 : vector<2x128xf32>
    %168 = math.exp %167 : vector<2x128xf32>
    %cst_31 = arith.constant 1.000000e+00 : f32
    %169 = vector.broadcast %cst_31 : f32 to vector<2x128xf32>
    %170 = arith.addf %169, %168 : vector<2x128xf32>
    %171 = arith.divf %169, %170 : vector<2x128xf32>
    %172 = math.tanh %163 : vector<2x128xf32>
    %173 = vector.extract_strided_slice %171 {offsets = [0, 0], sizes = [2, 32], strides = [1, 1]} : vector<2x128xf32> to vector<2x32xf32>
    %174 = vector.extract_strided_slice %171 {offsets = [0, 32], sizes = [2, 32], strides = [1, 1]} : vector<2x128xf32> to vector<2x32xf32>
    %175 = vector.extract_strided_slice %171 {offsets = [0, 96], sizes = [2, 32], strides = [1, 1]} : vector<2x128xf32> to vector<2x32xf32>
    %176 = vector.extract_strided_slice %172 {offsets = [0, 64], sizes = [2, 32], strides = [1, 1]} : vector<2x128xf32> to vector<2x32xf32>
    %177 = arith.mulf %174, %143 : vector<2x32xf32>
    %178 = arith.mulf %173, %176 : vector<2x32xf32>
    %179 = arith.addf %177, %178 : vector<2x32xf32>
    %180 = math.tanh %179 : vector<2x32xf32>
    %181 = arith.mulf %175, %180 : vector<2x32xf32>
    %182 = arith.negf %166 : vector<2x128xf32>
    %183 = math.exp %182 : vector<2x128xf32>
    %cst_32 = arith.constant 1.000000e+00 : f32
    %184 = vector.broadcast %cst_32 : f32 to vector<2x128xf32>
    %185 = arith.addf %184, %183 : vector<2x128xf32>
    %186 = arith.divf %184, %185 : vector<2x128xf32>
    %187 = math.tanh %166 : vector<2x128xf32>
    %188 = vector.extract_strided_slice %186 {offsets = [0, 0], sizes = [2, 32], strides = [1, 1]} : vector<2x128xf32> to vector<2x32xf32>
    %189 = vector.extract_strided_slice %186 {offsets = [0, 32], sizes = [2, 32], strides = [1, 1]} : vector<2x128xf32> to vector<2x32xf32>
    %190 = vector.extract_strided_slice %186 {offsets = [0, 96], sizes = [2, 32], strides = [1, 1]} : vector<2x128xf32> to vector<2x32xf32>
    %191 = vector.extract_strided_slice %187 {offsets = [0, 64], sizes = [2, 32], strides = [1, 1]} : vector<2x128xf32> to vector<2x32xf32>
    %192 = arith.mulf %189, %158 : vector<2x32xf32>
    %193 = arith.mulf %188, %191 : vector<2x32xf32>
    %194 = arith.addf %192, %193 : vector<2x32xf32>
    %195 = math.tanh %194 : vector<2x32xf32>
    %196 = arith.mulf %190, %195 : vector<2x32xf32>
    %197 = vector.extract_strided_slice %10 {offsets = [10, 0], sizes = [2, 128], strides = [1, 1]} : vector<16x256xf32> to vector<2x128xf32>
    %cst_33 = arith.constant dense<0.000000e+00> : vector<2x128xf32>
    %198 = tpu.matmul %181, %11, %cst_33 {dimension_numbers = #tpu.dot_dimension_numbers<[1], [0], [0], [1], [0, 0, 1, 1], [], []>} : vector<2x32xf32>, vector<32x128xf32>, vector<2x128xf32> -> vector<2x128xf32>
    %199 = arith.addf %197, %198 : vector<2x128xf32>
    %200 = vector.extract_strided_slice %10 {offsets = [4, 128], sizes = [2, 128], strides = [1, 1]} : vector<16x256xf32> to vector<2x128xf32>
    %cst_34 = arith.constant dense<0.000000e+00> : vector<2x128xf32>
    %201 = tpu.matmul %196, %12, %cst_34 {dimension_numbers = #tpu.dot_dimension_numbers<[1], [0], [0], [1], [0, 0, 1, 1], [], []>} : vector<2x32xf32>, vector<32x128xf32>, vector<2x128xf32> -> vector<2x128xf32>
    %202 = arith.addf %200, %201 : vector<2x128xf32>
    %203 = arith.negf %199 : vector<2x128xf32>
    %204 = math.exp %203 : vector<2x128xf32>
    %cst_35 = arith.constant 1.000000e+00 : f32
    %205 = vector.broadcast %cst_35 : f32 to vector<2x128xf32>
    %206 = arith.addf %205, %204 : vector<2x128xf32>
    %207 = arith.divf %205, %206 : vector<2x128xf32>
    %208 = math.tanh %199 : vector<2x128xf32>
    %209 = vector.extract_strided_slice %207 {offsets = [0, 0], sizes = [2, 32], strides = [1, 1]} : vector<2x128xf32> to vector<2x32xf32>
    %210 = vector.extract_strided_slice %207 {offsets = [0, 32], sizes = [2, 32], strides = [1, 1]} : vector<2x128xf32> to vector<2x32xf32>
    %211 = vector.extract_strided_slice %207 {offsets = [0, 96], sizes = [2, 32], strides = [1, 1]} : vector<2x128xf32> to vector<2x32xf32>
    %212 = vector.extract_strided_slice %208 {offsets = [0, 64], sizes = [2, 32], strides = [1, 1]} : vector<2x128xf32> to vector<2x32xf32>
    %213 = arith.mulf %210, %179 : vector<2x32xf32>
    %214 = arith.mulf %209, %212 : vector<2x32xf32>
    %215 = arith.addf %213, %214 : vector<2x32xf32>
    %216 = math.tanh %215 : vector<2x32xf32>
    %217 = arith.mulf %211, %216 : vector<2x32xf32>
    %218 = arith.negf %202 : vector<2x128xf32>
    %219 = math.exp %218 : vector<2x128xf32>
    %cst_36 = arith.constant 1.000000e+00 : f32
    %220 = vector.broadcast %cst_36 : f32 to vector<2x128xf32>
    %221 = arith.addf %220, %219 : vector<2x128xf32>
    %222 = arith.divf %220, %221 : vector<2x128xf32>
    %223 = math.tanh %202 : vector<2x128xf32>
    %224 = vector.extract_strided_slice %222 {offsets = [0, 0], sizes = [2, 32], strides = [1, 1]} : vector<2x128xf32> to vector<2x32xf32>
    %225 = vector.extract_strided_slice %222 {offsets = [0, 32], sizes = [2, 32], strides = [1, 1]} : vector<2x128xf32> to vector<2x32xf32>
    %226 = vector.extract_strided_slice %222 {offsets = [0, 96], sizes = [2, 32], strides = [1, 1]} : vector<2x128xf32> to vector<2x32xf32>
    %227 = vector.extract_strided_slice %223 {offsets = [0, 64], sizes = [2, 32], strides = [1, 1]} : vector<2x128xf32> to vector<2x32xf32>
    %228 = arith.mulf %225, %194 : vector<2x32xf32>
    %229 = arith.mulf %224, %227 : vector<2x32xf32>
    %230 = arith.addf %228, %229 : vector<2x32xf32>
    %231 = math.tanh %230 : vector<2x32xf32>
    %232 = arith.mulf %226, %231 : vector<2x32xf32>
    %233 = vector.extract_strided_slice %10 {offsets = [12, 0], sizes = [2, 128], strides = [1, 1]} : vector<16x256xf32> to vector<2x128xf32>
    %cst_37 = arith.constant dense<0.000000e+00> : vector<2x128xf32>
    %234 = tpu.matmul %217, %11, %cst_37 {dimension_numbers = #tpu.dot_dimension_numbers<[1], [0], [0], [1], [0, 0, 1, 1], [], []>} : vector<2x32xf32>, vector<32x128xf32>, vector<2x128xf32> -> vector<2x128xf32>
    %235 = arith.addf %233, %234 : vector<2x128xf32>
    %236 = vector.extract_strided_slice %10 {offsets = [2, 128], sizes = [2, 128], strides = [1, 1]} : vector<16x256xf32> to vector<2x128xf32>
    %cst_38 = arith.constant dense<0.000000e+00> : vector<2x128xf32>
    %237 = tpu.matmul %232, %12, %cst_38 {dimension_numbers = #tpu.dot_dimension_numbers<[1], [0], [0], [1], [0, 0, 1, 1], [], []>} : vector<2x32xf32>, vector<32x128xf32>, vector<2x128xf32> -> vector<2x128xf32>
    %238 = arith.addf %236, %237 : vector<2x128xf32>
    %239 = arith.negf %235 : vector<2x128xf32>
    %240 = math.exp %239 : vector<2x128xf32>
    %cst_39 = arith.constant 1.000000e+00 : f32
    %241 = vector.broadcast %cst_39 : f32 to vector<2x128xf32>
    %242 = arith.addf %241, %240 : vector<2x128xf32>
    %243 = arith.divf %241, %242 : vector<2x128xf32>
    %244 = math.tanh %235 : vector<2x128xf32>
    %245 = vector.extract_strided_slice %243 {offsets = [0, 0], sizes = [2, 32], strides = [1, 1]} : vector<2x128xf32> to vector<2x32xf32>
    %246 = vector.extract_strided_slice %243 {offsets = [0, 32], sizes = [2, 32], strides = [1, 1]} : vector<2x128xf32> to vector<2x32xf32>
    %247 = vector.extract_strided_slice %243 {offsets = [0, 96], sizes = [2, 32], strides = [1, 1]} : vector<2x128xf32> to vector<2x32xf32>
    %248 = vector.extract_strided_slice %244 {offsets = [0, 64], sizes = [2, 32], strides = [1, 1]} : vector<2x128xf32> to vector<2x32xf32>
    %249 = arith.mulf %246, %215 : vector<2x32xf32>
    %250 = arith.mulf %245, %248 : vector<2x32xf32>
    %251 = arith.addf %249, %250 : vector<2x32xf32>
    %252 = math.tanh %251 : vector<2x32xf32>
    %253 = arith.mulf %247, %252 : vector<2x32xf32>
    %254 = arith.negf %238 : vector<2x128xf32>
    %255 = math.exp %254 : vector<2x128xf32>
    %cst_40 = arith.constant 1.000000e+00 : f32
    %256 = vector.broadcast %cst_40 : f32 to vector<2x128xf32>
    %257 = arith.addf %256, %255 : vector<2x128xf32>
    %258 = arith.divf %256, %257 : vector<2x128xf32>
    %259 = math.tanh %238 : vector<2x128xf32>
    %260 = vector.extract_strided_slice %258 {offsets = [0, 0], sizes = [2, 32], strides = [1, 1]} : vector<2x128xf32> to vector<2x32xf32>
    %261 = vector.extract_strided_slice %258 {offsets = [0, 32], sizes = [2, 32], strides = [1, 1]} : vector<2x128xf32> to vector<2x32xf32>
    %262 = vector.extract_strided_slice %258 {offsets = [0, 96], sizes = [2, 32], strides = [1, 1]} : vector<2x128xf32> to vector<2x32xf32>
    %263 = vector.extract_strided_slice %259 {offsets = [0, 64], sizes = [2, 32], strides = [1, 1]} : vector<2x128xf32> to vector<2x32xf32>
    %264 = arith.mulf %261, %230 : vector<2x32xf32>
    %265 = arith.mulf %260, %263 : vector<2x32xf32>
    %266 = arith.addf %264, %265 : vector<2x32xf32>
    %267 = math.tanh %266 : vector<2x32xf32>
    %268 = arith.mulf %262, %267 : vector<2x32xf32>
    %269 = vector.extract_strided_slice %10 {offsets = [14, 0], sizes = [2, 128], strides = [1, 1]} : vector<16x256xf32> to vector<2x128xf32>
    %cst_41 = arith.constant dense<0.000000e+00> : vector<2x128xf32>
    %270 = tpu.matmul %253, %11, %cst_41 {dimension_numbers = #tpu.dot_dimension_numbers<[1], [0], [0], [1], [0, 0, 1, 1], [], []>} : vector<2x32xf32>, vector<32x128xf32>, vector<2x128xf32> -> vector<2x128xf32>
    %271 = arith.addf %269, %270 : vector<2x128xf32>
    %272 = vector.extract_strided_slice %10 {offsets = [0, 128], sizes = [2, 128], strides = [1, 1]} : vector<16x256xf32> to vector<2x128xf32>
    %cst_42 = arith.constant dense<0.000000e+00> : vector<2x128xf32>
    %273 = tpu.matmul %268, %12, %cst_42 {dimension_numbers = #tpu.dot_dimension_numbers<[1], [0], [0], [1], [0, 0, 1, 1], [], []>} : vector<2x32xf32>, vector<32x128xf32>, vector<2x128xf32> -> vector<2x128xf32>
    %274 = arith.addf %272, %273 : vector<2x128xf32>
    %275 = arith.negf %271 : vector<2x128xf32>
    %276 = math.exp %275 : vector<2x128xf32>
    %cst_43 = arith.constant 1.000000e+00 : f32
    %277 = vector.broadcast %cst_43 : f32 to vector<2x128xf32>
    %278 = arith.addf %277, %276 : vector<2x128xf32>
    %279 = arith.divf %277, %278 : vector<2x128xf32>
    %280 = math.tanh %271 : vector<2x128xf32>
    %281 = vector.extract_strided_slice %279 {offsets = [0, 0], sizes = [2, 32], strides = [1, 1]} : vector<2x128xf32> to vector<2x32xf32>
    %282 = vector.extract_strided_slice %279 {offsets = [0, 32], sizes = [2, 32], strides = [1, 1]} : vector<2x128xf32> to vector<2x32xf32>
    %283 = vector.extract_strided_slice %279 {offsets = [0, 96], sizes = [2, 32], strides = [1, 1]} : vector<2x128xf32> to vector<2x32xf32>
    %284 = vector.extract_strided_slice %280 {offsets = [0, 64], sizes = [2, 32], strides = [1, 1]} : vector<2x128xf32> to vector<2x32xf32>
    %285 = arith.mulf %282, %251 : vector<2x32xf32>
    %286 = arith.mulf %281, %284 : vector<2x32xf32>
    %287 = arith.addf %285, %286 : vector<2x32xf32>
    %288 = math.tanh %287 : vector<2x32xf32>
    %289 = arith.mulf %283, %288 : vector<2x32xf32>
    %290 = arith.negf %274 : vector<2x128xf32>
    %291 = math.exp %290 : vector<2x128xf32>
    %cst_44 = arith.constant 1.000000e+00 : f32
    %292 = vector.broadcast %cst_44 : f32 to vector<2x128xf32>
    %293 = arith.addf %292, %291 : vector<2x128xf32>
    %294 = arith.divf %292, %293 : vector<2x128xf32>
    %295 = math.tanh %274 : vector<2x128xf32>
    %296 = vector.extract_strided_slice %294 {offsets = [0, 0], sizes = [2, 32], strides = [1, 1]} : vector<2x128xf32> to vector<2x32xf32>
    %297 = vector.extract_strided_slice %294 {offsets = [0, 32], sizes = [2, 32], strides = [1, 1]} : vector<2x128xf32> to vector<2x32xf32>
    %298 = vector.extract_strided_slice %294 {offsets = [0, 96], sizes = [2, 32], strides = [1, 1]} : vector<2x128xf32> to vector<2x32xf32>
    %299 = vector.extract_strided_slice %295 {offsets = [0, 64], sizes = [2, 32], strides = [1, 1]} : vector<2x128xf32> to vector<2x32xf32>
    %300 = arith.mulf %297, %266 : vector<2x32xf32>
    %301 = arith.mulf %296, %299 : vector<2x32xf32>
    %302 = arith.addf %300, %301 : vector<2x32xf32>
    %303 = math.tanh %302 : vector<2x32xf32>
    %304 = arith.mulf %298, %303 : vector<2x32xf32>
    %305 = tpu.concatenate %37, %73, %109, %145, %181, %217, %253, %289 in 0 : vector<2x32xf32>, vector<2x32xf32>, vector<2x32xf32>, vector<2x32xf32>, vector<2x32xf32>, vector<2x32xf32>, vector<2x32xf32>, vector<2x32xf32> -> vector<16x32xf32>
    %306 = tpu.concatenate %304, %268, %232, %196, %160, %124, %88, %52 in 0 : vector<2x32xf32>, vector<2x32xf32>, vector<2x32xf32>, vector<2x32xf32>, vector<2x32xf32>, vector<2x32xf32>, vector<2x32xf32>, vector<2x32xf32> -> vector<16x32xf32>
    %c112 = arith.constant 112 : index
    %c0_45 = arith.constant 0 : index
    %307 = vector.load %arg1[%c112, %c0_45] : memref<320x256xf32, #tpu.memory_space<vmem>>, vector<32x256xf32>
    %cst_46 = arith.constant dense<0.000000e+00> : vector<16x256xf32>
    %308 = tpu.matmul %305, %307, %cst_46 {dimension_numbers = #tpu.dot_dimension_numbers<[1], [0], [0], [1], [0, 0, 1, 1], [], []>} : vector<16x32xf32>, vector<32x256xf32>, vector<16x256xf32> -> vector<16x256xf32>
    %c144 = arith.constant 144 : index
    %c0_47 = arith.constant 0 : index
    %309 = vector.load %arg1[%c144, %c0_47] : memref<320x256xf32, #tpu.memory_space<vmem>>, vector<32x256xf32>
    %cst_48 = arith.constant dense<0.000000e+00> : vector<16x256xf32>
    %310 = tpu.matmul %306, %309, %cst_48 {dimension_numbers = #tpu.dot_dimension_numbers<[1], [0], [0], [1], [0, 0, 1, 1], [], []>} : vector<16x32xf32>, vector<32x256xf32>, vector<16x256xf32> -> vector<16x256xf32>
    %311 = arith.addf %308, %310 : vector<16x256xf32>
    %c176 = arith.constant 176 : index
    %c0_49 = arith.constant 0 : index
    %312 = vector.load %arg1[%c176, %c0_49] : memref<320x256xf32, #tpu.memory_space<vmem>>, vector<1x256xf32>
    %313 = vector.broadcast %312 : vector<1x256xf32> to vector<16x256xf32>
    %314 = arith.addf %311, %313 : vector<16x256xf32>
    %c184 = arith.constant 184 : index
    %c0_50 = arith.constant 0 : index
    %315 = vector.load %arg1[%c184, %c0_50] : memref<320x256xf32, #tpu.memory_space<vmem>>, vector<32x128xf32>
    %c216 = arith.constant 216 : index
    %c0_51 = arith.constant 0 : index
    %316 = vector.load %arg1[%c216, %c0_51] : memref<320x256xf32, #tpu.memory_space<vmem>>, vector<32x128xf32>
    %cst_52 = arith.constant 0.000000e+00 : f32
    %317 = vector.broadcast %cst_52 : f32 to vector<2x32xf32>
    %cst_53 = arith.constant 0.000000e+00 : f32
    %318 = vector.broadcast %cst_53 : f32 to vector<2x32xf32>
    %cst_54 = arith.constant 0.000000e+00 : f32
    %319 = vector.broadcast %cst_54 : f32 to vector<2x32xf32>
    %cst_55 = arith.constant 0.000000e+00 : f32
    %320 = vector.broadcast %cst_55 : f32 to vector<2x32xf32>
    %321 = vector.extract_strided_slice %314 {offsets = [0, 0], sizes = [2, 128], strides = [1, 1]} : vector<16x256xf32> to vector<2x128xf32>
    %cst_56 = arith.constant dense<0.000000e+00> : vector<2x128xf32>
    %322 = tpu.matmul %317, %315, %cst_56 {dimension_numbers = #tpu.dot_dimension_numbers<[1], [0], [0], [1], [0, 0, 1, 1], [], []>} : vector<2x32xf32>, vector<32x128xf32>, vector<2x128xf32> -> vector<2x128xf32>
    %323 = arith.addf %321, %322 : vector<2x128xf32>
    %324 = vector.extract_strided_slice %314 {offsets = [14, 128], sizes = [2, 128], strides = [1, 1]} : vector<16x256xf32> to vector<2x128xf32>
    %cst_57 = arith.constant dense<0.000000e+00> : vector<2x128xf32>
    %325 = tpu.matmul %319, %316, %cst_57 {dimension_numbers = #tpu.dot_dimension_numbers<[1], [0], [0], [1], [0, 0, 1, 1], [], []>} : vector<2x32xf32>, vector<32x128xf32>, vector<2x128xf32> -> vector<2x128xf32>
    %326 = arith.addf %324, %325 : vector<2x128xf32>
    %327 = arith.negf %323 : vector<2x128xf32>
    %328 = math.exp %327 : vector<2x128xf32>
    %cst_58 = arith.constant 1.000000e+00 : f32
    %329 = vector.broadcast %cst_58 : f32 to vector<2x128xf32>
    %330 = arith.addf %329, %328 : vector<2x128xf32>
    %331 = arith.divf %329, %330 : vector<2x128xf32>
    %332 = math.tanh %323 : vector<2x128xf32>
    %333 = vector.extract_strided_slice %331 {offsets = [0, 0], sizes = [2, 32], strides = [1, 1]} : vector<2x128xf32> to vector<2x32xf32>
    %334 = vector.extract_strided_slice %331 {offsets = [0, 32], sizes = [2, 32], strides = [1, 1]} : vector<2x128xf32> to vector<2x32xf32>
    %335 = vector.extract_strided_slice %331 {offsets = [0, 96], sizes = [2, 32], strides = [1, 1]} : vector<2x128xf32> to vector<2x32xf32>
    %336 = vector.extract_strided_slice %332 {offsets = [0, 64], sizes = [2, 32], strides = [1, 1]} : vector<2x128xf32> to vector<2x32xf32>
    %337 = arith.mulf %334, %318 : vector<2x32xf32>
    %338 = arith.mulf %333, %336 : vector<2x32xf32>
    %339 = arith.addf %337, %338 : vector<2x32xf32>
    %340 = math.tanh %339 : vector<2x32xf32>
    %341 = arith.mulf %335, %340 : vector<2x32xf32>
    %342 = arith.negf %326 : vector<2x128xf32>
    %343 = math.exp %342 : vector<2x128xf32>
    %cst_59 = arith.constant 1.000000e+00 : f32
    %344 = vector.broadcast %cst_59 : f32 to vector<2x128xf32>
    %345 = arith.addf %344, %343 : vector<2x128xf32>
    %346 = arith.divf %344, %345 : vector<2x128xf32>
    %347 = math.tanh %326 : vector<2x128xf32>
    %348 = vector.extract_strided_slice %346 {offsets = [0, 0], sizes = [2, 32], strides = [1, 1]} : vector<2x128xf32> to vector<2x32xf32>
    %349 = vector.extract_strided_slice %346 {offsets = [0, 32], sizes = [2, 32], strides = [1, 1]} : vector<2x128xf32> to vector<2x32xf32>
    %350 = vector.extract_strided_slice %346 {offsets = [0, 96], sizes = [2, 32], strides = [1, 1]} : vector<2x128xf32> to vector<2x32xf32>
    %351 = vector.extract_strided_slice %347 {offsets = [0, 64], sizes = [2, 32], strides = [1, 1]} : vector<2x128xf32> to vector<2x32xf32>
    %352 = arith.mulf %349, %320 : vector<2x32xf32>
    %353 = arith.mulf %348, %351 : vector<2x32xf32>
    %354 = arith.addf %352, %353 : vector<2x32xf32>
    %355 = math.tanh %354 : vector<2x32xf32>
    %356 = arith.mulf %350, %355 : vector<2x32xf32>
    %357 = vector.extract_strided_slice %314 {offsets = [2, 0], sizes = [2, 128], strides = [1, 1]} : vector<16x256xf32> to vector<2x128xf32>
    %cst_60 = arith.constant dense<0.000000e+00> : vector<2x128xf32>
    %358 = tpu.matmul %341, %315, %cst_60 {dimension_numbers = #tpu.dot_dimension_numbers<[1], [0], [0], [1], [0, 0, 1, 1], [], []>} : vector<2x32xf32>, vector<32x128xf32>, vector<2x128xf32> -> vector<2x128xf32>
    %359 = arith.addf %357, %358 : vector<2x128xf32>
    %360 = vector.extract_strided_slice %314 {offsets = [12, 128], sizes = [2, 128], strides = [1, 1]} : vector<16x256xf32> to vector<2x128xf32>
    %cst_61 = arith.constant dense<0.000000e+00> : vector<2x128xf32>
    %361 = tpu.matmul %356, %316, %cst_61 {dimension_numbers = #tpu.dot_dimension_numbers<[1], [0], [0], [1], [0, 0, 1, 1], [], []>} : vector<2x32xf32>, vector<32x128xf32>, vector<2x128xf32> -> vector<2x128xf32>
    %362 = arith.addf %360, %361 : vector<2x128xf32>
    %363 = arith.negf %359 : vector<2x128xf32>
    %364 = math.exp %363 : vector<2x128xf32>
    %cst_62 = arith.constant 1.000000e+00 : f32
    %365 = vector.broadcast %cst_62 : f32 to vector<2x128xf32>
    %366 = arith.addf %365, %364 : vector<2x128xf32>
    %367 = arith.divf %365, %366 : vector<2x128xf32>
    %368 = math.tanh %359 : vector<2x128xf32>
    %369 = vector.extract_strided_slice %367 {offsets = [0, 0], sizes = [2, 32], strides = [1, 1]} : vector<2x128xf32> to vector<2x32xf32>
    %370 = vector.extract_strided_slice %367 {offsets = [0, 32], sizes = [2, 32], strides = [1, 1]} : vector<2x128xf32> to vector<2x32xf32>
    %371 = vector.extract_strided_slice %367 {offsets = [0, 96], sizes = [2, 32], strides = [1, 1]} : vector<2x128xf32> to vector<2x32xf32>
    %372 = vector.extract_strided_slice %368 {offsets = [0, 64], sizes = [2, 32], strides = [1, 1]} : vector<2x128xf32> to vector<2x32xf32>
    %373 = arith.mulf %370, %339 : vector<2x32xf32>
    %374 = arith.mulf %369, %372 : vector<2x32xf32>
    %375 = arith.addf %373, %374 : vector<2x32xf32>
    %376 = math.tanh %375 : vector<2x32xf32>
    %377 = arith.mulf %371, %376 : vector<2x32xf32>
    %378 = arith.negf %362 : vector<2x128xf32>
    %379 = math.exp %378 : vector<2x128xf32>
    %cst_63 = arith.constant 1.000000e+00 : f32
    %380 = vector.broadcast %cst_63 : f32 to vector<2x128xf32>
    %381 = arith.addf %380, %379 : vector<2x128xf32>
    %382 = arith.divf %380, %381 : vector<2x128xf32>
    %383 = math.tanh %362 : vector<2x128xf32>
    %384 = vector.extract_strided_slice %382 {offsets = [0, 0], sizes = [2, 32], strides = [1, 1]} : vector<2x128xf32> to vector<2x32xf32>
    %385 = vector.extract_strided_slice %382 {offsets = [0, 32], sizes = [2, 32], strides = [1, 1]} : vector<2x128xf32> to vector<2x32xf32>
    %386 = vector.extract_strided_slice %382 {offsets = [0, 96], sizes = [2, 32], strides = [1, 1]} : vector<2x128xf32> to vector<2x32xf32>
    %387 = vector.extract_strided_slice %383 {offsets = [0, 64], sizes = [2, 32], strides = [1, 1]} : vector<2x128xf32> to vector<2x32xf32>
    %388 = arith.mulf %385, %354 : vector<2x32xf32>
    %389 = arith.mulf %384, %387 : vector<2x32xf32>
    %390 = arith.addf %388, %389 : vector<2x32xf32>
    %391 = math.tanh %390 : vector<2x32xf32>
    %392 = arith.mulf %386, %391 : vector<2x32xf32>
    %393 = vector.extract_strided_slice %314 {offsets = [4, 0], sizes = [2, 128], strides = [1, 1]} : vector<16x256xf32> to vector<2x128xf32>
    %cst_64 = arith.constant dense<0.000000e+00> : vector<2x128xf32>
    %394 = tpu.matmul %377, %315, %cst_64 {dimension_numbers = #tpu.dot_dimension_numbers<[1], [0], [0], [1], [0, 0, 1, 1], [], []>} : vector<2x32xf32>, vector<32x128xf32>, vector<2x128xf32> -> vector<2x128xf32>
    %395 = arith.addf %393, %394 : vector<2x128xf32>
    %396 = vector.extract_strided_slice %314 {offsets = [10, 128], sizes = [2, 128], strides = [1, 1]} : vector<16x256xf32> to vector<2x128xf32>
    %cst_65 = arith.constant dense<0.000000e+00> : vector<2x128xf32>
    %397 = tpu.matmul %392, %316, %cst_65 {dimension_numbers = #tpu.dot_dimension_numbers<[1], [0], [0], [1], [0, 0, 1, 1], [], []>} : vector<2x32xf32>, vector<32x128xf32>, vector<2x128xf32> -> vector<2x128xf32>
    %398 = arith.addf %396, %397 : vector<2x128xf32>
    %399 = arith.negf %395 : vector<2x128xf32>
    %400 = math.exp %399 : vector<2x128xf32>
    %cst_66 = arith.constant 1.000000e+00 : f32
    %401 = vector.broadcast %cst_66 : f32 to vector<2x128xf32>
    %402 = arith.addf %401, %400 : vector<2x128xf32>
    %403 = arith.divf %401, %402 : vector<2x128xf32>
    %404 = math.tanh %395 : vector<2x128xf32>
    %405 = vector.extract_strided_slice %403 {offsets = [0, 0], sizes = [2, 32], strides = [1, 1]} : vector<2x128xf32> to vector<2x32xf32>
    %406 = vector.extract_strided_slice %403 {offsets = [0, 32], sizes = [2, 32], strides = [1, 1]} : vector<2x128xf32> to vector<2x32xf32>
    %407 = vector.extract_strided_slice %403 {offsets = [0, 96], sizes = [2, 32], strides = [1, 1]} : vector<2x128xf32> to vector<2x32xf32>
    %408 = vector.extract_strided_slice %404 {offsets = [0, 64], sizes = [2, 32], strides = [1, 1]} : vector<2x128xf32> to vector<2x32xf32>
    %409 = arith.mulf %406, %375 : vector<2x32xf32>
    %410 = arith.mulf %405, %408 : vector<2x32xf32>
    %411 = arith.addf %409, %410 : vector<2x32xf32>
    %412 = math.tanh %411 : vector<2x32xf32>
    %413 = arith.mulf %407, %412 : vector<2x32xf32>
    %414 = arith.negf %398 : vector<2x128xf32>
    %415 = math.exp %414 : vector<2x128xf32>
    %cst_67 = arith.constant 1.000000e+00 : f32
    %416 = vector.broadcast %cst_67 : f32 to vector<2x128xf32>
    %417 = arith.addf %416, %415 : vector<2x128xf32>
    %418 = arith.divf %416, %417 : vector<2x128xf32>
    %419 = math.tanh %398 : vector<2x128xf32>
    %420 = vector.extract_strided_slice %418 {offsets = [0, 0], sizes = [2, 32], strides = [1, 1]} : vector<2x128xf32> to vector<2x32xf32>
    %421 = vector.extract_strided_slice %418 {offsets = [0, 32], sizes = [2, 32], strides = [1, 1]} : vector<2x128xf32> to vector<2x32xf32>
    %422 = vector.extract_strided_slice %418 {offsets = [0, 96], sizes = [2, 32], strides = [1, 1]} : vector<2x128xf32> to vector<2x32xf32>
    %423 = vector.extract_strided_slice %419 {offsets = [0, 64], sizes = [2, 32], strides = [1, 1]} : vector<2x128xf32> to vector<2x32xf32>
    %424 = arith.mulf %421, %390 : vector<2x32xf32>
    %425 = arith.mulf %420, %423 : vector<2x32xf32>
    %426 = arith.addf %424, %425 : vector<2x32xf32>
    %427 = math.tanh %426 : vector<2x32xf32>
    %428 = arith.mulf %422, %427 : vector<2x32xf32>
    %429 = vector.extract_strided_slice %314 {offsets = [6, 0], sizes = [2, 128], strides = [1, 1]} : vector<16x256xf32> to vector<2x128xf32>
    %cst_68 = arith.constant dense<0.000000e+00> : vector<2x128xf32>
    %430 = tpu.matmul %413, %315, %cst_68 {dimension_numbers = #tpu.dot_dimension_numbers<[1], [0], [0], [1], [0, 0, 1, 1], [], []>} : vector<2x32xf32>, vector<32x128xf32>, vector<2x128xf32> -> vector<2x128xf32>
    %431 = arith.addf %429, %430 : vector<2x128xf32>
    %432 = vector.extract_strided_slice %314 {offsets = [8, 128], sizes = [2, 128], strides = [1, 1]} : vector<16x256xf32> to vector<2x128xf32>
    %cst_69 = arith.constant dense<0.000000e+00> : vector<2x128xf32>
    %433 = tpu.matmul %428, %316, %cst_69 {dimension_numbers = #tpu.dot_dimension_numbers<[1], [0], [0], [1], [0, 0, 1, 1], [], []>} : vector<2x32xf32>, vector<32x128xf32>, vector<2x128xf32> -> vector<2x128xf32>
    %434 = arith.addf %432, %433 : vector<2x128xf32>
    %435 = arith.negf %431 : vector<2x128xf32>
    %436 = math.exp %435 : vector<2x128xf32>
    %cst_70 = arith.constant 1.000000e+00 : f32
    %437 = vector.broadcast %cst_70 : f32 to vector<2x128xf32>
    %438 = arith.addf %437, %436 : vector<2x128xf32>
    %439 = arith.divf %437, %438 : vector<2x128xf32>
    %440 = math.tanh %431 : vector<2x128xf32>
    %441 = vector.extract_strided_slice %439 {offsets = [0, 0], sizes = [2, 32], strides = [1, 1]} : vector<2x128xf32> to vector<2x32xf32>
    %442 = vector.extract_strided_slice %439 {offsets = [0, 32], sizes = [2, 32], strides = [1, 1]} : vector<2x128xf32> to vector<2x32xf32>
    %443 = vector.extract_strided_slice %439 {offsets = [0, 96], sizes = [2, 32], strides = [1, 1]} : vector<2x128xf32> to vector<2x32xf32>
    %444 = vector.extract_strided_slice %440 {offsets = [0, 64], sizes = [2, 32], strides = [1, 1]} : vector<2x128xf32> to vector<2x32xf32>
    %445 = arith.mulf %442, %411 : vector<2x32xf32>
    %446 = arith.mulf %441, %444 : vector<2x32xf32>
    %447 = arith.addf %445, %446 : vector<2x32xf32>
    %448 = math.tanh %447 : vector<2x32xf32>
    %449 = arith.mulf %443, %448 : vector<2x32xf32>
    %450 = arith.negf %434 : vector<2x128xf32>
    %451 = math.exp %450 : vector<2x128xf32>
    %cst_71 = arith.constant 1.000000e+00 : f32
    %452 = vector.broadcast %cst_71 : f32 to vector<2x128xf32>
    %453 = arith.addf %452, %451 : vector<2x128xf32>
    %454 = arith.divf %452, %453 : vector<2x128xf32>
    %455 = math.tanh %434 : vector<2x128xf32>
    %456 = vector.extract_strided_slice %454 {offsets = [0, 0], sizes = [2, 32], strides = [1, 1]} : vector<2x128xf32> to vector<2x32xf32>
    %457 = vector.extract_strided_slice %454 {offsets = [0, 32], sizes = [2, 32], strides = [1, 1]} : vector<2x128xf32> to vector<2x32xf32>
    %458 = vector.extract_strided_slice %454 {offsets = [0, 96], sizes = [2, 32], strides = [1, 1]} : vector<2x128xf32> to vector<2x32xf32>
    %459 = vector.extract_strided_slice %455 {offsets = [0, 64], sizes = [2, 32], strides = [1, 1]} : vector<2x128xf32> to vector<2x32xf32>
    %460 = arith.mulf %457, %426 : vector<2x32xf32>
    %461 = arith.mulf %456, %459 : vector<2x32xf32>
    %462 = arith.addf %460, %461 : vector<2x32xf32>
    %463 = math.tanh %462 : vector<2x32xf32>
    %464 = arith.mulf %458, %463 : vector<2x32xf32>
    %465 = vector.extract_strided_slice %314 {offsets = [8, 0], sizes = [2, 128], strides = [1, 1]} : vector<16x256xf32> to vector<2x128xf32>
    %cst_72 = arith.constant dense<0.000000e+00> : vector<2x128xf32>
    %466 = tpu.matmul %449, %315, %cst_72 {dimension_numbers = #tpu.dot_dimension_numbers<[1], [0], [0], [1], [0, 0, 1, 1], [], []>} : vector<2x32xf32>, vector<32x128xf32>, vector<2x128xf32> -> vector<2x128xf32>
    %467 = arith.addf %465, %466 : vector<2x128xf32>
    %468 = vector.extract_strided_slice %314 {offsets = [6, 128], sizes = [2, 128], strides = [1, 1]} : vector<16x256xf32> to vector<2x128xf32>
    %cst_73 = arith.constant dense<0.000000e+00> : vector<2x128xf32>
    %469 = tpu.matmul %464, %316, %cst_73 {dimension_numbers = #tpu.dot_dimension_numbers<[1], [0], [0], [1], [0, 0, 1, 1], [], []>} : vector<2x32xf32>, vector<32x128xf32>, vector<2x128xf32> -> vector<2x128xf32>
    %470 = arith.addf %468, %469 : vector<2x128xf32>
    %471 = arith.negf %467 : vector<2x128xf32>
    %472 = math.exp %471 : vector<2x128xf32>
    %cst_74 = arith.constant 1.000000e+00 : f32
    %473 = vector.broadcast %cst_74 : f32 to vector<2x128xf32>
    %474 = arith.addf %473, %472 : vector<2x128xf32>
    %475 = arith.divf %473, %474 : vector<2x128xf32>
    %476 = math.tanh %467 : vector<2x128xf32>
    %477 = vector.extract_strided_slice %475 {offsets = [0, 0], sizes = [2, 32], strides = [1, 1]} : vector<2x128xf32> to vector<2x32xf32>
    %478 = vector.extract_strided_slice %475 {offsets = [0, 32], sizes = [2, 32], strides = [1, 1]} : vector<2x128xf32> to vector<2x32xf32>
    %479 = vector.extract_strided_slice %475 {offsets = [0, 96], sizes = [2, 32], strides = [1, 1]} : vector<2x128xf32> to vector<2x32xf32>
    %480 = vector.extract_strided_slice %476 {offsets = [0, 64], sizes = [2, 32], strides = [1, 1]} : vector<2x128xf32> to vector<2x32xf32>
    %481 = arith.mulf %478, %447 : vector<2x32xf32>
    %482 = arith.mulf %477, %480 : vector<2x32xf32>
    %483 = arith.addf %481, %482 : vector<2x32xf32>
    %484 = math.tanh %483 : vector<2x32xf32>
    %485 = arith.mulf %479, %484 : vector<2x32xf32>
    %486 = arith.negf %470 : vector<2x128xf32>
    %487 = math.exp %486 : vector<2x128xf32>
    %cst_75 = arith.constant 1.000000e+00 : f32
    %488 = vector.broadcast %cst_75 : f32 to vector<2x128xf32>
    %489 = arith.addf %488, %487 : vector<2x128xf32>
    %490 = arith.divf %488, %489 : vector<2x128xf32>
    %491 = math.tanh %470 : vector<2x128xf32>
    %492 = vector.extract_strided_slice %490 {offsets = [0, 0], sizes = [2, 32], strides = [1, 1]} : vector<2x128xf32> to vector<2x32xf32>
    %493 = vector.extract_strided_slice %490 {offsets = [0, 32], sizes = [2, 32], strides = [1, 1]} : vector<2x128xf32> to vector<2x32xf32>
    %494 = vector.extract_strided_slice %490 {offsets = [0, 96], sizes = [2, 32], strides = [1, 1]} : vector<2x128xf32> to vector<2x32xf32>
    %495 = vector.extract_strided_slice %491 {offsets = [0, 64], sizes = [2, 32], strides = [1, 1]} : vector<2x128xf32> to vector<2x32xf32>
    %496 = arith.mulf %493, %462 : vector<2x32xf32>
    %497 = arith.mulf %492, %495 : vector<2x32xf32>
    %498 = arith.addf %496, %497 : vector<2x32xf32>
    %499 = math.tanh %498 : vector<2x32xf32>
    %500 = arith.mulf %494, %499 : vector<2x32xf32>
    %501 = vector.extract_strided_slice %314 {offsets = [10, 0], sizes = [2, 128], strides = [1, 1]} : vector<16x256xf32> to vector<2x128xf32>
    %cst_76 = arith.constant dense<0.000000e+00> : vector<2x128xf32>
    %502 = tpu.matmul %485, %315, %cst_76 {dimension_numbers = #tpu.dot_dimension_numbers<[1], [0], [0], [1], [0, 0, 1, 1], [], []>} : vector<2x32xf32>, vector<32x128xf32>, vector<2x128xf32> -> vector<2x128xf32>
    %503 = arith.addf %501, %502 : vector<2x128xf32>
    %504 = vector.extract_strided_slice %314 {offsets = [4, 128], sizes = [2, 128], strides = [1, 1]} : vector<16x256xf32> to vector<2x128xf32>
    %cst_77 = arith.constant dense<0.000000e+00> : vector<2x128xf32>
    %505 = tpu.matmul %500, %316, %cst_77 {dimension_numbers = #tpu.dot_dimension_numbers<[1], [0], [0], [1], [0, 0, 1, 1], [], []>} : vector<2x32xf32>, vector<32x128xf32>, vector<2x128xf32> -> vector<2x128xf32>
    %506 = arith.addf %504, %505 : vector<2x128xf32>
    %507 = arith.negf %503 : vector<2x128xf32>
    %508 = math.exp %507 : vector<2x128xf32>
    %cst_78 = arith.constant 1.000000e+00 : f32
    %509 = vector.broadcast %cst_78 : f32 to vector<2x128xf32>
    %510 = arith.addf %509, %508 : vector<2x128xf32>
    %511 = arith.divf %509, %510 : vector<2x128xf32>
    %512 = math.tanh %503 : vector<2x128xf32>
    %513 = vector.extract_strided_slice %511 {offsets = [0, 0], sizes = [2, 32], strides = [1, 1]} : vector<2x128xf32> to vector<2x32xf32>
    %514 = vector.extract_strided_slice %511 {offsets = [0, 32], sizes = [2, 32], strides = [1, 1]} : vector<2x128xf32> to vector<2x32xf32>
    %515 = vector.extract_strided_slice %511 {offsets = [0, 96], sizes = [2, 32], strides = [1, 1]} : vector<2x128xf32> to vector<2x32xf32>
    %516 = vector.extract_strided_slice %512 {offsets = [0, 64], sizes = [2, 32], strides = [1, 1]} : vector<2x128xf32> to vector<2x32xf32>
    %517 = arith.mulf %514, %483 : vector<2x32xf32>
    %518 = arith.mulf %513, %516 : vector<2x32xf32>
    %519 = arith.addf %517, %518 : vector<2x32xf32>
    %520 = math.tanh %519 : vector<2x32xf32>
    %521 = arith.mulf %515, %520 : vector<2x32xf32>
    %522 = arith.negf %506 : vector<2x128xf32>
    %523 = math.exp %522 : vector<2x128xf32>
    %cst_79 = arith.constant 1.000000e+00 : f32
    %524 = vector.broadcast %cst_79 : f32 to vector<2x128xf32>
    %525 = arith.addf %524, %523 : vector<2x128xf32>
    %526 = arith.divf %524, %525 : vector<2x128xf32>
    %527 = math.tanh %506 : vector<2x128xf32>
    %528 = vector.extract_strided_slice %526 {offsets = [0, 0], sizes = [2, 32], strides = [1, 1]} : vector<2x128xf32> to vector<2x32xf32>
    %529 = vector.extract_strided_slice %526 {offsets = [0, 32], sizes = [2, 32], strides = [1, 1]} : vector<2x128xf32> to vector<2x32xf32>
    %530 = vector.extract_strided_slice %526 {offsets = [0, 96], sizes = [2, 32], strides = [1, 1]} : vector<2x128xf32> to vector<2x32xf32>
    %531 = vector.extract_strided_slice %527 {offsets = [0, 64], sizes = [2, 32], strides = [1, 1]} : vector<2x128xf32> to vector<2x32xf32>
    %532 = arith.mulf %529, %498 : vector<2x32xf32>
    %533 = arith.mulf %528, %531 : vector<2x32xf32>
    %534 = arith.addf %532, %533 : vector<2x32xf32>
    %535 = math.tanh %534 : vector<2x32xf32>
    %536 = arith.mulf %530, %535 : vector<2x32xf32>
    %537 = vector.extract_strided_slice %314 {offsets = [12, 0], sizes = [2, 128], strides = [1, 1]} : vector<16x256xf32> to vector<2x128xf32>
    %cst_80 = arith.constant dense<0.000000e+00> : vector<2x128xf32>
    %538 = tpu.matmul %521, %315, %cst_80 {dimension_numbers = #tpu.dot_dimension_numbers<[1], [0], [0], [1], [0, 0, 1, 1], [], []>} : vector<2x32xf32>, vector<32x128xf32>, vector<2x128xf32> -> vector<2x128xf32>
    %539 = arith.addf %537, %538 : vector<2x128xf32>
    %540 = vector.extract_strided_slice %314 {offsets = [2, 128], sizes = [2, 128], strides = [1, 1]} : vector<16x256xf32> to vector<2x128xf32>
    %cst_81 = arith.constant dense<0.000000e+00> : vector<2x128xf32>
    %541 = tpu.matmul %536, %316, %cst_81 {dimension_numbers = #tpu.dot_dimension_numbers<[1], [0], [0], [1], [0, 0, 1, 1], [], []>} : vector<2x32xf32>, vector<32x128xf32>, vector<2x128xf32> -> vector<2x128xf32>
    %542 = arith.addf %540, %541 : vector<2x128xf32>
    %543 = arith.negf %539 : vector<2x128xf32>
    %544 = math.exp %543 : vector<2x128xf32>
    %cst_82 = arith.constant 1.000000e+00 : f32
    %545 = vector.broadcast %cst_82 : f32 to vector<2x128xf32>
    %546 = arith.addf %545, %544 : vector<2x128xf32>
    %547 = arith.divf %545, %546 : vector<2x128xf32>
    %548 = math.tanh %539 : vector<2x128xf32>
    %549 = vector.extract_strided_slice %547 {offsets = [0, 0], sizes = [2, 32], strides = [1, 1]} : vector<2x128xf32> to vector<2x32xf32>
    %550 = vector.extract_strided_slice %547 {offsets = [0, 32], sizes = [2, 32], strides = [1, 1]} : vector<2x128xf32> to vector<2x32xf32>
    %551 = vector.extract_strided_slice %547 {offsets = [0, 96], sizes = [2, 32], strides = [1, 1]} : vector<2x128xf32> to vector<2x32xf32>
    %552 = vector.extract_strided_slice %548 {offsets = [0, 64], sizes = [2, 32], strides = [1, 1]} : vector<2x128xf32> to vector<2x32xf32>
    %553 = arith.mulf %550, %519 : vector<2x32xf32>
    %554 = arith.mulf %549, %552 : vector<2x32xf32>
    %555 = arith.addf %553, %554 : vector<2x32xf32>
    %556 = math.tanh %555 : vector<2x32xf32>
    %557 = arith.mulf %551, %556 : vector<2x32xf32>
    %558 = arith.negf %542 : vector<2x128xf32>
    %559 = math.exp %558 : vector<2x128xf32>
    %cst_83 = arith.constant 1.000000e+00 : f32
    %560 = vector.broadcast %cst_83 : f32 to vector<2x128xf32>
    %561 = arith.addf %560, %559 : vector<2x128xf32>
    %562 = arith.divf %560, %561 : vector<2x128xf32>
    %563 = math.tanh %542 : vector<2x128xf32>
    %564 = vector.extract_strided_slice %562 {offsets = [0, 0], sizes = [2, 32], strides = [1, 1]} : vector<2x128xf32> to vector<2x32xf32>
    %565 = vector.extract_strided_slice %562 {offsets = [0, 32], sizes = [2, 32], strides = [1, 1]} : vector<2x128xf32> to vector<2x32xf32>
    %566 = vector.extract_strided_slice %562 {offsets = [0, 96], sizes = [2, 32], strides = [1, 1]} : vector<2x128xf32> to vector<2x32xf32>
    %567 = vector.extract_strided_slice %563 {offsets = [0, 64], sizes = [2, 32], strides = [1, 1]} : vector<2x128xf32> to vector<2x32xf32>
    %568 = arith.mulf %565, %534 : vector<2x32xf32>
    %569 = arith.mulf %564, %567 : vector<2x32xf32>
    %570 = arith.addf %568, %569 : vector<2x32xf32>
    %571 = math.tanh %570 : vector<2x32xf32>
    %572 = arith.mulf %566, %571 : vector<2x32xf32>
    %573 = vector.extract_strided_slice %314 {offsets = [14, 0], sizes = [2, 128], strides = [1, 1]} : vector<16x256xf32> to vector<2x128xf32>
    %cst_84 = arith.constant dense<0.000000e+00> : vector<2x128xf32>
    %574 = tpu.matmul %557, %315, %cst_84 {dimension_numbers = #tpu.dot_dimension_numbers<[1], [0], [0], [1], [0, 0, 1, 1], [], []>} : vector<2x32xf32>, vector<32x128xf32>, vector<2x128xf32> -> vector<2x128xf32>
    %575 = arith.addf %573, %574 : vector<2x128xf32>
    %576 = vector.extract_strided_slice %314 {offsets = [0, 128], sizes = [2, 128], strides = [1, 1]} : vector<16x256xf32> to vector<2x128xf32>
    %cst_85 = arith.constant dense<0.000000e+00> : vector<2x128xf32>
    %577 = tpu.matmul %572, %316, %cst_85 {dimension_numbers = #tpu.dot_dimension_numbers<[1], [0], [0], [1], [0, 0, 1, 1], [], []>} : vector<2x32xf32>, vector<32x128xf32>, vector<2x128xf32> -> vector<2x128xf32>
    %578 = arith.addf %576, %577 : vector<2x128xf32>
    %579 = arith.negf %575 : vector<2x128xf32>
    %580 = math.exp %579 : vector<2x128xf32>
    %cst_86 = arith.constant 1.000000e+00 : f32
    %581 = vector.broadcast %cst_86 : f32 to vector<2x128xf32>
    %582 = arith.addf %581, %580 : vector<2x128xf32>
    %583 = arith.divf %581, %582 : vector<2x128xf32>
    %584 = math.tanh %575 : vector<2x128xf32>
    %585 = vector.extract_strided_slice %583 {offsets = [0, 0], sizes = [2, 32], strides = [1, 1]} : vector<2x128xf32> to vector<2x32xf32>
    %586 = vector.extract_strided_slice %583 {offsets = [0, 32], sizes = [2, 32], strides = [1, 1]} : vector<2x128xf32> to vector<2x32xf32>
    %587 = vector.extract_strided_slice %583 {offsets = [0, 96], sizes = [2, 32], strides = [1, 1]} : vector<2x128xf32> to vector<2x32xf32>
    %588 = vector.extract_strided_slice %584 {offsets = [0, 64], sizes = [2, 32], strides = [1, 1]} : vector<2x128xf32> to vector<2x32xf32>
    %589 = arith.mulf %586, %555 : vector<2x32xf32>
    %590 = arith.mulf %585, %588 : vector<2x32xf32>
    %591 = arith.addf %589, %590 : vector<2x32xf32>
    %592 = math.tanh %591 : vector<2x32xf32>
    %593 = arith.mulf %587, %592 : vector<2x32xf32>
    %594 = arith.negf %578 : vector<2x128xf32>
    %595 = math.exp %594 : vector<2x128xf32>
    %cst_87 = arith.constant 1.000000e+00 : f32
    %596 = vector.broadcast %cst_87 : f32 to vector<2x128xf32>
    %597 = arith.addf %596, %595 : vector<2x128xf32>
    %598 = arith.divf %596, %597 : vector<2x128xf32>
    %599 = math.tanh %578 : vector<2x128xf32>
    %600 = vector.extract_strided_slice %598 {offsets = [0, 0], sizes = [2, 32], strides = [1, 1]} : vector<2x128xf32> to vector<2x32xf32>
    %601 = vector.extract_strided_slice %598 {offsets = [0, 32], sizes = [2, 32], strides = [1, 1]} : vector<2x128xf32> to vector<2x32xf32>
    %602 = vector.extract_strided_slice %598 {offsets = [0, 96], sizes = [2, 32], strides = [1, 1]} : vector<2x128xf32> to vector<2x32xf32>
    %603 = vector.extract_strided_slice %599 {offsets = [0, 64], sizes = [2, 32], strides = [1, 1]} : vector<2x128xf32> to vector<2x32xf32>
    %604 = arith.mulf %601, %570 : vector<2x32xf32>
    %605 = arith.mulf %600, %603 : vector<2x32xf32>
    %606 = arith.addf %604, %605 : vector<2x32xf32>
    %607 = math.tanh %606 : vector<2x32xf32>
    %608 = arith.mulf %602, %607 : vector<2x32xf32>
    %609 = tpu.concatenate %341, %377, %413, %449, %485, %521, %557, %593 in 0 : vector<2x32xf32>, vector<2x32xf32>, vector<2x32xf32>, vector<2x32xf32>, vector<2x32xf32>, vector<2x32xf32>, vector<2x32xf32>, vector<2x32xf32> -> vector<16x32xf32>
    %610 = tpu.concatenate %608, %572, %536, %500, %464, %428, %392, %356 in 0 : vector<2x32xf32>, vector<2x32xf32>, vector<2x32xf32>, vector<2x32xf32>, vector<2x32xf32>, vector<2x32xf32>, vector<2x32xf32>, vector<2x32xf32> -> vector<16x32xf32>
    %c248 = arith.constant 248 : index
    %c0_88 = arith.constant 0 : index
    %611 = vector.load %arg1[%c248, %c0_88] : memref<320x256xf32, #tpu.memory_space<vmem>>, vector<32x128xf32>
    %cst_89 = arith.constant dense<0.000000e+00> : vector<16x128xf32>
    %612 = tpu.matmul %609, %611, %cst_89 {dimension_numbers = #tpu.dot_dimension_numbers<[1], [0], [0], [1], [0, 0, 1, 1], [], []>} : vector<16x32xf32>, vector<32x128xf32>, vector<16x128xf32> -> vector<16x128xf32>
    %c280 = arith.constant 280 : index
    %c0_90 = arith.constant 0 : index
    %613 = vector.load %arg1[%c280, %c0_90] : memref<320x256xf32, #tpu.memory_space<vmem>>, vector<32x128xf32>
    %cst_91 = arith.constant dense<0.000000e+00> : vector<16x128xf32>
    %614 = tpu.matmul %610, %613, %cst_91 {dimension_numbers = #tpu.dot_dimension_numbers<[1], [0], [0], [1], [0, 0, 1, 1], [], []>} : vector<16x32xf32>, vector<32x128xf32>, vector<16x128xf32> -> vector<16x128xf32>
    %615 = arith.addf %612, %614 : vector<16x128xf32>
    %c312 = arith.constant 312 : index
    %c0_92 = arith.constant 0 : index
    %616 = vector.load %arg1[%c312, %c0_92] : memref<320x256xf32, #tpu.memory_space<vmem>>, vector<1x128xf32>
    %617 = vector.broadcast %616 : vector<1x128xf32> to vector<16x128xf32>
    %618 = arith.addf %615, %617 : vector<16x128xf32>
    %c0_93 = arith.constant 0 : index
    %c0_94 = arith.constant 0 : index
    %619 = vector.load %arg2[%c0_93, %c0_94] : memref<16x128xf32, #tpu.memory_space<vmem>>, vector<16x128xf32>
    tpu.vector_store %arg2[%c0_93, %c0_94], %618 {strides = array<i32>} : memref<16x128xf32, #tpu.memory_space<vmem>>, vector<16x128xf32>,
    return
  }
}

</mosaic_0001>

<llo_original>
// kernel: bi_rnn_forward.1
$region0: #{bi_rnn_forward.1}
  #allocation0 [shape = 'u32[]', space=smem, size = 0x4, offset = 0x4, fixed_abs, tag = 'smem constant byte address 0x4 - core index']
  #allocation1 [shape = 'u32[144,128]{1,0:T(1,128)}', space=vmem, size = 0x12000, scoped, tag = 'internal scratch']
  %s0 = inlined_call_operand.vmem [shape: f32[16,16], index: 0, kind: input, shape index: {}]
  %s1 = inlined_call_operand.vmem [shape: f32[320,256], index: 1, kind: input, shape index: {}]
  %s2 = inlined_call_operand.vmem [shape: f32[16,128], index: 2, kind: output, shape index: {}]
  %s3 = sld [smem:[#allocation0]]
  $region18: #{bi_rnn_forward.1} parent=0
    _
  %s5 = ssub.s32 1, %s3
  %s6 = scalar_select 0, %s5, %s3
  // Predicated region
  $region2: #{bi_rnn_forward.1} parent=0 // pred_check
    _
  $region3: #{bi_rnn_forward.1} parent=0 // pred_check_branch
    %8 = sbr.rel (0) target = $region5
  $region4: #{bi_rnn_forward.1} parent=0 // pred_region
    _
  $region5: #{bi_rnn_forward.1} parent=0 // pred_fallthru
    _
  // Predicated region
  $region6: #{bi_rnn_forward.1} parent=0 // pred_check
    _
  $region7: #{bi_rnn_forward.1} parent=0 // pred_check_branch
    %10 = sbr.rel (0) target = $region9
  $region8: #{bi_rnn_forward.1} parent=0 // pred_region
    _
  $region9: #{bi_rnn_forward.1} parent=0 // pred_fallthru
    _
  %v11 = vld [vmem:[%s0] sm:$0xff]
  %v12 = vld [vmem:[%s0 + $0x8] sm:$0xff]
  %v13 = vld [vmem:[%s1] sm:$0xff]
  %v14 = vld [vmem:[%s1 + $0x10] sm:$0xff]
  %v15 = vld [vmem:[%s1 + $0x20] ss:$0 sm:$0xff]
  %vm16 = vcmask 130048
  %v18 = vsel %vm16, %v11, 0
  %v21 = vsel %vm16, %v12, 0
  %23 = vmatprep.subr.mxu0 0.0
  %24 = vmatpush1.msra.mxu0 %v13
  %25 = vmatprep.subr.mxu0 0.0
  %26 = vmatpush1.msra.mxu0 %v14
  %27 = vmatprep.subr.mxu0 0.0
  %28 = vmatpush1.msra.mxu0 0.0
  %29 = vmatprep.subr.mxu0 0.0
  %30 = vmatpush1.msra.mxu0 0.0
  %31 = vmatprep.subr.mxu0 0.0
  %32 = vmatpush1.msra.mxu0 0.0
  %33 = vmatprep.subr.mxu0 0.0
  %34 = vmatpush1.msra.mxu0 0.0
  %35 = vmatprep.subr.mxu0 0.0
  %36 = vmatpush1.msra.mxu0 0.0
  %37 = vmatprep.subr.mxu0 0.0
  %38 = vmatpush1.msra.mxu0 0.0
  %39 = vmatprep.subr.mxu0 0.0
  %40 = vmatpush1.msra.mxu0 0.0
  %41 = vmatprep.subr.mxu0 0.0
  %42 = vmatpush1.msra.mxu0 0.0
  %43 = vmatprep.subr.mxu0 0.0
  %44 = vmatpush1.msra.mxu0 0.0
  %45 = vmatprep.subr.mxu0 0.0
  %46 = vmatpush1.msra.mxu0 0.0
  %47 = vmatprep.subr.mxu0 0.0
  %48 = vmatpush1.msra.mxu0 0.0
  %49 = vmatprep.subr.mxu0 0.0
  %50 = vmatpush1.msra.mxu0 0.0
  %51 = vmatprep.subr.mxu0 0.0
  %52 = vmatpush1.msra.mxu0 0.0
  %53 = vmatprep.subr.mxu0 0.0
  %54 = vmatpush1.msra.mxu0 0.0
  %55 = vmatprep.subr.mxu0 0.0
  %56 = vmatpush1.msra.mxu0 0.0
  %57 = vmatprep.subr.mxu0 0.0
  %58 = vmatpush1.msra.mxu0 0.0
  %59 = vmatprep.subr.mxu0 0.0
  %60 = vmatpush1.msra.mxu0 0.0
  %61 = vmatprep.subr.mxu0 0.0
  %62 = vmatpush1.msra.mxu0 0.0
  %63 = vmatprep.subr.mxu0 0.0
  %64 = vmatpush1.msra.mxu0 0.0
  %65 = vmatprep.subr.mxu0 0.0
  %66 = vmatpush1.msra.mxu0 0.0
  %67 = vmatprep.subr.mxu0 0.0
  %68 = vmatpush1.msra.mxu0 0.0
  %69 = vmatprep.subr.mxu0 0.0
  %70 = vmatpush1.msra.mxu0 0.0
  %71 = vmatprep.subr.mxu0 0.0
  %72 = vmatpush1.msra.mxu0 0.0
  %73 = vmatprep.subr.mxu0 0.0
  %74 = vmatpush1.msra.mxu0 0.0
  %75 = vmatprep.subr.mxu0 0.0
  %76 = vmatpush1.msra.mxu0 0.0
  %77 = vmatprep.subr.mxu0 0.0
  %78 = vmatpush1.msra.mxu0 0.0
  %79 = vmatprep.subr.mxu0 0.0
  %80 = vmatpush1.msra.mxu0 0.0
  %81 = vmatprep.subr.mxu0 0.0
  %82 = vmatpush1.msra.mxu0 0.0
  %83 = vmatprep.subr.mxu0 0.0
  %84 = vmatpush1.msra.mxu0 0.0
  %85 = vmatprep.subr.mxu0 0.0
  %86 = vmatpush1.msra.mxu0 0.0
  %87 = vmatprep.mubr.f32.mxu0 0.0
  %88 = vmatmul.mubr.f32.gmra.mrb[0].mxu0 %v18
  %v89 = vpop.f32.mrb[0].mxu0
  %v90 = vadd.f32 %v15, %v89
  %v91 = vpop.f32.mrb[0].mxu0
  %92 = vmatprep.mubr.f32.mxu0 0.0
  %93 = vmatmul.mubr.f32.gmra.mrb[0].mxu0 %v21
  %v94 = vpop.f32.mrb[0].mxu0
  %v95 = vadd.f32 %v15, %v94
  %v96 = vpop.f32.mrb[0].mxu0
  %97 = vdwg.mxu0
  %v98 = vld [vmem:[%s1 + $0x30] sm:$0xff]
  %v99 = vld [vmem:[%s1 + $0x38] sm:$0xff]
  %v100 = vld [vmem:[%s1 + $0x40] sm:$0xff]
  %v101 = vld [vmem:[%s1 + $0x48] sm:$0xff]
  %s102 = scalar_lea.vmem %s1, 80
  %v103 = vld [vmem:[%s102] ss:$8 sm:$0x3]
  %v105 = vlaneseq
  %v106 = vshrl.u32 %v105, 7
  %v107 = vsub.s32 0, %v106
  %v108 = vrot.slane %v103, %v107
  %v109 = vlaneseq
  %v110 = vshrl.u32 %v109, 7
  %v111 = vsub.s32 1, %v110
  %v112 = vrot.slane %v103, %v111
  %v116 = vsel %vm16, %v90, 0
  %v119 = vsel %vm16, %v95, 0
  %121 = vmatprep.subr.mxu0 %v99
  %122 = vmatpush1.msra.mxu0 %v98
  %123 = vmatprep.subr.mxu0 %v101
  %124 = vmatpush1.msra.mxu0 %v100
  %125 = vmatprep.subr.mxu0 0.0
  %126 = vmatpush1.msra.mxu0 0.0
  %127 = vmatprep.subr.mxu0 0.0
  %128 = vmatpush1.msra.mxu0 0.0
  %129 = vmatprep.subr.mxu0 0.0
  %130 = vmatpush1.msra.mxu0 0.0
  %131 = vmatprep.subr.mxu0 0.0
  %132 = vmatpush1.msra.mxu0 0.0
  %133 = vmatprep.subr.mxu0 0.0
  %134 = vmatpush1.msra.mxu0 0.0
  %135 = vmatprep.subr.mxu0 0.0
  %136 = vmatpush1.msra.mxu0 0.0
  %137 = vmatprep.subr.mxu0 0.0
  %138 = vmatpush1.msra.mxu0 0.0
  %139 = vmatprep.subr.mxu0 0.0
  %140 = vmatpush1.msra.mxu0 0.0
  %141 = vmatprep.subr.mxu0 0.0
  %142 = vmatpush1.msra.mxu0 0.0
  %143 = vmatprep.subr.mxu0 0.0
  %144 = vmatpush1.msra.mxu0 0.0
  %145 = vmatprep.subr.mxu0 0.0
  %146 = vmatpush1.msra.mxu0 0.0
  %147 = vmatprep.subr.mxu0 0.0
  %148 = vmatpush1.msra.mxu0 0.0
  %149 = vmatprep.subr.mxu0 0.0
  %150 = vmatpush1.msra.mxu0 0.0
  %151 = vmatprep.subr.mxu0 0.0
  %152 = vmatpush1.msra.mxu0 0.0
  %153 = vmatprep.subr.mxu0 0.0
  %154 = vmatpush1.msra.mxu0 0.0
  %155 = vmatprep.subr.mxu0 0.0
  %156 = vmatpush1.msra.mxu0 0.0
  %157 = vmatprep.subr.mxu0 0.0
  %158 = vmatpush1.msra.mxu0 0.0
  %159 = vmatprep.subr.mxu0 0.0
  %160 = vmatpush1.msra.mxu0 0.0
  %161 = vmatprep.subr.mxu0 0.0
  %162 = vmatpush1.msra.mxu0 0.0
  %163 = vmatprep.subr.mxu0 0.0
  %164 = vmatpush1.msra.mxu0 0.0
  %165 = vmatprep.subr.mxu0 0.0
  %166 = vmatpush1.msra.mxu0 0.0
  %167 = vmatprep.subr.mxu0 0.0
  %168 = vmatpush1.msra.mxu0 0.0
  %169 = vmatprep.subr.mxu0 0.0
  %170 = vmatpush1.msra.mxu0 0.0
  %171 = vmatprep.subr.mxu0 0.0
  %172 = vmatpush1.msra.mxu0 0.0
  %173 = vmatprep.subr.mxu0 0.0
  %174 = vmatpush1.msra.mxu0 0.0
  %175 = vmatprep.subr.mxu0 0.0
  %176 = vmatpush1.msra.mxu0 0.0
  %177 = vmatprep.subr.mxu0 0.0
  %178 = vmatpush1.msra.mxu0 0.0
  %179 = vmatprep.subr.mxu0 0.0
  %180 = vmatpush1.msra.mxu0 0.0
  %181 = vmatprep.subr.mxu0 0.0
  %182 = vmatpush1.msra.mxu0 0.0
  %183 = vmatprep.subr.mxu0 0.0
  %184 = vmatpush1.msra.mxu0 0.0
  %185 = vmatprep.mubr.f32.mxu0 0.0
  %186 = vmatmul.mubr.f32.gmra.mrb[0].mxu0 %v116
  %v187 = vpop.f32.mrb[0].mxu0
  %v188 = vadd.f32 %v108, %v187
  %v189 = vpop.f32.mrb[0].mxu0
  %v190 = vadd.f32 %v112, %v189
  %191 = vmatprep.mubr.f32.mxu0 0.0
  %192 = vmatmul.mubr.f32.gmra.mrb[0].mxu0 %v119
  %v193 = vpop.f32.mrb[0].mxu0
  %v194 = vadd.f32 %v108, %v193
  %v195 = vpop.f32.mrb[0].mxu0
  %v196 = vadd.f32 %v112, %v195
  %197 = vdwg.mxu0
  %v198 = vld [vmem:[%s1 + $0x60] sm:$0xff]
  %v199 = vld [vmem:[%s1 + $0x70] sm:$0xff]
  %v200 = vld [vmem:[%s1 + $0x80] sm:$0xff]
  %v201 = vld [vmem:[%s1 + $0x90] sm:$0xff]
  %v202 = vld [vmem:[%s1 + $0xa0] sm:$0xff]
  %v203 = vld [vmem:[%s1 + $0xb0] sm:$0xff]
  %v204 = vld [vmem:[%s1 + $0xc0] sm:$0xff]
  %v205 = vld [vmem:[%s1 + $0xd0] sm:$0xff]
  %vm206 = vcmask 261120
  %v208 = vsel %vm206, 0.0, 0
  %210 = vmatprep.subr.mxu0 0.0
  %211 = vmatpush1.msra.mxu0 %v198
  %212 = vmatprep.subr.mxu0 0.0
  %213 = vmatpush1.msra.mxu0 %v199
  %214 = vmatprep.subr.mxu0 0.0
  %215 = vmatpush1.msra.mxu0 %v200
  %216 = vmatprep.subr.mxu0 0.0
  %217 = vmatpush1.msra.mxu0 %v201
  %218 = vmatprep.subr.mxu0 0.0
  %219 = vmatpush1.msra.mxu0 0.0
  %220 = vmatprep.subr.mxu0 0.0
  %221 = vmatpush1.msra.mxu0 0.0
  %222 = vmatprep.subr.mxu0 0.0
  %223 = vmatpush1.msra.mxu0 0.0
  %224 = vmatprep.subr.mxu0 0.0
  %225 = vmatpush1.msra.mxu0 0.0
  %226 = vmatprep.subr.mxu0 0.0
  %227 = vmatpush1.msra.mxu0 0.0
  %228 = vmatprep.subr.mxu0 0.0
  %229 = vmatpush1.msra.mxu0 0.0
  %230 = vmatprep.subr.mxu0 0.0
  %231 = vmatpush1.msra.mxu0 0.0
  %232 = vmatprep.subr.mxu0 0.0
  %233 = vmatpush1.msra.mxu0 0.0
  %234 = vmatprep.subr.mxu0 0.0
  %235 = vmatpush1.msra.mxu0 0.0
  %236 = vmatprep.subr.mxu0 0.0
  %237 = vmatpush1.msra.mxu0 0.0
  %238 = vmatprep.subr.mxu0 0.0
  %239 = vmatpush1.msra.mxu0 0.0
  %240 = vmatprep.subr.mxu0 0.0
  %241 = vmatpush1.msra.mxu0 0.0
  %242 = vmatprep.subr.mxu0 0.0
  %243 = vmatpush1.msra.mxu0 0.0
  %244 = vmatprep.subr.mxu0 0.0
  %245 = vmatpush1.msra.mxu0 0.0
  %246 = vmatprep.subr.mxu0 0.0
  %247 = vmatpush1.msra.mxu0 0.0
  %248 = vmatprep.subr.mxu0 0.0
  %249 = vmatpush1.msra.mxu0 0.0
  %250 = vmatprep.subr.mxu0 0.0
  %251 = vmatpush1.msra.mxu0 0.0
  %252 = vmatprep.subr.mxu0 0.0
  %253 = vmatpush1.msra.mxu0 0.0
  %254 = vmatprep.subr.mxu0 0.0
  %255 = vmatpush1.msra.mxu0 0.0
  %256 = vmatprep.subr.mxu0 0.0
  %257 = vmatpush1.msra.mxu0 0.0
  %258 = vmatprep.subr.mxu0 0.0
  %259 = vmatpush1.msra.mxu0 0.0
  %260 = vmatprep.subr.mxu0 0.0
  %261 = vmatpush1.msra.mxu0 0.0
  %262 = vmatprep.subr.mxu0 0.0
  %263 = vmatpush1.msra.mxu0 0.0
  %264 = vmatprep.subr.mxu0 0.0
  %265 = vmatpush1.msra.mxu0 0.0
  %266 = vmatprep.subr.mxu0 0.0
  %267 = vmatpush1.msra.mxu0 0.0
  %268 = vmatprep.subr.mxu0 0.0
  %269 = vmatpush1.msra.mxu0 0.0
  %270 = vmatprep.subr.mxu0 0.0
  %271 = vmatpush1.msra.mxu0 0.0
  %272 = vmatprep.subr.mxu0 0.0
  %273 = vmatpush1.msra.mxu0 0.0
  %274 = vmatprep.mubr.f32.mxu0 0.0
  %275 = vmatmul.mubr.f32.gmra.mrb[0].mxu0 %v208
  %v276 = vpop.f32.mrb[0].mxu0
  %v277 = vadd.f32 0.0, %v276
  %v278 = vpop.f32.mrb[0].mxu0
  %279 = vdwg.mxu0
  %v280 = vadd.f32 %v188, %v277
  %281 = vmatprep.subr.mxu0 0.0
  %282 = vmatpush1.msra.mxu0 %v202
  %283 = vmatprep.subr.mxu0 0.0
  %284 = vmatpush1.msra.mxu0 %v203
  %285 = vmatprep.subr.mxu0 0.0
  %286 = vmatpush1.msra.mxu0 %v204
  %287 = vmatprep.subr.mxu0 0.0
  %288 = vmatpush1.msra.mxu0 %v205
  %289 = vmatprep.subr.mxu0 0.0
  %290 = vmatpush1.msra.mxu0 0.0
  %291 = vmatprep.subr.mxu0 0.0
  %292 = vmatpush1.msra.mxu0 0.0
  %293 = vmatprep.subr.mxu0 0.0
  %294 = vmatpush1.msra.mxu0 0.0
  %295 = vmatprep.subr.mxu0 0.0
  %296 = vmatpush1.msra.mxu0 0.0
  %297 = vmatprep.subr.mxu0 0.0
  %298 = vmatpush1.msra.mxu0 0.0
  %299 = vmatprep.subr.mxu0 0.0
  %300 = vmatpush1.msra.mxu0 0.0
  %301 = vmatprep.subr.mxu0 0.0
  %302 = vmatpush1.msra.mxu0 0.0
  %303 = vmatprep.subr.mxu0 0.0
  %304 = vmatpush1.msra.mxu0 0.0
  %305 = vmatprep.subr.mxu0 0.0
  %306 = vmatpush1.msra.mxu0 0.0
  %307 = vmatprep.subr.mxu0 0.0
  %308 = vmatpush1.msra.mxu0 0.0
  %309 = vmatprep.subr.mxu0 0.0
  %310 = vmatpush1.msra.mxu0 0.0
  %311 = vmatprep.subr.mxu0 0.0
  %312 = vmatpush1.msra.mxu0 0.0
  %313 = vmatprep.subr.mxu0 0.0
  %314 = vmatpush1.msra.mxu0 0.0
  %315 = vmatprep.subr.mxu0 0.0
  %316 = vmatpush1.msra.mxu0 0.0
  %317 = vmatprep.subr.mxu0 0.0
  %318 = vmatpush1.msra.mxu0 0.0
  %319 = vmatprep.subr.mxu0 0.0
  %320 = vmatpush1.msra.mxu0 0.0
  %321 = vmatprep.subr.mxu0 0.0
  %322 = vmatpush1.msra.mxu0 0.0
  %323 = vmatprep.subr.mxu0 0.0
  %324 = vmatpush1.msra.mxu0 0.0
  %325 = vmatprep.subr.mxu0 0.0
  %326 = vmatpush1.msra.mxu0 0.0
  %327 = vmatprep.subr.mxu0 0.0
  %328 = vmatpush1.msra.mxu0 0.0
  %329 = vmatprep.subr.mxu0 0.0
  %330 = vmatpush1.msra.mxu0 0.0
  %331 = vmatprep.subr.mxu0 0.0
  %332 = vmatpush1.msra.mxu0 0.0
  %333 = vmatprep.subr.mxu0 0.0
  %334 = vmatpush1.msra.mxu0 0.0
  %335 = vmatprep.subr.mxu0 0.0
  %336 = vmatpush1.msra.mxu0 0.0
  %337 = vmatprep.subr.mxu0 0.0
  %338 = vmatpush1.msra.mxu0 0.0
  %339 = vmatprep.subr.mxu0 0.0
  %340 = vmatpush1.msra.mxu0 0.0
  %341 = vmatprep.subr.mxu0 0.0
  %342 = vmatpush1.msra.mxu0 0.0
  %343 = vmatprep.subr.mxu0 0.0
  %344 = vmatpush1.msra.mxu0 0.0
  %345 = vmatprep.mubr.f32.mxu0 0.0
  %346 = vmatmul.mubr.f32.gmra.mrb[0].mxu0 %v208
  %v347 = vpop.f32.mrb[0].mxu0
  %v348 = vadd.f32 0.0, %v347
  %v349 = vpop.f32.mrb[0].mxu0
  %350 = vdwg.mxu0
  %v352 = vrot.slane %v348, 2
  %v354 = vadd.f32 %v196, %v352
  %v355 = vxor.u32 %v280, 2147483648
  %v356 = vmul.f32 %v355, 1.442695
  %v357 = vpow.pop %v356
  %v358 = vadd.f32 %v357, 1.0
  %v359 = vrcp.pop %v358
  %v360 = vmul.f32 1.0, %v359
  %v361 = vtanh.pop %v280
  %v362 = vmul.f32 %v360, 0.0
  %364 = vrot.lane.b32.xlu0 %v361, 64
  %v365 = vpop.permute.xlu0 %364
  %v367 = vmul.f32 %v360, %v365
  %369 = vrot.lane.b32.xlu0 %v367, 32
  %v370 = vpop.permute.xlu0 %369
  %v372 = vadd.f32 %v362, %v370
  %v373 = vtanh.pop %v372
  %375 = vrot.lane.b32.xlu0 %v373, 64
  %v376 = vpop.permute.xlu0 %375
  %v378 = vmul.f32 %v360, %v376
  %v379 = vxor.u32 %v354, 2147483648
  %v380 = vmul.f32 %v379, 1.442695
  %v381 = vpow.pop %v380
  %v382 = vadd.f32 %v381, 1.0
  %v383 = vrcp.pop %v382
  %v384 = vmul.f32 1.0, %v383
  %v385 = vtanh.pop %v354
  %v386 = vmul.f32 %v384, 0.0
  %388 = vrot.lane.b32.xlu0 %v385, 64
  %v389 = vpop.permute.xlu0 %388
  %v391 = vmul.f32 %v384, %v389
  %393 = vrot.lane.b32.xlu0 %v391, 32
  %v394 = vpop.permute.xlu0 %393
  %v396 = vadd.f32 %v386, %v394
  %v397 = vtanh.pop %v396
  %399 = vrot.lane.b32.xlu0 %v397, 64
  %v400 = vpop.permute.xlu0 %399
  %v402 = vmul.f32 %v384, %v400
  %404 = vrot.lane.b32.xlu0 %v378, 32
  %v405 = vpop.permute.xlu0 %404
  %v406 = vsel %vm206, %v405, 0
  %408 = vmatprep.subr.mxu0 0.0
  %409 = vmatpush1.msra.mxu0 %v198
  %410 = vmatprep.subr.mxu0 0.0
  %411 = vmatpush1.msra.mxu0 %v199
  %412 = vmatprep.subr.mxu0 0.0
  %413 = vmatpush1.msra.mxu0 %v200
  %414 = vmatprep.subr.mxu0 0.0
  %415 = vmatpush1.msra.mxu0 %v201
  %416 = vmatprep.subr.mxu0 0.0
  %417 = vmatpush1.msra.mxu0 0.0
  %418 = vmatprep.subr.mxu0 0.0
  %419 = vmatpush1.msra.mxu0 0.0
  %420 = vmatprep.subr.mxu0 0.0
  %421 = vmatpush1.msra.mxu0 0.0
  %422 = vmatprep.subr.mxu0 0.0
  %423 = vmatpush1.msra.mxu0 0.0
  %424 = vmatprep.subr.mxu0 0.0
  %425 = vmatpush1.msra.mxu0 0.0
  %426 = vmatprep.subr.mxu0 0.0
  %427 = vmatpush1.msra.mxu0 0.0
  %428 = vmatprep.subr.mxu0 0.0
  %429 = vmatpush1.msra.mxu0 0.0
  %430 = vmatprep.subr.mxu0 0.0
  %431 = vmatpush1.msra.mxu0 0.0
  %432 = vmatprep.subr.mxu0 0.0
  %433 = vmatpush1.msra.mxu0 0.0
  %434 = vmatprep.subr.mxu0 0.0
  %435 = vmatpush1.msra.mxu0 0.0
  %436 = vmatprep.subr.mxu0 0.0
  %437 = vmatpush1.msra.mxu0 0.0
  %438 = vmatprep.subr.mxu0 0.0
  %439 = vmatpush1.msra.mxu0 0.0
  %440 = vmatprep.subr.mxu0 0.0
  %441 = vmatpush1.msra.mxu0 0.0
  %442 = vmatprep.subr.mxu0 0.0
  %443 = vmatpush1.msra.mxu0 0.0
  %444 = vmatprep.subr.mxu0 0.0
  %445 = vmatpush1.msra.mxu0 0.0
  %446 = vmatprep.subr.mxu0 0.0
  %447 = vmatpush1.msra.mxu0 0.0
  %448 = vmatprep.subr.mxu0 0.0
  %449 = vmatpush1.msra.mxu0 0.0
  %450 = vmatprep.subr.mxu0 0.0
  %451 = vmatpush1.msra.mxu0 0.0
  %452 = vmatprep.subr.mxu0 0.0
  %453 = vmatpush1.msra.mxu0 0.0
  %454 = vmatprep.subr.mxu0 0.0
  %455 = vmatpush1.msra.mxu0 0.0
  %456 = vmatprep.subr.mxu0 0.0
  %457 = vmatpush1.msra.mxu0 0.0
  %458 = vmatprep.subr.mxu0 0.0
  %459 = vmatpush1.msra.mxu0 0.0
  %460 = vmatprep.subr.mxu0 0.0
  %461 = vmatpush1.msra.mxu0 0.0
  %462 = vmatprep.subr.mxu0 0.0
  %463 = vmatpush1.msra.mxu0 0.0
  %464 = vmatprep.subr.mxu0 0.0
  %465 = vmatpush1.msra.mxu0 0.0
  %466 = vmatprep.subr.mxu0 0.0
  %467 = vmatpush1.msra.mxu0 0.0
  %468 = vmatprep.subr.mxu0 0.0
  %469 = vmatpush1.msra.mxu0 0.0
  %470 = vmatprep.subr.mxu0 0.0
  %471 = vmatpush1.msra.mxu0 0.0
  %472 = vmatprep.mubr.f32.mxu0 0.0
  %473 = vmatmul.mubr.f32.gmra.mrb[0].mxu0 %v406
  %v474 = vpop.f32.mrb[0].mxu0
  %v475 = vadd.f32 0.0, %v474
  %v476 = vpop.f32.mrb[0].mxu0
  %477 = vdwg.mxu0
  %v479 = vrot.slane %v475, 6
  %v481 = vadd.f32 %v188, %v479
  %v483 = vrot.slane %v402, 6
  %484 = vrot.lane.b32.xlu0 %v483, 32
  %v485 = vpop.permute.xlu0 %484
  %v486 = vsel %vm206, %v485, 0
  %488 = vmatprep.subr.mxu0 0.0
  %489 = vmatpush1.msra.mxu0 %v202
  %490 = vmatprep.subr.mxu0 0.0
  %491 = vmatpush1.msra.mxu0 %v203
  %492 = vmatprep.subr.mxu0 0.0
  %493 = vmatpush1.msra.mxu0 %v204
  %494 = vmatprep.subr.mxu0 0.0
  %495 = vmatpush1.msra.mxu0 %v205
  %496 = vmatprep.subr.mxu0 0.0
  %497 = vmatpush1.msra.mxu0 0.0
  %498 = vmatprep.subr.mxu0 0.0
  %499 = vmatpush1.msra.mxu0 0.0
  %500 = vmatprep.subr.mxu0 0.0
  %501 = vmatpush1.msra.mxu0 0.0
  %502 = vmatprep.subr.mxu0 0.0
  %503 = vmatpush1.msra.mxu0 0.0
  %504 = vmatprep.subr.mxu0 0.0
  %505 = vmatpush1.msra.mxu0 0.0
  %506 = vmatprep.subr.mxu0 0.0
  %507 = vmatpush1.msra.mxu0 0.0
  %508 = vmatprep.subr.mxu0 0.0
  %509 = vmatpush1.msra.mxu0 0.0
  %510 = vmatprep.subr.mxu0 0.0
  %511 = vmatpush1.msra.mxu0 0.0
  %512 = vmatprep.subr.mxu0 0.0
  %513 = vmatpush1.msra.mxu0 0.0
  %514 = vmatprep.subr.mxu0 0.0
  %515 = vmatpush1.msra.mxu0 0.0
  %516 = vmatprep.subr.mxu0 0.0
  %517 = vmatpush1.msra.mxu0 0.0
  %518 = vmatprep.subr.mxu0 0.0
  %519 = vmatpush1.msra.mxu0 0.0
  %520 = vmatprep.subr.mxu0 0.0
  %521 = vmatpush1.msra.mxu0 0.0
  %522 = vmatprep.subr.mxu0 0.0
  %523 = vmatpush1.msra.mxu0 0.0
  %524 = vmatprep.subr.mxu0 0.0
  %525 = vmatpush1.msra.mxu0 0.0
  %526 = vmatprep.subr.mxu0 0.0
  %527 = vmatpush1.msra.mxu0 0.0
  %528 = vmatprep.subr.mxu0 0.0
  %529 = vmatpush1.msra.mxu0 0.0
  %530 = vmatprep.subr.mxu0 0.0
  %531 = vmatpush1.msra.mxu0 0.0
  %532 = vmatprep.subr.mxu0 0.0
  %533 = vmatpush1.msra.mxu0 0.0
  %534 = vmatprep.subr.mxu0 0.0
  %535 = vmatpush1.msra.mxu0 0.0
  %536 = vmatprep.subr.mxu0 0.0
  %537 = vmatpush1.msra.mxu0 0.0
  %538 = vmatprep.subr.mxu0 0.0
  %539 = vmatpush1.msra.mxu0 0.0
  %540 = vmatprep.subr.mxu0 0.0
  %541 = vmatpush1.msra.mxu0 0.0
  %542 = vmatprep.subr.mxu0 0.0
  %543 = vmatpush1.msra.mxu0 0.0
  %544 = vmatprep.subr.mxu0 0.0
  %545 = vmatpush1.msra.mxu0 0.0
  %546 = vmatprep.subr.mxu0 0.0
  %547 = vmatpush1.msra.mxu0 0.0
  %548 = vmatprep.subr.mxu0 0.0
  %549 = vmatpush1.msra.mxu0 0.0
  %550 = vmatprep.subr.mxu0 0.0
  %551 = vmatpush1.msra.mxu0 0.0
  %552 = vmatprep.mubr.f32.mxu0 0.0
  %553 = vmatmul.mubr.f32.gmra.mrb[0].mxu0 %v486
  %v554 = vpop.f32.mrb[0].mxu0
  %v555 = vadd.f32 0.0, %v554
  %v556 = vpop.f32.mrb[0].mxu0
  %557 = vdwg.mxu0
  %v559 = vrot.slane %v555, 4
  %v561 = vadd.f32 %v196, %v559
  %v562 = vxor.u32 %v481, 2147483648
  %v563 = vmul.f32 %v562, 1.442695
  %v564 = vpow.pop %v563
  %v565 = vadd.f32 %v564, 1.0
  %v566 = vrcp.pop %v565
  %v567 = vmul.f32 1.0, %v566
  %v568 = vtanh.pop %v481
  %v570 = vrot.slane %v372, 6
  %v572 = vmul.f32 %v567, %v570
  %574 = vrot.lane.b32.xlu0 %v568, 64
  %v575 = vpop.permute.xlu0 %574
  %v577 = vmul.f32 %v567, %v575
  %579 = vrot.lane.b32.xlu0 %v577, 32
  %v580 = vpop.permute.xlu0 %579
  %v582 = vadd.f32 %v572, %v580
  %v583 = vtanh.pop %v582
  %585 = vrot.lane.b32.xlu0 %v583, 64
  %v586 = vpop.permute.xlu0 %585
  %v588 = vmul.f32 %v567, %v586
  %v589 = vxor.u32 %v561, 2147483648
  %v590 = vmul.f32 %v589, 1.442695
  %v591 = vpow.pop %v590
  %v592 = vadd.f32 %v591, 1.0
  %v593 = vrcp.pop %v592
  %v594 = vmul.f32 1.0, %v593
  %v595 = vtanh.pop %v561
  %v597 = vrot.slane %v396, 2
  %v599 = vmul.f32 %v594, %v597
  %601 = vrot.lane.b32.xlu0 %v595, 64
  %v602 = vpop.permute.xlu0 %601
  %v604 = vmul.f32 %v594, %v602
  %606 = vrot.lane.b32.xlu0 %v604, 32
  %v607 = vpop.permute.xlu0 %606
  %v609 = vadd.f32 %v599, %v607
  %v610 = vtanh.pop %v609
  %612 = vrot.lane.b32.xlu0 %v610, 64
  %v613 = vpop.permute.xlu0 %612
  %v615 = vmul.f32 %v594, %v613
  %v617 = vrot.slane %v588, 2
  %618 = vrot.lane.b32.xlu0 %v617, 32
  %v619 = vpop.permute.xlu0 %618
  %v620 = vsel %vm206, %v619, 0
  %622 = vmatprep.subr.mxu0 0.0
  %623 = vmatpush1.msra.mxu0 %v198
  %624 = vmatprep.subr.mxu0 0.0
  %625 = vmatpush1.msra.mxu0 %v199
  %626 = vmatprep.subr.mxu0 0.0
  %627 = vmatpush1.msra.mxu0 %v200
  %628 = vmatprep.subr.mxu0 0.0
  %629 = vmatpush1.msra.mxu0 %v201
  %630 = vmatprep.subr.mxu0 0.0
  %631 = vmatpush1.msra.mxu0 0.0
  %632 = vmatprep.subr.mxu0 0.0
  %633 = vmatpush1.msra.mxu0 0.0
  %634 = vmatprep.subr.mxu0 0.0
  %635 = vmatpush1.msra.mxu0 0.0
  %636 = vmatprep.subr.mxu0 0.0
  %637 = vmatpush1.msra.mxu0 0.0
  %638 = vmatprep.subr.mxu0 0.0
  %639 = vmatpush1.msra.mxu0 0.0
  %640 = vmatprep.subr.mxu0 0.0
  %641 = vmatpush1.msra.mxu0 0.0
  %642 = vmatprep.subr.mxu0 0.0
  %643 = vmatpush1.msra.mxu0 0.0
  %644 = vmatprep.subr.mxu0 0.0
  %645 = vmatpush1.msra.mxu0 0.0
  %646 = vmatprep.subr.mxu0 0.0
  %647 = vmatpush1.msra.mxu0 0.0
  %648 = vmatprep.subr.mxu0 0.0
  %649 = vmatpush1.msra.mxu0 0.0
  %650 = vmatprep.subr.mxu0 0.0
  %651 = vmatpush1.msra.mxu0 0.0
  %652 = vmatprep.subr.mxu0 0.0
  %653 = vmatpush1.msra.mxu0 0.0
  %654 = vmatprep.subr.mxu0 0.0
  %655 = vmatpush1.msra.mxu0 0.0
  %656 = vmatprep.subr.mxu0 0.0
  %657 = vmatpush1.msra.mxu0 0.0
  %658 = vmatprep.subr.mxu0 0.0
  %659 = vmatpush1.msra.mxu0 0.0
  %660 = vmatprep.subr.mxu0 0.0
  %661 = vmatpush1.msra.mxu0 0.0
  %662 = vmatprep.subr.mxu0 0.0
  %663 = vmatpush1.msra.mxu0 0.0
  %664 = vmatprep.subr.mxu0 0.0
  %665 = vmatpush1.msra.mxu0 0.0
  %666 = vmatprep.subr.mxu0 0.0
  %667 = vmatpush1.msra.mxu0 0.0
  %668 = vmatprep.subr.mxu0 0.0
  %669 = vmatpush1.msra.mxu0 0.0
  %670 = vmatprep.subr.mxu0 0.0
  %671 = vmatpush1.msra.mxu0 0.0
  %672 = vmatprep.subr.mxu0 0.0
  %673 = vmatpush1.msra.mxu0 0.0
  %674 = vmatprep.subr.mxu0 0.0
  %675 = vmatpush1.msra.mxu0 0.0
  %676 = vmatprep.subr.mxu0 0.0
  %677 = vmatpush1.msra.mxu0 0.0
  %678 = vmatprep.subr.mxu0 0.0
  %679 = vmatpush1.msra.mxu0 0.0
  %680 = vmatprep.subr.mxu0 0.0
  %681 = vmatpush1.msra.mxu0 0.0
  %682 = vmatprep.subr.mxu0 0.0
  %683 = vmatpush1.msra.mxu0 0.0
  %684 = vmatprep.subr.mxu0 0.0
  %685 = vmatpush1.msra.mxu0 0.0
  %686 = vmatprep.mubr.f32.mxu0 0.0
  %687 = vmatmul.mubr.f32.gmra.mrb[0].mxu0 %v620
  %v688 = vpop.f32.mrb[0].mxu0
  %v689 = vadd.f32 0.0, %v688
  %v690 = vpop.f32.mrb[0].mxu0
  %691 = vdwg.mxu0
  %v693 = vrot.slane %v689, 4
  %v695 = vadd.f32 %v188, %v693
  %v697 = vrot.slane %v615, 4
  %698 = vrot.lane.b32.xlu0 %v697, 32
  %v699 = vpop.permute.xlu0 %698
  %v700 = vsel %vm206, %v699, 0
  %702 = vmatprep.subr.mxu0 0.0
  %703 = vmatpush1.msra.mxu0 %v202
  %704 = vmatprep.subr.mxu0 0.0
  %705 = vmatpush1.msra.mxu0 %v203
  %706 = vmatprep.subr.mxu0 0.0
  %707 = vmatpush1.msra.mxu0 %v204
  %708 = vmatprep.subr.mxu0 0.0
  %709 = vmatpush1.msra.mxu0 %v205
  %710 = vmatprep.subr.mxu0 0.0
  %711 = vmatpush1.msra.mxu0 0.0
  %712 = vmatprep.subr.mxu0 0.0
  %713 = vmatpush1.msra.mxu0 0.0
  %714 = vmatprep.subr.mxu0 0.0
  %715 = vmatpush1.msra.mxu0 0.0
  %716 = vmatprep.subr.mxu0 0.0
  %717 = vmatpush1.msra.mxu0 0.0
  %718 = vmatprep.subr.mxu0 0.0
  %719 = vmatpush1.msra.mxu0 0.0
  %720 = vmatprep.subr.mxu0 0.0
  %721 = vmatpush1.msra.mxu0 0.0
  %722 = vmatprep.subr.mxu0 0.0
  %723 = vmatpush1.msra.mxu0 0.0
  %724 = vmatprep.subr.mxu0 0.0
  %725 = vmatpush1.msra.mxu0 0.0
  %726 = vmatprep.subr.mxu0 0.0
  %727 = vmatpush1.msra.mxu0 0.0
  %728 = vmatprep.subr.mxu0 0.0
  %729 = vmatpush1.msra.mxu0 0.0
  %730 = vmatprep.subr.mxu0 0.0
  %731 = vmatpush1.msra.mxu0 0.0
  %732 = vmatprep.subr.mxu0 0.0
  %733 = vmatpush1.msra.mxu0 0.0
  %734 = vmatprep.subr.mxu0 0.0
  %735 = vmatpush1.msra.mxu0 0.0
  %736 = vmatprep.subr.mxu0 0.0
  %737 = vmatpush1.msra.mxu0 0.0
  %738 = vmatprep.subr.mxu0 0.0
  %739 = vmatpush1.msra.mxu0 0.0
  %740 = vmatprep.subr.mxu0 0.0
  %741 = vmatpush1.msra.mxu0 0.0
  %742 = vmatprep.subr.mxu0 0.0
  %743 = vmatpush1.msra.mxu0 0.0
  %744 = vmatprep.subr.mxu0 0.0
  %745 = vmatpush1.msra.mxu0 0.0
  %746 = vmatprep.subr.mxu0 0.0
  %747 = vmatpush1.msra.mxu0 0.0
  %748 = vmatprep.subr.mxu0 0.0
  %749 = vmatpush1.msra.mxu0 0.0
  %750 = vmatprep.subr.mxu0 0.0
  %751 = vmatpush1.msra.mxu0 0.0
  %752 = vmatprep.subr.mxu0 0.0
  %753 = vmatpush1.msra.mxu0 0.0
  %754 = vmatprep.subr.mxu0 0.0
  %755 = vmatpush1.msra.mxu0 0.0
  %756 = vmatprep.subr.mxu0 0.0
  %757 = vmatpush1.msra.mxu0 0.0
  %758 = vmatprep.subr.mxu0 0.0
  %759 = vmatpush1.msra.mxu0 0.0
  %760 = vmatprep.subr.mxu0 0.0
  %761 = vmatpush1.msra.mxu0 0.0
  %762 = vmatprep.subr.mxu0 0.0
  %763 = vmatpush1.msra.mxu0 0.0
  %764 = vmatprep.subr.mxu0 0.0
  %765 = vmatpush1.msra.mxu0 0.0
  %766 = vmatprep.mubr.f32.mxu0 0.0
  %767 = vmatmul.mubr.f32.gmra.mrb[0].mxu0 %v700
  %v768 = vpop.f32.mrb[0].mxu0
  %v769 = vadd.f32 0.0, %v768
  %v770 = vpop.f32.mrb[0].mxu0
  %771 = vdwg.mxu0
  %v773 = vrot.slane %v769, 6
  %v775 = vadd.f32 %v196, %v773
  %v776 = vxor.u32 %v695, 2147483648
  %v777 = vmul.f32 %v776, 1.442695
  %v778 = vpow.pop %v777
  %v779 = vadd.f32 %v778, 1.0
  %v780 = vrcp.pop %v779
  %v781 = vmul.f32 1.0, %v780
  %v782 = vtanh.pop %v695
  %v784 = vrot.slane %v582, 6
  %v786 = vmul.f32 %v781, %v784
  %788 = vrot.lane.b32.xlu0 %v782, 64
  %v789 = vpop.permute.xlu0 %788
  %v791 = vmul.f32 %v781, %v789
  %793 = vrot.lane.b32.xlu0 %v791, 32
  %v794 = vpop.permute.xlu0 %793
  %v796 = vadd.f32 %v786, %v794
  %v797 = vtanh.pop %v796
  %799 = vrot.lane.b32.xlu0 %v797, 64
  %v800 = vpop.permute.xlu0 %799
  %v802 = vmul.f32 %v781, %v800
  %v803 = vxor.u32 %v775, 2147483648
  %v804 = vmul.f32 %v803, 1.442695
  %v805 = vpow.pop %v804
  %v806 = vadd.f32 %v805, 1.0
  %v807 = vrcp.pop %v806
  %v808 = vmul.f32 1.0, %v807
  %v809 = vtanh.pop %v775
  %v811 = vrot.slane %v609, 2
  %v813 = vmul.f32 %v808, %v811
  %815 = vrot.lane.b32.xlu0 %v809, 64
  %v816 = vpop.permute.xlu0 %815
  %v818 = vmul.f32 %v808, %v816
  %820 = vrot.lane.b32.xlu0 %v818, 32
  %v821 = vpop.permute.xlu0 %820
  %v823 = vadd.f32 %v813, %v821
  %v824 = vtanh.pop %v823
  %826 = vrot.lane.b32.xlu0 %v824, 64
  %v827 = vpop.permute.xlu0 %826
  %v829 = vmul.f32 %v808, %v827
  %v831 = vrot.slane %v802, 4
  %832 = vrot.lane.b32.xlu0 %v831, 32
  %v833 = vpop.permute.xlu0 %832
  %v834 = vsel %vm206, %v833, 0
  %836 = vmatprep.subr.mxu0 0.0
  %837 = vmatpush1.msra.mxu0 %v198
  %838 = vmatprep.subr.mxu0 0.0
  %839 = vmatpush1.msra.mxu0 %v199
  %840 = vmatprep.subr.mxu0 0.0
  %841 = vmatpush1.msra.mxu0 %v200
  %842 = vmatprep.subr.mxu0 0.0
  %843 = vmatpush1.msra.mxu0 %v201
  %844 = vmatprep.subr.mxu0 0.0
  %845 = vmatpush1.msra.mxu0 0.0
  %846 = vmatprep.subr.mxu0 0.0
  %847 = vmatpush1.msra.mxu0 0.0
  %848 = vmatprep.subr.mxu0 0.0
  %849 = vmatpush1.msra.mxu0 0.0
  %850 = vmatprep.subr.mxu0 0.0
  %851 = vmatpush1.msra.mxu0 0.0
  %852 = vmatprep.subr.mxu0 0.0
  %853 = vmatpush1.msra.mxu0 0.0
  %854 = vmatprep.subr.mxu0 0.0
  %855 = vmatpush1.msra.mxu0 0.0
  %856 = vmatprep.subr.mxu0 0.0
  %857 = vmatpush1.msra.mxu0 0.0
  %858 = vmatprep.subr.mxu0 0.0
  %859 = vmatpush1.msra.mxu0 0.0
  %860 = vmatprep.subr.mxu0 0.0
  %861 = vmatpush1.msra.mxu0 0.0
  %862 = vmatprep.subr.mxu0 0.0
  %863 = vmatpush1.msra.mxu0 0.0
  %864 = vmatprep.subr.mxu0 0.0
  %865 = vmatpush1.msra.mxu0 0.0
  %866 = vmatprep.subr.mxu0 0.0
  %867 = vmatpush1.msra.mxu0 0.0
  %868 = vmatprep.subr.mxu0 0.0
  %869 = vmatpush1.msra.mxu0 0.0
  %870 = vmatprep.subr.mxu0 0.0
  %871 = vmatpush1.msra.mxu0 0.0
  %872 = vmatprep.subr.mxu0 0.0
  %873 = vmatpush1.msra.mxu0 0.0
  %874 = vmatprep.subr.mxu0 0.0
  %875 = vmatpush1.msra.mxu0 0.0
  %876 = vmatprep.subr.mxu0 0.0
  %877 = vmatpush1.msra.mxu0 0.0
  %878 = vmatprep.subr.mxu0 0.0
  %879 = vmatpush1.msra.mxu0 0.0
  %880 = vmatprep.subr.mxu0 0.0
  %881 = vmatpush1.msra.mxu0 0.0
  %882 = vmatprep.subr.mxu0 0.0
  %883 = vmatpush1.msra.mxu0 0.0
  %884 = vmatprep.subr.mxu0 0.0
  %885 = vmatpush1.msra.mxu0 0.0
  %886 = vmatprep.subr.mxu0 0.0
  %887 = vmatpush1.msra.mxu0 0.0
  %888 = vmatprep.subr.mxu0 0.0
  %889 = vmatpush1.msra.mxu0 0.0
  %890 = vmatprep.subr.mxu0 0.0
  %891 = vmatpush1.msra.mxu0 0.0
  %892 = vmatprep.subr.mxu0 0.0
  %893 = vmatpush1.msra.mxu0 0.0
  %894 = vmatprep.subr.mxu0 0.0
  %895 = vmatpush1.msra.mxu0 0.0
  %896 = vmatprep.subr.mxu0 0.0
  %897 = vmatpush1.msra.mxu0 0.0
  %898 = vmatprep.subr.mxu0 0.0
  %899 = vmatpush1.msra.mxu0 0.0
  %900 = vmatprep.mubr.f32.mxu0 0.0
  %901 = vmatmul.mubr.f32.gmra.mrb[0].mxu0 %v834
  %v902 = vpop.f32.mrb[0].mxu0
  %v903 = vadd.f32 0.0, %v902
  %v904 = vpop.f32.mrb[0].mxu0
  %905 = vdwg.mxu0
  %v907 = vrot.slane %v903, 2
  %v909 = vadd.f32 %v188, %v907
  %v911 = vrot.slane %v829, 2
  %912 = vrot.lane.b32.xlu0 %v911, 32
  %v913 = vpop.permute.xlu0 %912
  %v914 = vsel %vm206, %v913, 0
  %916 = vmatprep.subr.mxu0 0.0
  %917 = vmatpush1.msra.mxu0 %v202
  %918 = vmatprep.subr.mxu0 0.0
  %919 = vmatpush1.msra.mxu0 %v203
  %920 = vmatprep.subr.mxu0 0.0
  %921 = vmatpush1.msra.mxu0 %v204
  %922 = vmatprep.subr.mxu0 0.0
  %923 = vmatpush1.msra.mxu0 %v205
  %924 = vmatprep.subr.mxu0 0.0
  %925 = vmatpush1.msra.mxu0 0.0
  %926 = vmatprep.subr.mxu0 0.0
  %927 = vmatpush1.msra.mxu0 0.0
  %928 = vmatprep.subr.mxu0 0.0
  %929 = vmatpush1.msra.mxu0 0.0
  %930 = vmatprep.subr.mxu0 0.0
  %931 = vmatpush1.msra.mxu0 0.0
  %932 = vmatprep.subr.mxu0 0.0
  %933 = vmatpush1.msra.mxu0 0.0
  %934 = vmatprep.subr.mxu0 0.0
  %935 = vmatpush1.msra.mxu0 0.0
  %936 = vmatprep.subr.mxu0 0.0
  %937 = vmatpush1.msra.mxu0 0.0
  %938 = vmatprep.subr.mxu0 0.0
  %939 = vmatpush1.msra.mxu0 0.0
  %940 = vmatprep.subr.mxu0 0.0
  %941 = vmatpush1.msra.mxu0 0.0
  %942 = vmatprep.subr.mxu0 0.0
  %943 = vmatpush1.msra.mxu0 0.0
  %944 = vmatprep.subr.mxu0 0.0
  %945 = vmatpush1.msra.mxu0 0.0
  %946 = vmatprep.subr.mxu0 0.0
  %947 = vmatpush1.msra.mxu0 0.0
  %948 = vmatprep.subr.mxu0 0.0
  %949 = vmatpush1.msra.mxu0 0.0
  %950 = vmatprep.subr.mxu0 0.0
  %951 = vmatpush1.msra.mxu0 0.0
  %952 = vmatprep.subr.mxu0 0.0
  %953 = vmatpush1.msra.mxu0 0.0
  %954 = vmatprep.subr.mxu0 0.0
  %955 = vmatpush1.msra.mxu0 0.0
  %956 = vmatprep.subr.mxu0 0.0
  %957 = vmatpush1.msra.mxu0 0.0
  %958 = vmatprep.subr.mxu0 0.0
  %959 = vmatpush1.msra.mxu0 0.0
  %960 = vmatprep.subr.mxu0 0.0
  %961 = vmatpush1.msra.mxu0 0.0
  %962 = vmatprep.subr.mxu0 0.0
  %963 = vmatpush1.msra.mxu0 0.0
  %964 = vmatprep.subr.mxu0 0.0
  %965 = vmatpush1.msra.mxu0 0.0
  %966 = vmatprep.subr.mxu0 0.0
  %967 = vmatpush1.msra.mxu0 0.0
  %968 = vmatprep.subr.mxu0 0.0
  %969 = vmatpush1.msra.mxu0 0.0
  %970 = vmatprep.subr.mxu0 0.0
  %971 = vmatpush1.msra.mxu0 0.0
  %972 = vmatprep.subr.mxu0 0.0
  %973 = vmatpush1.msra.mxu0 0.0
  %974 = vmatprep.subr.mxu0 0.0
  %975 = vmatpush1.msra.mxu0 0.0
  %976 = vmatprep.subr.mxu0 0.0
  %977 = vmatpush1.msra.mxu0 0.0
  %978 = vmatprep.subr.mxu0 0.0
  %979 = vmatpush1.msra.mxu0 0.0
  %980 = vmatprep.mubr.f32.mxu0 0.0
  %981 = vmatmul.mubr.f32.gmra.mrb[0].mxu0 %v914
  %v982 = vpop.f32.mrb[0].mxu0
  %v983 = vadd.f32 0.0, %v982
  %v984 = vpop.f32.mrb[0].mxu0
  %985 = vdwg.mxu0
  %v986 = vadd.f32 %v196, %v983
  %v987 = vxor.u32 %v909, 2147483648
  %v988 = vmul.f32 %v987, 1.442695
  %v989 = vpow.pop %v988
  %v990 = vadd.f32 %v989, 1.0
  %v991 = vrcp.pop %v990
  %v992 = vmul.f32 1.0, %v991
  %v993 = vtanh.pop %v909
  %v995 = vrot.slane %v796, 6
  %v997 = vmul.f32 %v992, %v995
  %999 = vrot.lane.b32.xlu0 %v993, 64
  %v1000 = vpop.permute.xlu0 %999
  %v1002 = vmul.f32 %v992, %v1000
  %1004 = vrot.lane.b32.xlu0 %v1002, 32
  %v1005 = vpop.permute.xlu0 %1004
  %v1007 = vadd.f32 %v997, %v1005
  %v1008 = vtanh.pop %v1007
  %1010 = vrot.lane.b32.xlu0 %v1008, 64
  %v1011 = vpop.permute.xlu0 %1010
  %v1013 = vmul.f32 %v992, %v1011
  %v1014 = vxor.u32 %v986, 2147483648
  %v1015 = vmul.f32 %v1014, 1.442695
  %v1016 = vpow.pop %v1015
  %v1017 = vadd.f32 %v1016, 1.0
  %v1018 = vrcp.pop %v1017
  %v1019 = vmul.f32 1.0, %v1018
  %v1020 = vtanh.pop %v986
  %v1022 = vrot.slane %v823, 2
  %v1024 = vmul.f32 %v1019, %v1022
  %1026 = vrot.lane.b32.xlu0 %v1020, 64
  %v1027 = vpop.permute.xlu0 %1026
  %v1029 = vmul.f32 %v1019, %v1027
  %1031 = vrot.lane.b32.xlu0 %v1029, 32
  %v1032 = vpop.permute.xlu0 %1031
  %v1034 = vadd.f32 %v1024, %v1032
  %v1035 = vtanh.pop %v1034
  %1037 = vrot.lane.b32.xlu0 %v1035, 64
  %v1038 = vpop.permute.xlu0 %1037
  %v1040 = vmul.f32 %v1019, %v1038
  %v1042 = vrot.slane %v1013, 6
  %1043 = vrot.lane.b32.xlu0 %v1042, 32
  %v1044 = vpop.permute.xlu0 %1043
  %v1045 = vsel %vm206, %v1044, 0
  %1047 = vmatprep.subr.mxu0 0.0
  %1048 = vmatpush1.msra.mxu0 %v198
  %1049 = vmatprep.subr.mxu0 0.0
  %1050 = vmatpush1.msra.mxu0 %v199
  %1051 = vmatprep.subr.mxu0 0.0
  %1052 = vmatpush1.msra.mxu0 %v200
  %1053 = vmatprep.subr.mxu0 0.0
  %1054 = vmatpush1.msra.mxu0 %v201
  %1055 = vmatprep.subr.mxu0 0.0
  %1056 = vmatpush1.msra.mxu0 0.0
  %1057 = vmatprep.subr.mxu0 0.0
  %1058 = vmatpush1.msra.mxu0 0.0
  %1059 = vmatprep.subr.mxu0 0.0
  %1060 = vmatpush1.msra.mxu0 0.0
  %1061 = vmatprep.subr.mxu0 0.0
  %1062 = vmatpush1.msra.mxu0 0.0
  %1063 = vmatprep.subr.mxu0 0.0
  %1064 = vmatpush1.msra.mxu0 0.0
  %1065 = vmatprep.subr.mxu0 0.0
  %1066 = vmatpush1.msra.mxu0 0.0
  %1067 = vmatprep.subr.mxu0 0.0
  %1068 = vmatpush1.msra.mxu0 0.0
  %1069 = vmatprep.subr.mxu0 0.0
  %1070 = vmatpush1.msra.mxu0 0.0
  %1071 = vmatprep.subr.mxu0 0.0
  %1072 = vmatpush1.msra.mxu0 0.0
  %1073 = vmatprep.subr.mxu0 0.0
  %1074 = vmatpush1.msra.mxu0 0.0
  %1075 = vmatprep.subr.mxu0 0.0
  %1076 = vmatpush1.msra.mxu0 0.0
  %1077 = vmatprep.subr.mxu0 0.0
  %1078 = vmatpush1.msra.mxu0 0.0
  %1079 = vmatprep.subr.mxu0 0.0
  %1080 = vmatpush1.msra.mxu0 0.0
  %1081 = vmatprep.subr.mxu0 0.0
  %1082 = vmatpush1.msra.mxu0 0.0
  %1083 = vmatprep.subr.mxu0 0.0
  %1084 = vmatpush1.msra.mxu0 0.0
  %1085 = vmatprep.subr.mxu0 0.0
  %1086 = vmatpush1.msra.mxu0 0.0
  %1087 = vmatprep.subr.mxu0 0.0
  %1088 = vmatpush1.msra.mxu0 0.0
  %1089 = vmatprep.subr.mxu0 0.0
  %1090 = vmatpush1.msra.mxu0 0.0
  %1091 = vmatprep.subr.mxu0 0.0
  %1092 = vmatpush1.msra.mxu0 0.0
  %1093 = vmatprep.subr.mxu0 0.0
  %1094 = vmatpush1.msra.mxu0 0.0
  %1095 = vmatprep.subr.mxu0 0.0
  %1096 = vmatpush1.msra.mxu0 0.0
  %1097 = vmatprep.subr.mxu0 0.0
  %1098 = vmatpush1.msra.mxu0 0.0
  %1099 = vmatprep.subr.mxu0 0.0
  %1100 = vmatpush1.msra.mxu0 0.0
  %1101 = vmatprep.subr.mxu0 0.0
  %1102 = vmatpush1.msra.mxu0 0.0
  %1103 = vmatprep.subr.mxu0 0.0
  %1104 = vmatpush1.msra.mxu0 0.0
  %1105 = vmatprep.subr.mxu0 0.0
  %1106 = vmatpush1.msra.mxu0 0.0
  %1107 = vmatprep.subr.mxu0 0.0
  %1108 = vmatpush1.msra.mxu0 0.0
  %1109 = vmatprep.subr.mxu0 0.0
  %1110 = vmatpush1.msra.mxu0 0.0
  %1111 = vmatprep.mubr.f32.mxu0 0.0
  %1112 = vmatmul.mubr.f32.gmra.mrb[0].mxu0 %v1045
  %v1113 = vpop.f32.mrb[0].mxu0
  %v1114 = vadd.f32 0.0, %v1113
  %v1115 = vpop.f32.mrb[0].mxu0
  %1116 = vdwg.mxu0
  %v1117 = vadd.f32 %v194, %v1114
  %1119 = vrot.lane.b32.xlu0 %v1040, 32
  %v1120 = vpop.permute.xlu0 %1119
  %v1121 = vsel %vm206, %v1120, 0
  %1123 = vmatprep.subr.mxu0 0.0
  %1124 = vmatpush1.msra.mxu0 %v202
  %1125 = vmatprep.subr.mxu0 0.0
  %1126 = vmatpush1.msra.mxu0 %v203
  %1127 = vmatprep.subr.mxu0 0.0
  %1128 = vmatpush1.msra.mxu0 %v204
  %1129 = vmatprep.subr.mxu0 0.0
  %1130 = vmatpush1.msra.mxu0 %v205
  %1131 = vmatprep.subr.mxu0 0.0
  %1132 = vmatpush1.msra.mxu0 0.0
  %1133 = vmatprep.subr.mxu0 0.0
  %1134 = vmatpush1.msra.mxu0 0.0
  %1135 = vmatprep.subr.mxu0 0.0
  %1136 = vmatpush1.msra.mxu0 0.0
  %1137 = vmatprep.subr.mxu0 0.0
  %1138 = vmatpush1.msra.mxu0 0.0
  %1139 = vmatprep.subr.mxu0 0.0
  %1140 = vmatpush1.msra.mxu0 0.0
  %1141 = vmatprep.subr.mxu0 0.0
  %1142 = vmatpush1.msra.mxu0 0.0
  %1143 = vmatprep.subr.mxu0 0.0
  %1144 = vmatpush1.msra.mxu0 0.0
  %1145 = vmatprep.subr.mxu0 0.0
  %1146 = vmatpush1.msra.mxu0 0.0
  %1147 = vmatprep.subr.mxu0 0.0
  %1148 = vmatpush1.msra.mxu0 0.0
  %1149 = vmatprep.subr.mxu0 0.0
  %1150 = vmatpush1.msra.mxu0 0.0
  %1151 = vmatprep.subr.mxu0 0.0
  %1152 = vmatpush1.msra.mxu0 0.0
  %1153 = vmatprep.subr.mxu0 0.0
  %1154 = vmatpush1.msra.mxu0 0.0
  %1155 = vmatprep.subr.mxu0 0.0
  %1156 = vmatpush1.msra.mxu0 0.0
  %1157 = vmatprep.subr.mxu0 0.0
  %1158 = vmatpush1.msra.mxu0 0.0
  %1159 = vmatprep.subr.mxu0 0.0
  %1160 = vmatpush1.msra.mxu0 0.0
  %1161 = vmatprep.subr.mxu0 0.0
  %1162 = vmatpush1.msra.mxu0 0.0
  %1163 = vmatprep.subr.mxu0 0.0
  %1164 = vmatpush1.msra.mxu0 0.0
  %1165 = vmatprep.subr.mxu0 0.0
  %1166 = vmatpush1.msra.mxu0 0.0
  %1167 = vmatprep.subr.mxu0 0.0
  %1168 = vmatpush1.msra.mxu0 0.0
  %1169 = vmatprep.subr.mxu0 0.0
  %1170 = vmatpush1.msra.mxu0 0.0
  %1171 = vmatprep.subr.mxu0 0.0
  %1172 = vmatpush1.msra.mxu0 0.0
  %1173 = vmatprep.subr.mxu0 0.0
  %1174 = vmatpush1.msra.mxu0 0.0
  %1175 = vmatprep.subr.mxu0 0.0
  %1176 = vmatpush1.msra.mxu0 0.0
  %1177 = vmatprep.subr.mxu0 0.0
  %1178 = vmatpush1.msra.mxu0 0.0
  %1179 = vmatprep.subr.mxu0 0.0
  %1180 = vmatpush1.msra.mxu0 0.0
  %1181 = vmatprep.subr.mxu0 0.0
  %1182 = vmatpush1.msra.mxu0 0.0
  %1183 = vmatprep.subr.mxu0 0.0
  %1184 = vmatpush1.msra.mxu0 0.0
  %1185 = vmatprep.subr.mxu0 0.0
  %1186 = vmatpush1.msra.mxu0 0.0
  %1187 = vmatprep.mubr.f32.mxu0 0.0
  %1188 = vmatmul.mubr.f32.gmra.mrb[0].mxu0 %v1121
  %v1189 = vpop.f32.mrb[0].mxu0
  %v1190 = vadd.f32 0.0, %v1189
  %v1191 = vpop.f32.mrb[0].mxu0
  %1192 = vdwg.mxu0
  %v1194 = vrot.slane %v1190, 2
  %v1196 = vadd.f32 %v190, %v1194
  %v1197 = vxor.u32 %v1117, 2147483648
  %v1198 = vmul.f32 %v1197, 1.442695
  %v1199 = vpow.pop %v1198
  %v1200 = vadd.f32 %v1199, 1.0
  %v1201 = vrcp.pop %v1200
  %v1202 = vmul.f32 1.0, %v1201
  %v1203 = vtanh.pop %v1117
  %v1205 = vrot.slane %v1007, 6
  %v1207 = vmul.f32 %v1202, %v1205
  %1209 = vrot.lane.b32.xlu0 %v1203, 64
  %v1210 = vpop.permute.xlu0 %1209
  %v1212 = vmul.f32 %v1202, %v1210
  %1214 = vrot.lane.b32.xlu0 %v1212, 32
  %v1215 = vpop.permute.xlu0 %1214
  %v1217 = vadd.f32 %v1207, %v1215
  %v1218 = vtanh.pop %v1217
  %1220 = vrot.lane.b32.xlu0 %v1218, 64
  %v1221 = vpop.permute.xlu0 %1220
  %v1223 = vmul.f32 %v1202, %v1221
  %v1224 = vxor.u32 %v1196, 2147483648
  %v1225 = vmul.f32 %v1224, 1.442695
  %v1226 = vpow.pop %v1225
  %v1227 = vadd.f32 %v1226, 1.0
  %v1228 = vrcp.pop %v1227
  %v1229 = vmul.f32 1.0, %v1228
  %v1230 = vtanh.pop %v1196
  %v1232 = vrot.slane %v1034, 2
  %v1234 = vmul.f32 %v1229, %v1232
  %1236 = vrot.lane.b32.xlu0 %v1230, 64
  %v1237 = vpop.permute.xlu0 %1236
  %v1239 = vmul.f32 %v1229, %v1237
  %1241 = vrot.lane.b32.xlu0 %v1239, 32
  %v1242 = vpop.permute.xlu0 %1241
  %v1244 = vadd.f32 %v1234, %v1242
  %v1245 = vtanh.pop %v1244
  %1247 = vrot.lane.b32.xlu0 %v1245, 64
  %v1248 = vpop.permute.xlu0 %1247
  %v1250 = vmul.f32 %v1229, %v1248
  %1252 = vrot.lane.b32.xlu0 %v1223, 32
  %v1253 = vpop.permute.xlu0 %1252
  %v1254 = vsel %vm206, %v1253, 0
  %1256 = vmatprep.subr.mxu0 0.0
  %1257 = vmatpush1.msra.mxu0 %v198
  %1258 = vmatprep.subr.mxu0 0.0
  %1259 = vmatpush1.msra.mxu0 %v199
  %1260 = vmatprep.subr.mxu0 0.0
  %1261 = vmatpush1.msra.mxu0 %v200
  %1262 = vmatprep.subr.mxu0 0.0
  %1263 = vmatpush1.msra.mxu0 %v201
  %1264 = vmatprep.subr.mxu0 0.0
  %1265 = vmatpush1.msra.mxu0 0.0
  %1266 = vmatprep.subr.mxu0 0.0
  %1267 = vmatpush1.msra.mxu0 0.0
  %1268 = vmatprep.subr.mxu0 0.0
  %1269 = vmatpush1.msra.mxu0 0.0
  %1270 = vmatprep.subr.mxu0 0.0
  %1271 = vmatpush1.msra.mxu0 0.0
  %1272 = vmatprep.subr.mxu0 0.0
  %1273 = vmatpush1.msra.mxu0 0.0
  %1274 = vmatprep.subr.mxu0 0.0
  %1275 = vmatpush1.msra.mxu0 0.0
  %1276 = vmatprep.subr.mxu0 0.0
  %1277 = vmatpush1.msra.mxu0 0.0
  %1278 = vmatprep.subr.mxu0 0.0
  %1279 = vmatpush1.msra.mxu0 0.0
  %1280 = vmatprep.subr.mxu0 0.0
  %1281 = vmatpush1.msra.mxu0 0.0
  %1282 = vmatprep.subr.mxu0 0.0
  %1283 = vmatpush1.msra.mxu0 0.0
  %1284 = vmatprep.subr.mxu0 0.0
  %1285 = vmatpush1.msra.mxu0 0.0
  %1286 = vmatprep.subr.mxu0 0.0
  %1287 = vmatpush1.msra.mxu0 0.0
  %1288 = vmatprep.subr.mxu0 0.0
  %1289 = vmatpush1.msra.mxu0 0.0
  %1290 = vmatprep.subr.mxu0 0.0
  %1291 = vmatpush1.msra.mxu0 0.0
  %1292 = vmatprep.subr.mxu0 0.0
  %1293 = vmatpush1.msra.mxu0 0.0
  %1294 = vmatprep.subr.mxu0 0.0
  %1295 = vmatpush1.msra.mxu0 0.0
  %1296 = vmatprep.subr.mxu0 0.0
  %1297 = vmatpush1.msra.mxu0 0.0
  %1298 = vmatprep.subr.mxu0 0.0
  %1299 = vmatpush1.msra.mxu0 0.0
  %1300 = vmatprep.subr.mxu0 0.0
  %1301 = vmatpush1.msra.mxu0 0.0
  %1302 = vmatprep.subr.mxu0 0.0
  %1303 = vmatpush1.msra.mxu0 0.0
  %1304 = vmatprep.subr.mxu0 0.0
  %1305 = vmatpush1.msra.mxu0 0.0
  %1306 = vmatprep.subr.mxu0 0.0
  %1307 = vmatpush1.msra.mxu0 0.0
  %1308 = vmatprep.subr.mxu0 0.0
  %1309 = vmatpush1.msra.mxu0 0.0
  %1310 = vmatprep.subr.mxu0 0.0
  %1311 = vmatpush1.msra.mxu0 0.0
  %1312 = vmatprep.subr.mxu0 0.0
  %1313 = vmatpush1.msra.mxu0 0.0
  %1314 = vmatprep.subr.mxu0 0.0
  %1315 = vmatpush1.msra.mxu0 0.0
  %1316 = vmatprep.subr.mxu0 0.0
  %1317 = vmatpush1.msra.mxu0 0.0
  %1318 = vmatprep.subr.mxu0 0.0
  %1319 = vmatpush1.msra.mxu0 0.0
  %1320 = vmatprep.mubr.f32.mxu0 0.0
  %1321 = vmatmul.mubr.f32.gmra.mrb[0].mxu0 %v1254
  %v1322 = vpop.f32.mrb[0].mxu0
  %v1323 = vadd.f32 0.0, %v1322
  %v1324 = vpop.f32.mrb[0].mxu0
  %1325 = vdwg.mxu0
  %v1327 = vrot.slane %v1323, 6
  %v1329 = vadd.f32 %v194, %v1327
  %v1331 = vrot.slane %v1250, 6
  %1332 = vrot.lane.b32.xlu0 %v1331, 32
  %v1333 = vpop.permute.xlu0 %1332
  %v1334 = vsel %vm206, %v1333, 0
  %1336 = vmatprep.subr.mxu0 0.0
  %1337 = vmatpush1.msra.mxu0 %v202
  %1338 = vmatprep.subr.mxu0 0.0
  %1339 = vmatpush1.msra.mxu0 %v203
  %1340 = vmatprep.subr.mxu0 0.0
  %1341 = vmatpush1.msra.mxu0 %v204
  %1342 = vmatprep.subr.mxu0 0.0
  %1343 = vmatpush1.msra.mxu0 %v205
  %1344 = vmatprep.subr.mxu0 0.0
  %1345 = vmatpush1.msra.mxu0 0.0
  %1346 = vmatprep.subr.mxu0 0.0
  %1347 = vmatpush1.msra.mxu0 0.0
  %1348 = vmatprep.subr.mxu0 0.0
  %1349 = vmatpush1.msra.mxu0 0.0
  %1350 = vmatprep.subr.mxu0 0.0
  %1351 = vmatpush1.msra.mxu0 0.0
  %1352 = vmatprep.subr.mxu0 0.0
  %1353 = vmatpush1.msra.mxu0 0.0
  %1354 = vmatprep.subr.mxu0 0.0
  %1355 = vmatpush1.msra.mxu0 0.0
  %1356 = vmatprep.subr.mxu0 0.0
  %1357 = vmatpush1.msra.mxu0 0.0
  %1358 = vmatprep.subr.mxu0 0.0
  %1359 = vmatpush1.msra.mxu0 0.0
  %1360 = vmatprep.subr.mxu0 0.0
  %1361 = vmatpush1.msra.mxu0 0.0
  %1362 = vmatprep.subr.mxu0 0.0
  %1363 = vmatpush1.msra.mxu0 0.0
  %1364 = vmatprep.subr.mxu0 0.0
  %1365 = vmatpush1.msra.mxu0 0.0
  %1366 = vmatprep.subr.mxu0 0.0
  %1367 = vmatpush1.msra.mxu0 0.0
  %1368 = vmatprep.subr.mxu0 0.0
  %1369 = vmatpush1.msra.mxu0 0.0
  %1370 = vmatprep.subr.mxu0 0.0
  %1371 = vmatpush1.msra.mxu0 0.0
  %1372 = vmatprep.subr.mxu0 0.0
  %1373 = vmatpush1.msra.mxu0 0.0
  %1374 = vmatprep.subr.mxu0 0.0
  %1375 = vmatpush1.msra.mxu0 0.0
  %1376 = vmatprep.subr.mxu0 0.0
  %1377 = vmatpush1.msra.mxu0 0.0
  %1378 = vmatprep.subr.mxu0 0.0
  %1379 = vmatpush1.msra.mxu0 0.0
  %1380 = vmatprep.subr.mxu0 0.0
  %1381 = vmatpush1.msra.mxu0 0.0
  %1382 = vmatprep.subr.mxu0 0.0
  %1383 = vmatpush1.msra.mxu0 0.0
  %1384 = vmatprep.subr.mxu0 0.0
  %1385 = vmatpush1.msra.mxu0 0.0
  %1386 = vmatprep.subr.mxu0 0.0
  %1387 = vmatpush1.msra.mxu0 0.0
  %1388 = vmatprep.subr.mxu0 0.0
  %1389 = vmatpush1.msra.mxu0 0.0
  %1390 = vmatprep.subr.mxu0 0.0
  %1391 = vmatpush1.msra.mxu0 0.0
  %1392 = vmatprep.subr.mxu0 0.0
  %1393 = vmatpush1.msra.mxu0 0.0
  %1394 = vmatprep.subr.mxu0 0.0
  %1395 = vmatpush1.msra.mxu0 0.0
  %1396 = vmatprep.subr.mxu0 0.0
  %1397 = vmatpush1.msra.mxu0 0.0
  %1398 = vmatprep.subr.mxu0 0.0
  %1399 = vmatpush1.msra.mxu0 0.0
  %1400 = vmatprep.mubr.f32.mxu0 0.0
  %1401 = vmatmul.mubr.f32.gmra.mrb[0].mxu0 %v1334
  %v1402 = vpop.f32.mrb[0].mxu0
  %v1403 = vadd.f32 0.0, %v1402
  %v1404 = vpop.f32.mrb[0].mxu0
  %1405 = vdwg.mxu0
  %v1407 = vrot.slane %v1403, 4
  %v1409 = vadd.f32 %v190, %v1407
  %v1410 = vxor.u32 %v1329, 2147483648
  %v1411 = vmul.f32 %v1410, 1.442695
  %v1412 = vpow.pop %v1411
  %v1413 = vadd.f32 %v1412, 1.0
  %v1414 = vrcp.pop %v1413
  %v1415 = vmul.f32 1.0, %v1414
  %v1416 = vtanh.pop %v1329
  %v1418 = vrot.slane %v1217, 6
  %v1420 = vmul.f32 %v1415, %v1418
  %1422 = vrot.lane.b32.xlu0 %v1416, 64
  %v1423 = vpop.permute.xlu0 %1422
  %v1425 = vmul.f32 %v1415, %v1423
  %1427 = vrot.lane.b32.xlu0 %v1425, 32
  %v1428 = vpop.permute.xlu0 %1427
  %v1430 = vadd.f32 %v1420, %v1428
  %v1431 = vtanh.pop %v1430
  %1433 = vrot.lane.b32.xlu0 %v1431, 64
  %v1434 = vpop.permute.xlu0 %1433
  %v1436 = vmul.f32 %v1415, %v1434
  %v1437 = vxor.u32 %v1409, 2147483648
  %v1438 = vmul.f32 %v1437, 1.442695
  %v1439 = vpow.pop %v1438
  %v1440 = vadd.f32 %v1439, 1.0
  %v1441 = vrcp.pop %v1440
  %v1442 = vmul.f32 1.0, %v1441
  %v1443 = vtanh.pop %v1409
  %v1445 = vrot.slane %v1244, 2
  %v1447 = vmul.f32 %v1442, %v1445
  %1449 = vrot.lane.b32.xlu0 %v1443, 64
  %v1450 = vpop.permute.xlu0 %1449
  %v1452 = vmul.f32 %v1442, %v1450
  %1454 = vrot.lane.b32.xlu0 %v1452, 32
  %v1455 = vpop.permute.xlu0 %1454
  %v1457 = vadd.f32 %v1447, %v1455
  %v1458 = vtanh.pop %v1457
  %1460 = vrot.lane.b32.xlu0 %v1458, 64
  %v1461 = vpop.permute.xlu0 %1460
  %v1463 = vmul.f32 %v1442, %v1461
  %v1465 = vrot.slane %v1436, 2
  %1466 = vrot.lane.b32.xlu0 %v1465, 32
  %v1467 = vpop.permute.xlu0 %1466
  %v1468 = vsel %vm206, %v1467, 0
  %1470 = vmatprep.subr.mxu0 0.0
  %1471 = vmatpush1.msra.mxu0 %v198
  %1472 = vmatprep.subr.mxu0 0.0
  %1473 = vmatpush1.msra.mxu0 %v199
  %1474 = vmatprep.subr.mxu0 0.0
  %1475 = vmatpush1.msra.mxu0 %v200
  %1476 = vmatprep.subr.mxu0 0.0
  %1477 = vmatpush1.msra.mxu0 %v201
  %1478 = vmatprep.subr.mxu0 0.0
  %1479 = vmatpush1.msra.mxu0 0.0
  %1480 = vmatprep.subr.mxu0 0.0
  %1481 = vmatpush1.msra.mxu0 0.0
  %1482 = vmatprep.subr.mxu0 0.0
  %1483 = vmatpush1.msra.mxu0 0.0
  %1484 = vmatprep.subr.mxu0 0.0
  %1485 = vmatpush1.msra.mxu0 0.0
  %1486 = vmatprep.subr.mxu0 0.0
  %1487 = vmatpush1.msra.mxu0 0.0
  %1488 = vmatprep.subr.mxu0 0.0
  %1489 = vmatpush1.msra.mxu0 0.0
  %1490 = vmatprep.subr.mxu0 0.0
  %1491 = vmatpush1.msra.mxu0 0.0
  %1492 = vmatprep.subr.mxu0 0.0
  %1493 = vmatpush1.msra.mxu0 0.0
  %1494 = vmatprep.subr.mxu0 0.0
  %1495 = vmatpush1.msra.mxu0 0.0
  %1496 = vmatprep.subr.mxu0 0.0
  %1497 = vmatpush1.msra.mxu0 0.0
  %1498 = vmatprep.subr.mxu0 0.0
  %1499 = vmatpush1.msra.mxu0 0.0
  %1500 = vmatprep.subr.mxu0 0.0
  %1501 = vmatpush1.msra.mxu0 0.0
  %1502 = vmatprep.subr.mxu0 0.0
  %1503 = vmatpush1.msra.mxu0 0.0
  %1504 = vmatprep.subr.mxu0 0.0
  %1505 = vmatpush1.msra.mxu0 0.0
  %1506 = vmatprep.subr.mxu0 0.0
  %1507 = vmatpush1.msra.mxu0 0.0
  %1508 = vmatprep.subr.mxu0 0.0
  %1509 = vmatpush1.msra.mxu0 0.0
  %1510 = vmatprep.subr.mxu0 0.0
  %1511 = vmatpush1.msra.mxu0 0.0
  %1512 = vmatprep.subr.mxu0 0.0
  %1513 = vmatpush1.msra.mxu0 0.0
  %1514 = vmatprep.subr.mxu0 0.0
  %1515 = vmatpush1.msra.mxu0 0.0
  %1516 = vmatprep.subr.mxu0 0.0
  %1517 = vmatpush1.msra.mxu0 0.0
  %1518 = vmatprep.subr.mxu0 0.0
  %1519 = vmatpush1.msra.mxu0 0.0
  %1520 = vmatprep.subr.mxu0 0.0
  %1521 = vmatpush1.msra.mxu0 0.0
  %1522 = vmatprep.subr.mxu0 0.0
  %1523 = vmatpush1.msra.mxu0 0.0
  %1524 = vmatprep.subr.mxu0 0.0
  %1525 = vmatpush1.msra.mxu0 0.0
  %1526 = vmatprep.subr.mxu0 0.0
  %1527 = vmatpush1.msra.mxu0 0.0
  %1528 = vmatprep.subr.mxu0 0.0
  %1529 = vmatpush1.msra.mxu0 0.0
  %1530 = vmatprep.subr.mxu0 0.0
  %1531 = vmatpush1.msra.mxu0 0.0
  %1532 = vmatprep.subr.mxu0 0.0
  %1533 = vmatpush1.msra.mxu0 0.0
  %1534 = vmatprep.mubr.f32.mxu0 0.0
  %1535 = vmatmul.mubr.f32.gmra.mrb[0].mxu0 %v1468
  %v1536 = vpop.f32.mrb[0].mxu0
  %v1537 = vadd.f32 0.0, %v1536
  %v1538 = vpop.f32.mrb[0].mxu0
  %1539 = vdwg.mxu0
  %v1541 = vrot.slane %v1537, 4
  %v1543 = vadd.f32 %v194, %v1541
  %v1545 = vrot.slane %v1463, 4
  %1546 = vrot.lane.b32.xlu0 %v1545, 32
  %v1547 = vpop.permute.xlu0 %1546
  %v1548 = vsel %vm206, %v1547, 0
  %1550 = vmatprep.subr.mxu0 0.0
  %1551 = vmatpush1.msra.mxu0 %v202
  %1552 = vmatprep.subr.mxu0 0.0
  %1553 = vmatpush1.msra.mxu0 %v203
  %1554 = vmatprep.subr.mxu0 0.0
  %1555 = vmatpush1.msra.mxu0 %v204
  %1556 = vmatprep.subr.mxu0 0.0
  %1557 = vmatpush1.msra.mxu0 %v205
  %1558 = vmatprep.subr.mxu0 0.0
  %1559 = vmatpush1.msra.mxu0 0.0
  %1560 = vmatprep.subr.mxu0 0.0
  %1561 = vmatpush1.msra.mxu0 0.0
  %1562 = vmatprep.subr.mxu0 0.0
  %1563 = vmatpush1.msra.mxu0 0.0
  %1564 = vmatprep.subr.mxu0 0.0
  %1565 = vmatpush1.msra.mxu0 0.0
  %1566 = vmatprep.subr.mxu0 0.0
  %1567 = vmatpush1.msra.mxu0 0.0
  %1568 = vmatprep.subr.mxu0 0.0
  %1569 = vmatpush1.msra.mxu0 0.0
  %1570 = vmatprep.subr.mxu0 0.0
  %1571 = vmatpush1.msra.mxu0 0.0
  %1572 = vmatprep.subr.mxu0 0.0
  %1573 = vmatpush1.msra.mxu0 0.0
  %1574 = vmatprep.subr.mxu0 0.0
  %1575 = vmatpush1.msra.mxu0 0.0
  %1576 = vmatprep.subr.mxu0 0.0
  %1577 = vmatpush1.msra.mxu0 0.0
  %1578 = vmatprep.subr.mxu0 0.0
  %1579 = vmatpush1.msra.mxu0 0.0
  %1580 = vmatprep.subr.mxu0 0.0
  %1581 = vmatpush1.msra.mxu0 0.0
  %1582 = vmatprep.subr.mxu0 0.0
  %1583 = vmatpush1.msra.mxu0 0.0
  %1584 = vmatprep.subr.mxu0 0.0
  %1585 = vmatpush1.msra.mxu0 0.0
  %1586 = vmatprep.subr.mxu0 0.0
  %1587 = vmatpush1.msra.mxu0 0.0
  %1588 = vmatprep.subr.mxu0 0.0
  %1589 = vmatpush1.msra.mxu0 0.0
  %1590 = vmatprep.subr.mxu0 0.0
  %1591 = vmatpush1.msra.mxu0 0.0
  %1592 = vmatprep.subr.mxu0 0.0
  %1593 = vmatpush1.msra.mxu0 0.0
  %1594 = vmatprep.subr.mxu0 0.0
  %1595 = vmatpush1.msra.mxu0 0.0
  %1596 = vmatprep.subr.mxu0 0.0
  %1597 = vmatpush1.msra.mxu0 0.0
  %1598 = vmatprep.subr.mxu0 0.0
  %1599 = vmatpush1.msra.mxu0 0.0
  %1600 = vmatprep.subr.mxu0 0.0
  %1601 = vmatpush1.msra.mxu0 0.0
  %1602 = vmatprep.subr.mxu0 0.0
  %1603 = vmatpush1.msra.mxu0 0.0
  %1604 = vmatprep.subr.mxu0 0.0
  %1605 = vmatpush1.msra.mxu0 0.0
  %1606 = vmatprep.subr.mxu0 0.0
  %1607 = vmatpush1.msra.mxu0 0.0
  %1608 = vmatprep.subr.mxu0 0.0
  %1609 = vmatpush1.msra.mxu0 0.0
  %1610 = vmatprep.subr.mxu0 0.0
  %1611 = vmatpush1.msra.mxu0 0.0
  %1612 = vmatprep.subr.mxu0 0.0
  %1613 = vmatpush1.msra.mxu0 0.0
  %1614 = vmatprep.mubr.f32.mxu0 0.0
  %1615 = vmatmul.mubr.f32.gmra.mrb[0].mxu0 %v1548
  %v1616 = vpop.f32.mrb[0].mxu0
  %v1617 = vadd.f32 0.0, %v1616
  %v1618 = vpop.f32.mrb[0].mxu0
  %1619 = vdwg.mxu0
  %v1621 = vrot.slane %v1617, 6
  %v1623 = vadd.f32 %v190, %v1621
  %v1624 = vxor.u32 %v1543, 2147483648
  %v1625 = vmul.f32 %v1624, 1.442695
  %v1626 = vpow.pop %v1625
  %v1627 = vadd.f32 %v1626, 1.0
  %v1628 = vrcp.pop %v1627
  %v1629 = vmul.f32 1.0, %v1628
  %v1630 = vtanh.pop %v1543
  %v1632 = vrot.slane %v1430, 6
  %v1634 = vmul.f32 %v1629, %v1632
  %1636 = vrot.lane.b32.xlu0 %v1630, 64
  %v1637 = vpop.permute.xlu0 %1636
  %v1639 = vmul.f32 %v1629, %v1637
  %1641 = vrot.lane.b32.xlu0 %v1639, 32
  %v1642 = vpop.permute.xlu0 %1641
  %v1644 = vadd.f32 %v1634, %v1642
  %v1645 = vtanh.pop %v1644
  %1647 = vrot.lane.b32.xlu0 %v1645, 64
  %v1648 = vpop.permute.xlu0 %1647
  %v1650 = vmul.f32 %v1629, %v1648
  %v1651 = vxor.u32 %v1623, 2147483648
  %v1652 = vmul.f32 %v1651, 1.442695
  %v1653 = vpow.pop %v1652
  %v1654 = vadd.f32 %v1653, 1.0
  %v1655 = vrcp.pop %v1654
  %v1656 = vmul.f32 1.0, %v1655
  %v1657 = vtanh.pop %v1623
  %v1659 = vrot.slane %v1457, 2
  %v1661 = vmul.f32 %v1656, %v1659
  %1663 = vrot.lane.b32.xlu0 %v1657, 64
  %v1664 = vpop.permute.xlu0 %1663
  %v1666 = vmul.f32 %v1656, %v1664
  %1668 = vrot.lane.b32.xlu0 %v1666, 32
  %v1669 = vpop.permute.xlu0 %1668
  %v1671 = vadd.f32 %v1661, %v1669
  %v1672 = vtanh.pop %v1671
  %1674 = vrot.lane.b32.xlu0 %v1672, 64
  %v1675 = vpop.permute.xlu0 %1674
  %v1677 = vmul.f32 %v1656, %v1675
  %v1679 = vrot.slane %v1650, 4
  %1680 = vrot.lane.b32.xlu0 %v1679, 32
  %v1681 = vpop.permute.xlu0 %1680
  %v1682 = vsel %vm206, %v1681, 0
  %1684 = vmatprep.subr.mxu0 0.0
  %1685 = vmatpush1.msra.mxu0 %v198
  %1686 = vmatprep.subr.mxu0 0.0
  %1687 = vmatpush1.msra.mxu0 %v199
  %1688 = vmatprep.subr.mxu0 0.0
  %1689 = vmatpush1.msra.mxu0 %v200
  %1690 = vmatprep.subr.mxu0 0.0
  %1691 = vmatpush1.msra.mxu0 %v201
  %1692 = vmatprep.subr.mxu0 0.0
  %1693 = vmatpush1.msra.mxu0 0.0
  %1694 = vmatprep.subr.mxu0 0.0
  %1695 = vmatpush1.msra.mxu0 0.0
  %1696 = vmatprep.subr.mxu0 0.0
  %1697 = vmatpush1.msra.mxu0 0.0
  %1698 = vmatprep.subr.mxu0 0.0
  %1699 = vmatpush1.msra.mxu0 0.0
  %1700 = vmatprep.subr.mxu0 0.0
  %1701 = vmatpush1.msra.mxu0 0.0
  %1702 = vmatprep.subr.mxu0 0.0
  %1703 = vmatpush1.msra.mxu0 0.0
  %1704 = vmatprep.subr.mxu0 0.0
  %1705 = vmatpush1.msra.mxu0 0.0
  %1706 = vmatprep.subr.mxu0 0.0
  %1707 = vmatpush1.msra.mxu0 0.0
  %1708 = vmatprep.subr.mxu0 0.0
  %1709 = vmatpush1.msra.mxu0 0.0
  %1710 = vmatprep.subr.mxu0 0.0
  %1711 = vmatpush1.msra.mxu0 0.0
  %1712 = vmatprep.subr.mxu0 0.0
  %1713 = vmatpush1.msra.mxu0 0.0
  %1714 = vmatprep.subr.mxu0 0.0
  %1715 = vmatpush1.msra.mxu0 0.0
  %1716 = vmatprep.subr.mxu0 0.0
  %1717 = vmatpush1.msra.mxu0 0.0
  %1718 = vmatprep.subr.mxu0 0.0
  %1719 = vmatpush1.msra.mxu0 0.0
  %1720 = vmatprep.subr.mxu0 0.0
  %1721 = vmatpush1.msra.mxu0 0.0
  %1722 = vmatprep.subr.mxu0 0.0
  %1723 = vmatpush1.msra.mxu0 0.0
  %1724 = vmatprep.subr.mxu0 0.0
  %1725 = vmatpush1.msra.mxu0 0.0
  %1726 = vmatprep.subr.mxu0 0.0
  %1727 = vmatpush1.msra.mxu0 0.0
  %1728 = vmatprep.subr.mxu0 0.0
  %1729 = vmatpush1.msra.mxu0 0.0
  %1730 = vmatprep.subr.mxu0 0.0
  %1731 = vmatpush1.msra.mxu0 0.0
  %1732 = vmatprep.subr.mxu0 0.0
  %1733 = vmatpush1.msra.mxu0 0.0
  %1734 = vmatprep.subr.mxu0 0.0
  %1735 = vmatpush1.msra.mxu0 0.0
  %1736 = vmatprep.subr.mxu0 0.0
  %1737 = vmatpush1.msra.mxu0 0.0
  %1738 = vmatprep.subr.mxu0 0.0
  %1739 = vmatpush1.msra.mxu0 0.0
  %1740 = vmatprep.subr.mxu0 0.0
  %1741 = vmatpush1.msra.mxu0 0.0
  %1742 = vmatprep.subr.mxu0 0.0
  %1743 = vmatpush1.msra.mxu0 0.0
  %1744 = vmatprep.subr.mxu0 0.0
  %1745 = vmatpush1.msra.mxu0 0.0
  %1746 = vmatprep.subr.mxu0 0.0
  %1747 = vmatpush1.msra.mxu0 0.0
  %1748 = vmatprep.mubr.f32.mxu0 0.0
  %1749 = vmatmul.mubr.f32.gmra.mrb[0].mxu0 %v1682
  %v1750 = vpop.f32.mrb[0].mxu0
  %v1751 = vadd.f32 0.0, %v1750
  %v1752 = vpop.f32.mrb[0].mxu0
  %1753 = vdwg.mxu0
  %v1755 = vrot.slane %v1751, 2
  %v1757 = vadd.f32 %v194, %v1755
  %v1759 = vrot.slane %v1677, 2
  %1760 = vrot.lane.b32.xlu0 %v1759, 32
  %v1761 = vpop.permute.xlu0 %1760
  %v1762 = vsel %vm206, %v1761, 0
  %1764 = vmatprep.subr.mxu0 0.0
  %1765 = vmatpush1.msra.mxu0 %v202
  %1766 = vmatprep.subr.mxu0 0.0
  %1767 = vmatpush1.msra.mxu0 %v203
  %1768 = vmatprep.subr.mxu0 0.0
  %1769 = vmatpush1.msra.mxu0 %v204
  %1770 = vmatprep.subr.mxu0 0.0
  %1771 = vmatpush1.msra.mxu0 %v205
  %1772 = vmatprep.subr.mxu0 0.0
  %1773 = vmatpush1.msra.mxu0 0.0
  %1774 = vmatprep.subr.mxu0 0.0
  %1775 = vmatpush1.msra.mxu0 0.0
  %1776 = vmatprep.subr.mxu0 0.0
  %1777 = vmatpush1.msra.mxu0 0.0
  %1778 = vmatprep.subr.mxu0 0.0
  %1779 = vmatpush1.msra.mxu0 0.0
  %1780 = vmatprep.subr.mxu0 0.0
  %1781 = vmatpush1.msra.mxu0 0.0
  %1782 = vmatprep.subr.mxu0 0.0
  %1783 = vmatpush1.msra.mxu0 0.0
  %1784 = vmatprep.subr.mxu0 0.0
  %1785 = vmatpush1.msra.mxu0 0.0
  %1786 = vmatprep.subr.mxu0 0.0
  %1787 = vmatpush1.msra.mxu0 0.0
  %1788 = vmatprep.subr.mxu0 0.0
  %1789 = vmatpush1.msra.mxu0 0.0
  %1790 = vmatprep.subr.mxu0 0.0
  %1791 = vmatpush1.msra.mxu0 0.0
  %1792 = vmatprep.subr.mxu0 0.0
  %1793 = vmatpush1.msra.mxu0 0.0
  %1794 = vmatprep.subr.mxu0 0.0
  %1795 = vmatpush1.msra.mxu0 0.0
  %1796 = vmatprep.subr.mxu0 0.0
  %1797 = vmatpush1.msra.mxu0 0.0
  %1798 = vmatprep.subr.mxu0 0.0
  %1799 = vmatpush1.msra.mxu0 0.0
  %1800 = vmatprep.subr.mxu0 0.0
  %1801 = vmatpush1.msra.mxu0 0.0
  %1802 = vmatprep.subr.mxu0 0.0
  %1803 = vmatpush1.msra.mxu0 0.0
  %1804 = vmatprep.subr.mxu0 0.0
  %1805 = vmatpush1.msra.mxu0 0.0
  %1806 = vmatprep.subr.mxu0 0.0
  %1807 = vmatpush1.msra.mxu0 0.0
  %1808 = vmatprep.subr.mxu0 0.0
  %1809 = vmatpush1.msra.mxu0 0.0
  %1810 = vmatprep.subr.mxu0 0.0
  %1811 = vmatpush1.msra.mxu0 0.0
  %1812 = vmatprep.subr.mxu0 0.0
  %1813 = vmatpush1.msra.mxu0 0.0
  %1814 = vmatprep.subr.mxu0 0.0
  %1815 = vmatpush1.msra.mxu0 0.0
  %1816 = vmatprep.subr.mxu0 0.0
  %1817 = vmatpush1.msra.mxu0 0.0
  %1818 = vmatprep.subr.mxu0 0.0
  %1819 = vmatpush1.msra.mxu0 0.0
  %1820 = vmatprep.subr.mxu0 0.0
  %1821 = vmatpush1.msra.mxu0 0.0
  %1822 = vmatprep.subr.mxu0 0.0
  %1823 = vmatpush1.msra.mxu0 0.0
  %1824 = vmatprep.subr.mxu0 0.0
  %1825 = vmatpush1.msra.mxu0 0.0
  %1826 = vmatprep.subr.mxu0 0.0
  %1827 = vmatpush1.msra.mxu0 0.0
  %1828 = vmatprep.mubr.f32.mxu0 0.0
  %1829 = vmatmul.mubr.f32.gmra.mrb[0].mxu0 %v1762
  %v1830 = vpop.f32.mrb[0].mxu0
  %v1831 = vadd.f32 0.0, %v1830
  %v1832 = vpop.f32.mrb[0].mxu0
  %1833 = vdwg.mxu0
  %v1834 = vadd.f32 %v190, %v1831
  %v1835 = vxor.u32 %v1757, 2147483648
  %v1836 = vmul.f32 %v1835, 1.442695
  %v1837 = vpow.pop %v1836
  %v1838 = vadd.f32 %v1837, 1.0
  %v1839 = vrcp.pop %v1838
  %v1840 = vmul.f32 1.0, %v1839
  %v1841 = vtanh.pop %v1757
  %v1843 = vrot.slane %v1644, 6
  %v1845 = vmul.f32 %v1840, %v1843
  %1847 = vrot.lane.b32.xlu0 %v1841, 64
  %v1848 = vpop.permute.xlu0 %1847
  %v1850 = vmul.f32 %v1840, %v1848
  %1852 = vrot.lane.b32.xlu0 %v1850, 32
  %v1853 = vpop.permute.xlu0 %1852
  %v1855 = vadd.f32 %v1845, %v1853
  %v1856 = vtanh.pop %v1855
  %1858 = vrot.lane.b32.xlu0 %v1856, 64
  %v1859 = vpop.permute.xlu0 %1858
  %v1861 = vmul.f32 %v1840, %v1859
  %v1862 = vxor.u32 %v1834, 2147483648
  %v1863 = vmul.f32 %v1862, 1.442695
  %v1864 = vpow.pop %v1863
  %v1865 = vadd.f32 %v1864, 1.0
  %v1866 = vrcp.pop %v1865
  %v1867 = vmul.f32 1.0, %v1866
  %v1868 = vtanh.pop %v1834
  %v1870 = vrot.slane %v1671, 2
  %v1872 = vmul.f32 %v1867, %v1870
  %1874 = vrot.lane.b32.xlu0 %v1868, 64
  %v1875 = vpop.permute.xlu0 %1874
  %v1877 = vmul.f32 %v1867, %v1875
  %1879 = vrot.lane.b32.xlu0 %v1877, 32
  %v1880 = vpop.permute.xlu0 %1879
  %v1882 = vadd.f32 %v1872, %v1880
  %v1883 = vtanh.pop %v1882
  %1885 = vrot.lane.b32.xlu0 %v1883, 64
  %v1886 = vpop.permute.xlu0 %1885
  %v1888 = vmul.f32 %v1867, %v1886
  %vm1889 = vcmask 1041408
  %v1890 = vsel %vm1889, %v378, %v588
  %vm1891 = vcmask 1043456
  %v1892 = vsel %vm1891, %v1890, %v802
  %vm1893 = vcmask 1045504
  %v1894 = vsel %vm1893, %v1892, %v1013
  %v1895 = vsel %vm1889, %v1223, %v1436
  %v1896 = vsel %vm1891, %v1895, %v1650
  %v1897 = vsel %vm1893, %v1896, %v1861
  %v1898 = vsel %vm1889, %v1888, %v1677
  %v1899 = vsel %vm1891, %v1898, %v1463
  %v1900 = vsel %vm1893, %v1899, %v1250
  %v1901 = vsel %vm1889, %v1040, %v829
  %v1902 = vsel %vm1891, %v1901, %v615
  %v1903 = vsel %vm1893, %v1902, %v402
  %v1904 = vld [vmem:[%s1 + $0xe0] sm:$0xff]
  %v1905 = vld [vmem:[%s1 + $0xe8] sm:$0xff]
  %v1906 = vld [vmem:[%s1 + $0xf0] sm:$0xff]
  %v1907 = vld [vmem:[%s1 + $0xf8] sm:$0xff]
  %v1908 = vld [vmem:[%s1 + $0x100] sm:$0xff]
  %v1909 = vld [vmem:[%s1 + $0x108] sm:$0xff]
  %v1910 = vld [vmem:[%s1 + $0x110] sm:$0xff]
  %v1911 = vld [vmem:[%s1 + $0x118] sm:$0xff]
  %v1912 = vld [vmem:[%s1 + $0x120] sm:$0xff]
  %v1913 = vld [vmem:[%s1 + $0x128] sm:$0xff]
  %v1914 = vld [vmem:[%s1 + $0x130] sm:$0xff]
  %v1915 = vld [vmem:[%s1 + $0x138] sm:$0xff]
  %v1916 = vld [vmem:[%s1 + $0x140] sm:$0xff]
  %v1917 = vld [vmem:[%s1 + $0x148] sm:$0xff]
  %v1918 = vld [vmem:[%s1 + $0x150] sm:$0xff]
  %v1919 = vld [vmem:[%s1 + $0x158] sm:$0xff]
  %1922 = vrot.lane.b32.xlu0 %v1900, 32
  %v1923 = vpop.permute.xlu0 %1922
  %1924 = vrot.lane.b32.xlu0 %v1903, 32
  %v1925 = vpop.permute.xlu0 %1924
  %v1926 = vsel %vm206, %v1923, 0
  %v1928 = vsel %vm206, %v1925, 0
  %1930 = vmatprep.subr.mxu0 %v1913
  %1931 = vmatpush1.msra.mxu0 %v1912
  %1932 = vmatprep.subr.mxu0 %v1915
  %1933 = vmatpush1.msra.mxu0 %v1914
  %1934 = vmatprep.subr.mxu0 %v1917
  %1935 = vmatpush1.msra.mxu0 %v1916
  %1936 = vmatprep.subr.mxu0 %v1919
  %1937 = vmatpush1.msra.mxu0 %v1918
  %1938 = vmatprep.subr.mxu0 0.0
  %1939 = vmatpush1.msra.mxu0 0.0
  %1940 = vmatprep.subr.mxu0 0.0
  %1941 = vmatpush1.msra.mxu0 0.0
  %1942 = vmatprep.subr.mxu0 0.0
  %1943 = vmatpush1.msra.mxu0 0.0
  %1944 = vmatprep.subr.mxu0 0.0
  %1945 = vmatpush1.msra.mxu0 0.0
  %1946 = vmatprep.subr.mxu0 0.0
  %1947 = vmatpush1.msra.mxu0 0.0
  %1948 = vmatprep.subr.mxu0 0.0
  %1949 = vmatpush1.msra.mxu0 0.0
  %1950 = vmatprep.subr.mxu0 0.0
  %1951 = vmatpush1.msra.mxu0 0.0
  %1952 = vmatprep.subr.mxu0 0.0
  %1953 = vmatpush1.msra.mxu0 0.0
  %1954 = vmatprep.subr.mxu0 0.0
  %1955 = vmatpush1.msra.mxu0 0.0
  %1956 = vmatprep.subr.mxu0 0.0
  %1957 = vmatpush1.msra.mxu0 0.0
  %1958 = vmatprep.subr.mxu0 0.0
  %1959 = vmatpush1.msra.mxu0 0.0
  %1960 = vmatprep.subr.mxu0 0.0
  %1961 = vmatpush1.msra.mxu0 0.0
  %1962 = vmatprep.subr.mxu0 0.0
  %1963 = vmatpush1.msra.mxu0 0.0
  %1964 = vmatprep.subr.mxu0 0.0
  %1965 = vmatpush1.msra.mxu0 0.0
  %1966 = vmatprep.subr.mxu0 0.0
  %1967 = vmatpush1.msra.mxu0 0.0
  %1968 = vmatprep.subr.mxu0 0.0
  %1969 = vmatpush1.msra.mxu0 0.0
  %1970 = vmatprep.subr.mxu0 0.0
  %1971 = vmatpush1.msra.mxu0 0.0
  %1972 = vmatprep.subr.mxu0 0.0
  %1973 = vmatpush1.msra.mxu0 0.0
  %1974 = vmatprep.subr.mxu0 0.0
  %1975 = vmatpush1.msra.mxu0 0.0
  %1976 = vmatprep.subr.mxu0 0.0
  %1977 = vmatpush1.msra.mxu0 0.0
  %1978 = vmatprep.subr.mxu0 0.0
  %1979 = vmatpush1.msra.mxu0 0.0
  %1980 = vmatprep.subr.mxu0 0.0
  %1981 = vmatpush1.msra.mxu0 0.0
  %1982 = vmatprep.subr.mxu0 0.0
  %1983 = vmatpush1.msra.mxu0 0.0
  %1984 = vmatprep.subr.mxu0 0.0
  %1985 = vmatpush1.msra.mxu0 0.0
  %1986 = vmatprep.subr.mxu0 0.0
  %1987 = vmatpush1.msra.mxu0 0.0
  %1988 = vmatprep.subr.mxu0 0.0
  %1989 = vmatpush1.msra.mxu0 0.0
  %1990 = vmatprep.subr.mxu0 0.0
  %1991 = vmatpush1.msra.mxu0 0.0
  %1992 = vmatprep.subr.mxu0 0.0
  %1993 = vmatpush1.msra.mxu0 0.0
  %1994 = vmatprep.mubr.f32.mxu0 0.0
  %1995 = vmatmul.mubr.f32.gmra.mrb[0].mxu0 %v1926
  %v1996 = vpop.f32.mrb[0].mxu0
  %v1997 = vadd.f32 0.0, %v1996
  %v1998 = vpop.f32.mrb[0].mxu0
  %v1999 = vadd.f32 0.0, %v1998
  %2000 = vmatprep.mubr.f32.mxu0 0.0
  %2001 = vmatmul.mubr.f32.gmra.mrb[0].mxu0 %v1928
  %v2002 = vpop.f32.mrb[0].mxu0
  %v2003 = vadd.f32 0.0, %v2002
  %v2004 = vpop.f32.mrb[0].mxu0
  %v2005 = vadd.f32 0.0, %v2004
  %2006 = vdwg.mxu0
  %2009 = vrot.lane.b32.xlu0 %v1894, 32
  %v2010 = vpop.permute.xlu0 %2009
  %2011 = vrot.lane.b32.xlu0 %v1897, 32
  %v2012 = vpop.permute.xlu0 %2011
  %v2013 = vsel %vm206, %v2010, 0
  %v2015 = vsel %vm206, %v2012, 0
  %2017 = vmatprep.subr.mxu0 %v1905
  %2018 = vmatpush1.msra.mxu0 %v1904
  %2019 = vmatprep.subr.mxu0 %v1907
  %2020 = vmatpush1.msra.mxu0 %v1906
  %2021 = vmatprep.subr.mxu0 %v1909
  %2022 = vmatpush1.msra.mxu0 %v1908
  %2023 = vmatprep.subr.mxu0 %v1911
  %2024 = vmatpush1.msra.mxu0 %v1910
  %2025 = vmatprep.subr.mxu0 0.0
  %2026 = vmatpush1.msra.mxu0 0.0
  %2027 = vmatprep.subr.mxu0 0.0
  %2028 = vmatpush1.msra.mxu0 0.0
  %2029 = vmatprep.subr.mxu0 0.0
  %2030 = vmatpush1.msra.mxu0 0.0
  %2031 = vmatprep.subr.mxu0 0.0
  %2032 = vmatpush1.msra.mxu0 0.0
  %2033 = vmatprep.subr.mxu0 0.0
  %2034 = vmatpush1.msra.mxu0 0.0
  %2035 = vmatprep.subr.mxu0 0.0
  %2036 = vmatpush1.msra.mxu0 0.0
  %2037 = vmatprep.subr.mxu0 0.0
  %2038 = vmatpush1.msra.mxu0 0.0
  %2039 = vmatprep.subr.mxu0 0.0
  %2040 = vmatpush1.msra.mxu0 0.0
  %2041 = vmatprep.subr.mxu0 0.0
  %2042 = vmatpush1.msra.mxu0 0.0
  %2043 = vmatprep.subr.mxu0 0.0
  %2044 = vmatpush1.msra.mxu0 0.0
  %2045 = vmatprep.subr.mxu0 0.0
  %2046 = vmatpush1.msra.mxu0 0.0
  %2047 = vmatprep.subr.mxu0 0.0
  %2048 = vmatpush1.msra.mxu0 0.0
  %2049 = vmatprep.subr.mxu0 0.0
  %2050 = vmatpush1.msra.mxu0 0.0
  %2051 = vmatprep.subr.mxu0 0.0
  %2052 = vmatpush1.msra.mxu0 0.0
  %2053 = vmatprep.subr.mxu0 0.0
  %2054 = vmatpush1.msra.mxu0 0.0
  %2055 = vmatprep.subr.mxu0 0.0
  %2056 = vmatpush1.msra.mxu0 0.0
  %2057 = vmatprep.subr.mxu0 0.0
  %2058 = vmatpush1.msra.mxu0 0.0
  %2059 = vmatprep.subr.mxu0 0.0
  %2060 = vmatpush1.msra.mxu0 0.0
  %2061 = vmatprep.subr.mxu0 0.0
  %2062 = vmatpush1.msra.mxu0 0.0
  %2063 = vmatprep.subr.mxu0 0.0
  %2064 = vmatpush1.msra.mxu0 0.0
  %2065 = vmatprep.subr.mxu0 0.0
  %2066 = vmatpush1.msra.mxu0 0.0
  %2067 = vmatprep.subr.mxu0 0.0
  %2068 = vmatpush1.msra.mxu0 0.0
  %2069 = vmatprep.subr.mxu0 0.0
  %2070 = vmatpush1.msra.mxu0 0.0
  %2071 = vmatprep.subr.mxu0 0.0
  %2072 = vmatpush1.msra.mxu0 0.0
  %2073 = vmatprep.subr.mxu0 0.0
  %2074 = vmatpush1.msra.mxu0 0.0
  %2075 = vmatprep.subr.mxu0 0.0
  %2076 = vmatpush1.msra.mxu0 0.0
  %2077 = vmatprep.subr.mxu0 0.0
  %2078 = vmatpush1.msra.mxu0 0.0
  %2079 = vmatprep.subr.mxu0 0.0
  %2080 = vmatpush1.msra.mxu0 0.0
  %2081 = vmatprep.mubr.f32.mxu0 0.0
  %2082 = vmatmul.mubr.f32.gmra.mrb[0].mxu0 %v2013
  %v2083 = vpop.f32.mrb[0].mxu0
  %v2084 = vadd.f32 %v1997, %v2083
  %v2085 = vpop.f32.mrb[0].mxu0
  %v2086 = vadd.f32 %v1999, %v2085
  %2087 = vmatprep.mubr.f32.mxu0 0.0
  %2088 = vmatmul.mubr.f32.gmra.mrb[0].mxu0 %v2015
  %v2089 = vpop.f32.mrb[0].mxu0
  %v2090 = vadd.f32 %v2003, %v2089
  %v2091 = vpop.f32.mrb[0].mxu0
  %v2092 = vadd.f32 %v2005, %v2091
  %2093 = vdwg.mxu0
  %s2094 = scalar_lea.vmem %s1, 352
  %v2095 = vld [vmem:[%s2094] ss:$8 sm:$0x3]
  %v2097 = vlaneseq
  %v2098 = vshrl.u32 %v2097, 7
  %v2099 = vsub.s32 0, %v2098
  %v2100 = vrot.slane %v2095, %v2099
  %v2101 = vlaneseq
  %v2102 = vshrl.u32 %v2101, 7
  %v2103 = vsub.s32 1, %v2102
  %v2104 = vrot.slane %v2095, %v2103
  %v2107 = vadd.f32 %v2084, %v2100
  %v2108 = vadd.f32 %v2086, %v2104
  %v2109 = vadd.f32 %v2090, %v2100
  %v2110 = vadd.f32 %v2092, %v2104
  %v2111 = vld [vmem:[%s1 + $0x170] sm:$0xff]
  %v2112 = vld [vmem:[%s1 + $0x180] sm:$0xff]
  %v2113 = vld [vmem:[%s1 + $0x190] sm:$0xff]
  %v2114 = vld [vmem:[%s1 + $0x1a0] sm:$0xff]
  %v2115 = vld [vmem:[%s1 + $0x1b0] sm:$0xff]
  %v2116 = vld [vmem:[%s1 + $0x1c0] sm:$0xff]
  %v2117 = vld [vmem:[%s1 + $0x1d0] sm:$0xff]
  %v2118 = vld [vmem:[%s1 + $0x1e0] sm:$0xff]
  %2119 = vmatprep.subr.mxu0 0.0
  %2120 = vmatpush1.msra.mxu0 %v2111
  %2121 = vmatprep.subr.mxu0 0.0
  %2122 = vmatpush1.msra.mxu0 %v2112
  %2123 = vmatprep.subr.mxu0 0.0
  %2124 = vmatpush1.msra.mxu0 %v2113
  %2125 = vmatprep.subr.mxu0 0.0
  %2126 = vmatpush1.msra.mxu0 %v2114
  %2127 = vmatprep.subr.mxu0 0.0
  %2128 = vmatpush1.msra.mxu0 0.0
  %2129 = vmatprep.subr.mxu0 0.0
  %2130 = vmatpush1.msra.mxu0 0.0
  %2131 = vmatprep.subr.mxu0 0.0
  %2132 = vmatpush1.msra.mxu0 0.0
  %2133 = vmatprep.subr.mxu0 0.0
  %2134 = vmatpush1.msra.mxu0 0.0
  %2135 = vmatprep.subr.mxu0 0.0
  %2136 = vmatpush1.msra.mxu0 0.0
  %2137 = vmatprep.subr.mxu0 0.0
  %2138 = vmatpush1.msra.mxu0 0.0
  %2139 = vmatprep.subr.mxu0 0.0
  %2140 = vmatpush1.msra.mxu0 0.0
  %2141 = vmatprep.subr.mxu0 0.0
  %2142 = vmatpush1.msra.mxu0 0.0
  %2143 = vmatprep.subr.mxu0 0.0
  %2144 = vmatpush1.msra.mxu0 0.0
  %2145 = vmatprep.subr.mxu0 0.0
  %2146 = vmatpush1.msra.mxu0 0.0
  %2147 = vmatprep.subr.mxu0 0.0
  %2148 = vmatpush1.msra.mxu0 0.0
  %2149 = vmatprep.subr.mxu0 0.0
  %2150 = vmatpush1.msra.mxu0 0.0
  %2151 = vmatprep.subr.mxu0 0.0
  %2152 = vmatpush1.msra.mxu0 0.0
  %2153 = vmatprep.subr.mxu0 0.0
  %2154 = vmatpush1.msra.mxu0 0.0
  %2155 = vmatprep.subr.mxu0 0.0
  %2156 = vmatpush1.msra.mxu0 0.0
  %2157 = vmatprep.subr.mxu0 0.0
  %2158 = vmatpush1.msra.mxu0 0.0
  %2159 = vmatprep.subr.mxu0 0.0
  %2160 = vmatpush1.msra.mxu0 0.0
  %2161 = vmatprep.subr.mxu0 0.0
  %2162 = vmatpush1.msra.mxu0 0.0
  %2163 = vmatprep.subr.mxu0 0.0
  %2164 = vmatpush1.msra.mxu0 0.0
  %2165 = vmatprep.subr.mxu0 0.0
  %2166 = vmatpush1.msra.mxu0 0.0
  %2167 = vmatprep.subr.mxu0 0.0
  %2168 = vmatpush1.msra.mxu0 0.0
  %2169 = vmatprep.subr.mxu0 0.0
  %2170 = vmatpush1.msra.mxu0 0.0
  %2171 = vmatprep.subr.mxu0 0.0
  %2172 = vmatpush1.msra.mxu0 0.0
  %2173 = vmatprep.subr.mxu0 0.0
  %2174 = vmatpush1.msra.mxu0 0.0
  %2175 = vmatprep.subr.mxu0 0.0
  %2176 = vmatpush1.msra.mxu0 0.0
  %2177 = vmatprep.subr.mxu0 0.0
  %2178 = vmatpush1.msra.mxu0 0.0
  %2179 = vmatprep.subr.mxu0 0.0
  %2180 = vmatpush1.msra.mxu0 0.0
  %2181 = vmatprep.subr.mxu0 0.0
  %2182 = vmatpush1.msra.mxu0 0.0
  %2183 = vmatprep.mubr.f32.mxu0 0.0
  %2184 = vmatmul.mubr.f32.gmra.mrb[0].mxu0 %v208
  %v2185 = vpop.f32.mrb[0].mxu0
  %v2186 = vadd.f32 0.0, %v2185
  %v2187 = vpop.f32.mrb[0].mxu0
  %2188 = vdwg.mxu0
  %v2189 = vadd.f32 %v2107, %v2186
  %2190 = vmatprep.subr.mxu0 0.0
  %2191 = vmatpush1.msra.mxu0 %v2115
  %2192 = vmatprep.subr.mxu0 0.0
  %2193 = vmatpush1.msra.mxu0 %v2116
  %2194 = vmatprep.subr.mxu0 0.0
  %2195 = vmatpush1.msra.mxu0 %v2117
  %2196 = vmatprep.subr.mxu0 0.0
  %2197 = vmatpush1.msra.mxu0 %v2118
  %2198 = vmatprep.subr.mxu0 0.0
  %2199 = vmatpush1.msra.mxu0 0.0
  %2200 = vmatprep.subr.mxu0 0.0
  %2201 = vmatpush1.msra.mxu0 0.0
  %2202 = vmatprep.subr.mxu0 0.0
  %2203 = vmatpush1.msra.mxu0 0.0
  %2204 = vmatprep.subr.mxu0 0.0
  %2205 = vmatpush1.msra.mxu0 0.0
  %2206 = vmatprep.subr.mxu0 0.0
  %2207 = vmatpush1.msra.mxu0 0.0
  %2208 = vmatprep.subr.mxu0 0.0
  %2209 = vmatpush1.msra.mxu0 0.0
  %2210 = vmatprep.subr.mxu0 0.0
  %2211 = vmatpush1.msra.mxu0 0.0
  %2212 = vmatprep.subr.mxu0 0.0
  %2213 = vmatpush1.msra.mxu0 0.0
  %2214 = vmatprep.subr.mxu0 0.0
  %2215 = vmatpush1.msra.mxu0 0.0
  %2216 = vmatprep.subr.mxu0 0.0
  %2217 = vmatpush1.msra.mxu0 0.0
  %2218 = vmatprep.subr.mxu0 0.0
  %2219 = vmatpush1.msra.mxu0 0.0
  %2220 = vmatprep.subr.mxu0 0.0
  %2221 = vmatpush1.msra.mxu0 0.0
  %2222 = vmatprep.subr.mxu0 0.0
  %2223 = vmatpush1.msra.mxu0 0.0
  %2224 = vmatprep.subr.mxu0 0.0
  %2225 = vmatpush1.msra.mxu0 0.0
  %2226 = vmatprep.subr.mxu0 0.0
  %2227 = vmatpush1.msra.mxu0 0.0
  %2228 = vmatprep.subr.mxu0 0.0
  %2229 = vmatpush1.msra.mxu0 0.0
  %2230 = vmatprep.subr.mxu0 0.0
  %2231 = vmatpush1.msra.mxu0 0.0
  %2232 = vmatprep.subr.mxu0 0.0
  %2233 = vmatpush1.msra.mxu0 0.0
  %2234 = vmatprep.subr.mxu0 0.0
  %2235 = vmatpush1.msra.mxu0 0.0
  %2236 = vmatprep.subr.mxu0 0.0
  %2237 = vmatpush1.msra.mxu0 0.0
  %2238 = vmatprep.subr.mxu0 0.0
  %2239 = vmatpush1.msra.mxu0 0.0
  %2240 = vmatprep.subr.mxu0 0.0
  %2241 = vmatpush1.msra.mxu0 0.0
  %2242 = vmatprep.subr.mxu0 0.0
  %2243 = vmatpush1.msra.mxu0 0.0
  %2244 = vmatprep.subr.mxu0 0.0
  %2245 = vmatpush1.msra.mxu0 0.0
  %2246 = vmatprep.subr.mxu0 0.0
  %2247 = vmatpush1.msra.mxu0 0.0
  %2248 = vmatprep.subr.mxu0 0.0
  %2249 = vmatpush1.msra.mxu0 0.0
  %2250 = vmatprep.subr.mxu0 0.0
  %2251 = vmatpush1.msra.mxu0 0.0
  %2252 = vmatprep.subr.mxu0 0.0
  %2253 = vmatpush1.msra.mxu0 0.0
  %2254 = vmatprep.mubr.f32.mxu0 0.0
  %2255 = vmatmul.mubr.f32.gmra.mrb[0].mxu0 %v208
  %v2256 = vpop.f32.mrb[0].mxu0
  %v2257 = vadd.f32 0.0, %v2256
  %v2258 = vpop.f32.mrb[0].mxu0
  %2259 = vdwg.mxu0
  %v2261 = vrot.slane %v2257, 2
  %v2263 = vadd.f32 %v2110, %v2261
  %v2264 = vxor.u32 %v2189, 2147483648
  %v2265 = vmul.f32 %v2264, 1.442695
  %v2266 = vpow.pop %v2265
  %v2267 = vadd.f32 %v2266, 1.0
  %v2268 = vrcp.pop %v2267
  %v2269 = vmul.f32 1.0, %v2268
  %v2270 = vtanh.pop %v2189
  %v2271 = vmul.f32 %v2269, 0.0
  %2273 = vrot.lane.b32.xlu0 %v2270, 64
  %v2274 = vpop.permute.xlu0 %2273
  %v2276 = vmul.f32 %v2269, %v2274
  %2278 = vrot.lane.b32.xlu0 %v2276, 32
  %v2279 = vpop.permute.xlu0 %2278
  %v2281 = vadd.f32 %v2271, %v2279
  %v2282 = vtanh.pop %v2281
  %2284 = vrot.lane.b32.xlu0 %v2282, 64
  %v2285 = vpop.permute.xlu0 %2284
  %v2287 = vmul.f32 %v2269, %v2285
  %v2288 = vxor.u32 %v2263, 2147483648
  %v2289 = vmul.f32 %v2288, 1.442695
  %v2290 = vpow.pop %v2289
  %v2291 = vadd.f32 %v2290, 1.0
  %v2292 = vrcp.pop %v2291
  %v2293 = vmul.f32 1.0, %v2292
  %v2294 = vtanh.pop %v2263
  %v2295 = vmul.f32 %v2293, 0.0
  %2297 = vrot.lane.b32.xlu0 %v2294, 64
  %v2298 = vpop.permute.xlu0 %2297
  %v2300 = vmul.f32 %v2293, %v2298
  %2302 = vrot.lane.b32.xlu0 %v2300, 32
  %v2303 = vpop.permute.xlu0 %2302
  %v2305 = vadd.f32 %v2295, %v2303
  %v2306 = vtanh.pop %v2305
  %2308 = vrot.lane.b32.xlu0 %v2306, 64
  %v2309 = vpop.permute.xlu0 %2308
  %v2311 = vmul.f32 %v2293, %v2309
  %2313 = vrot.lane.b32.xlu0 %v2287, 32
  %v2314 = vpop.permute.xlu0 %2313
  %v2315 = vsel %vm206, %v2314, 0
  %2317 = vmatprep.subr.mxu0 0.0
  %2318 = vmatpush1.msra.mxu0 %v2111
  %2319 = vmatprep.subr.mxu0 0.0
  %2320 = vmatpush1.msra.mxu0 %v2112
  %2321 = vmatprep.subr.mxu0 0.0
  %2322 = vmatpush1.msra.mxu0 %v2113
  %2323 = vmatprep.subr.mxu0 0.0
  %2324 = vmatpush1.msra.mxu0 %v2114
  %2325 = vmatprep.subr.mxu0 0.0
  %2326 = vmatpush1.msra.mxu0 0.0
  %2327 = vmatprep.subr.mxu0 0.0
  %2328 = vmatpush1.msra.mxu0 0.0
  %2329 = vmatprep.subr.mxu0 0.0
  %2330 = vmatpush1.msra.mxu0 0.0
  %2331 = vmatprep.subr.mxu0 0.0
  %2332 = vmatpush1.msra.mxu0 0.0
  %2333 = vmatprep.subr.mxu0 0.0
  %2334 = vmatpush1.msra.mxu0 0.0
  %2335 = vmatprep.subr.mxu0 0.0
  %2336 = vmatpush1.msra.mxu0 0.0
  %2337 = vmatprep.subr.mxu0 0.0
  %2338 = vmatpush1.msra.mxu0 0.0
  %2339 = vmatprep.subr.mxu0 0.0
  %2340 = vmatpush1.msra.mxu0 0.0
  %2341 = vmatprep.subr.mxu0 0.0
  %2342 = vmatpush1.msra.mxu0 0.0
  %2343 = vmatprep.subr.mxu0 0.0
  %2344 = vmatpush1.msra.mxu0 0.0
  %2345 = vmatprep.subr.mxu0 0.0
  %2346 = vmatpush1.msra.mxu0 0.0
  %2347 = vmatprep.subr.mxu0 0.0
  %2348 = vmatpush1.msra.mxu0 0.0
  %2349 = vmatprep.subr.mxu0 0.0
  %2350 = vmatpush1.msra.mxu0 0.0
  %2351 = vmatprep.subr.mxu0 0.0
  %2352 = vmatpush1.msra.mxu0 0.0
  %2353 = vmatprep.subr.mxu0 0.0
  %2354 = vmatpush1.msra.mxu0 0.0
  %2355 = vmatprep.subr.mxu0 0.0
  %2356 = vmatpush1.msra.mxu0 0.0
  %2357 = vmatprep.subr.mxu0 0.0
  %2358 = vmatpush1.msra.mxu0 0.0
  %2359 = vmatprep.subr.mxu0 0.0
  %2360 = vmatpush1.msra.mxu0 0.0
  %2361 = vmatprep.subr.mxu0 0.0
  %2362 = vmatpush1.msra.mxu0 0.0
  %2363 = vmatprep.subr.mxu0 0.0
  %2364 = vmatpush1.msra.mxu0 0.0
  %2365 = vmatprep.subr.mxu0 0.0
  %2366 = vmatpush1.msra.mxu0 0.0
  %2367 = vmatprep.subr.mxu0 0.0
  %2368 = vmatpush1.msra.mxu0 0.0
  %2369 = vmatprep.subr.mxu0 0.0
  %2370 = vmatpush1.msra.mxu0 0.0
  %2371 = vmatprep.subr.mxu0 0.0
  %2372 = vmatpush1.msra.mxu0 0.0
  %2373 = vmatprep.subr.mxu0 0.0
  %2374 = vmatpush1.msra.mxu0 0.0
  %2375 = vmatprep.subr.mxu0 0.0
  %2376 = vmatpush1.msra.mxu0 0.0
  %2377 = vmatprep.subr.mxu0 0.0
  %2378 = vmatpush1.msra.mxu0 0.0
  %2379 = vmatprep.subr.mxu0 0.0
  %2380 = vmatpush1.msra.mxu0 0.0
  %2381 = vmatprep.mubr.f32.mxu0 0.0
  %2382 = vmatmul.mubr.f32.gmra.mrb[0].mxu0 %v2315
  %v2383 = vpop.f32.mrb[0].mxu0
  %v2384 = vadd.f32 0.0, %v2383
  %v2385 = vpop.f32.mrb[0].mxu0
  %2386 = vdwg.mxu0
  %v2388 = vrot.slane %v2384, 6
  %v2390 = vadd.f32 %v2107, %v2388
  %v2392 = vrot.slane %v2311, 6
  %2393 = vrot.lane.b32.xlu0 %v2392, 32
  %v2394 = vpop.permute.xlu0 %2393
  %v2395 = vsel %vm206, %v2394, 0
  %2397 = vmatprep.subr.mxu0 0.0
  %2398 = vmatpush1.msra.mxu0 %v2115
  %2399 = vmatprep.subr.mxu0 0.0
  %2400 = vmatpush1.msra.mxu0 %v2116
  %2401 = vmatprep.subr.mxu0 0.0
  %2402 = vmatpush1.msra.mxu0 %v2117
  %2403 = vmatprep.subr.mxu0 0.0
  %2404 = vmatpush1.msra.mxu0 %v2118
  %2405 = vmatprep.subr.mxu0 0.0
  %2406 = vmatpush1.msra.mxu0 0.0
  %2407 = vmatprep.subr.mxu0 0.0
  %2408 = vmatpush1.msra.mxu0 0.0
  %2409 = vmatprep.subr.mxu0 0.0
  %2410 = vmatpush1.msra.mxu0 0.0
  %2411 = vmatprep.subr.mxu0 0.0
  %2412 = vmatpush1.msra.mxu0 0.0
  %2413 = vmatprep.subr.mxu0 0.0
  %2414 = vmatpush1.msra.mxu0 0.0
  %2415 = vmatprep.subr.mxu0 0.0
  %2416 = vmatpush1.msra.mxu0 0.0
  %2417 = vmatprep.subr.mxu0 0.0
  %2418 = vmatpush1.msra.mxu0 0.0
  %2419 = vmatprep.subr.mxu0 0.0
  %2420 = vmatpush1.msra.mxu0 0.0
  %2421 = vmatprep.subr.mxu0 0.0
  %2422 = vmatpush1.msra.mxu0 0.0
  %2423 = vmatprep.subr.mxu0 0.0
  %2424 = vmatpush1.msra.mxu0 0.0
  %2425 = vmatprep.subr.mxu0 0.0
  %2426 = vmatpush1.msra.mxu0 0.0
  %2427 = vmatprep.subr.mxu0 0.0
  %2428 = vmatpush1.msra.mxu0 0.0
  %2429 = vmatprep.subr.mxu0 0.0
  %2430 = vmatpush1.msra.mxu0 0.0
  %2431 = vmatprep.subr.mxu0 0.0
  %2432 = vmatpush1.msra.mxu0 0.0
  %2433 = vmatprep.subr.mxu0 0.0
  %2434 = vmatpush1.msra.mxu0 0.0
  %2435 = vmatprep.subr.mxu0 0.0
  %2436 = vmatpush1.msra.mxu0 0.0
  %2437 = vmatprep.subr.mxu0 0.0
  %2438 = vmatpush1.msra.mxu0 0.0
  %2439 = vmatprep.subr.mxu0 0.0
  %2440 = vmatpush1.msra.mxu0 0.0
  %2441 = vmatprep.subr.mxu0 0.0
  %2442 = vmatpush1.msra.mxu0 0.0
  %2443 = vmatprep.subr.mxu0 0.0
  %2444 = vmatpush1.msra.mxu0 0.0
  %2445 = vmatprep.subr.mxu0 0.0
  %2446 = vmatpush1.msra.mxu0 0.0
  %2447 = vmatprep.subr.mxu0 0.0
  %2448 = vmatpush1.msra.mxu0 0.0
  %2449 = vmatprep.subr.mxu0 0.0
  %2450 = vmatpush1.msra.mxu0 0.0
  %2451 = vmatprep.subr.mxu0 0.0
  %2452 = vmatpush1.msra.mxu0 0.0
  %2453 = vmatprep.subr.mxu0 0.0
  %2454 = vmatpush1.msra.mxu0 0.0
  %2455 = vmatprep.subr.mxu0 0.0
  %2456 = vmatpush1.msra.mxu0 0.0
  %2457 = vmatprep.subr.mxu0 0.0
  %2458 = vmatpush1.msra.mxu0 0.0
  %2459 = vmatprep.subr.mxu0 0.0
  %2460 = vmatpush1.msra.mxu0 0.0
  %2461 = vmatprep.mubr.f32.mxu0 0.0
  %2462 = vmatmul.mubr.f32.gmra.mrb[0].mxu0 %v2395
  %v2463 = vpop.f32.mrb[0].mxu0
  %v2464 = vadd.f32 0.0, %v2463
  %v2465 = vpop.f32.mrb[0].mxu0
  %2466 = vdwg.mxu0
  %v2468 = vrot.slane %v2464, 4
  %v2470 = vadd.f32 %v2110, %v2468
  %v2471 = vxor.u32 %v2390, 2147483648
  %v2472 = vmul.f32 %v2471, 1.442695
  %v2473 = vpow.pop %v2472
  %v2474 = vadd.f32 %v2473, 1.0
  %v2475 = vrcp.pop %v2474
  %v2476 = vmul.f32 1.0, %v2475
  %v2477 = vtanh.pop %v2390
  %v2479 = vrot.slane %v2281, 6
  %v2481 = vmul.f32 %v2476, %v2479
  %2483 = vrot.lane.b32.xlu0 %v2477, 64
  %v2484 = vpop.permute.xlu0 %2483
  %v2486 = vmul.f32 %v2476, %v2484
  %2488 = vrot.lane.b32.xlu0 %v2486, 32
  %v2489 = vpop.permute.xlu0 %2488
  %v2491 = vadd.f32 %v2481, %v2489
  %v2492 = vtanh.pop %v2491
  %2494 = vrot.lane.b32.xlu0 %v2492, 64
  %v2495 = vpop.permute.xlu0 %2494
  %v2497 = vmul.f32 %v2476, %v2495
  %v2498 = vxor.u32 %v2470, 2147483648
  %v2499 = vmul.f32 %v2498, 1.442695
  %v2500 = vpow.pop %v2499
  %v2501 = vadd.f32 %v2500, 1.0
  %v2502 = vrcp.pop %v2501
  %v2503 = vmul.f32 1.0, %v2502
  %v2504 = vtanh.pop %v2470
  %v2506 = vrot.slane %v2305, 2
  %v2508 = vmul.f32 %v2503, %v2506
  %2510 = vrot.lane.b32.xlu0 %v2504, 64
  %v2511 = vpop.permute.xlu0 %2510
  %v2513 = vmul.f32 %v2503, %v2511
  %2515 = vrot.lane.b32.xlu0 %v2513, 32
  %v2516 = vpop.permute.xlu0 %2515
  %v2518 = vadd.f32 %v2508, %v2516
  %v2519 = vtanh.pop %v2518
  %2521 = vrot.lane.b32.xlu0 %v2519, 64
  %v2522 = vpop.permute.xlu0 %2521
  %v2524 = vmul.f32 %v2503, %v2522
  %v2526 = vrot.slane %v2497, 2
  %2527 = vrot.lane.b32.xlu0 %v2526, 32
  %v2528 = vpop.permute.xlu0 %2527
  %v2529 = vsel %vm206, %v2528, 0
  %2531 = vmatprep.subr.mxu0 0.0
  %2532 = vmatpush1.msra.mxu0 %v2111
  %2533 = vmatprep.subr.mxu0 0.0
  %2534 = vmatpush1.msra.mxu0 %v2112
  %2535 = vmatprep.subr.mxu0 0.0
  %2536 = vmatpush1.msra.mxu0 %v2113
  %2537 = vmatprep.subr.mxu0 0.0
  %2538 = vmatpush1.msra.mxu0 %v2114
  %2539 = vmatprep.subr.mxu0 0.0
  %2540 = vmatpush1.msra.mxu0 0.0
  %2541 = vmatprep.subr.mxu0 0.0
  %2542 = vmatpush1.msra.mxu0 0.0
  %2543 = vmatprep.subr.mxu0 0.0
  %2544 = vmatpush1.msra.mxu0 0.0
  %2545 = vmatprep.subr.mxu0 0.0
  %2546 = vmatpush1.msra.mxu0 0.0
  %2547 = vmatprep.subr.mxu0 0.0
  %2548 = vmatpush1.msra.mxu0 0.0
  %2549 = vmatprep.subr.mxu0 0.0
  %2550 = vmatpush1.msra.mxu0 0.0
  %2551 = vmatprep.subr.mxu0 0.0
  %2552 = vmatpush1.msra.mxu0 0.0
  %2553 = vmatprep.subr.mxu0 0.0
  %2554 = vmatpush1.msra.mxu0 0.0
  %2555 = vmatprep.subr.mxu0 0.0
  %2556 = vmatpush1.msra.mxu0 0.0
  %2557 = vmatprep.subr.mxu0 0.0
  %2558 = vmatpush1.msra.mxu0 0.0
  %2559 = vmatprep.subr.mxu0 0.0
  %2560 = vmatpush1.msra.mxu0 0.0
  %2561 = vmatprep.subr.mxu0 0.0
  %2562 = vmatpush1.msra.mxu0 0.0
  %2563 = vmatprep.subr.mxu0 0.0
  %2564 = vmatpush1.msra.mxu0 0.0
  %2565 = vmatprep.subr.mxu0 0.0
  %2566 = vmatpush1.msra.mxu0 0.0
  %2567 = vmatprep.subr.mxu0 0.0
  %2568 = vmatpush1.msra.mxu0 0.0
  %2569 = vmatprep.subr.mxu0 0.0
  %2570 = vmatpush1.msra.mxu0 0.0
  %2571 = vmatprep.subr.mxu0 0.0
  %2572 = vmatpush1.msra.mxu0 0.0
  %2573 = vmatprep.subr.mxu0 0.0
  %2574 = vmatpush1.msra.mxu0 0.0
  %2575 = vmatprep.subr.mxu0 0.0
  %2576 = vmatpush1.msra.mxu0 0.0
  %2577 = vmatprep.subr.mxu0 0.0
  %2578 = vmatpush1.msra.mxu0 0.0
  %2579 = vmatprep.subr.mxu0 0.0
  %2580 = vmatpush1.msra.mxu0 0.0
  %2581 = vmatprep.subr.mxu0 0.0
  %2582 = vmatpush1.msra.mxu0 0.0
  %2583 = vmatprep.subr.mxu0 0.0
  %2584 = vmatpush1.msra.mxu0 0.0
  %2585 = vmatprep.subr.mxu0 0.0
  %2586 = vmatpush1.msra.mxu0 0.0
  %2587 = vmatprep.subr.mxu0 0.0
  %2588 = vmatpush1.msra.mxu0 0.0
  %2589 = vmatprep.subr.mxu0 0.0
  %2590 = vmatpush1.msra.mxu0 0.0
  %2591 = vmatprep.subr.mxu0 0.0
  %2592 = vmatpush1.msra.mxu0 0.0
  %2593 = vmatprep.subr.mxu0 0.0
  %2594 = vmatpush1.msra.mxu0 0.0
  %2595 = vmatprep.mubr.f32.mxu0 0.0
  %2596 = vmatmul.mubr.f32.gmra.mrb[0].mxu0 %v2529
  %v2597 = vpop.f32.mrb[0].mxu0
  %v2598 = vadd.f32 0.0, %v2597
  %v2599 = vpop.f32.mrb[0].mxu0
  %2600 = vdwg.mxu0
  %v2602 = vrot.slane %v2598, 4
  %v2604 = vadd.f32 %v2107, %v2602
  %v2606 = vrot.slane %v2524, 4
  %2607 = vrot.lane.b32.xlu0 %v2606, 32
  %v2608 = vpop.permute.xlu0 %2607
  %v2609 = vsel %vm206, %v2608, 0
  %2611 = vmatprep.subr.mxu0 0.0
  %2612 = vmatpush1.msra.mxu0 %v2115
  %2613 = vmatprep.subr.mxu0 0.0
  %2614 = vmatpush1.msra.mxu0 %v2116
  %2615 = vmatprep.subr.mxu0 0.0
  %2616 = vmatpush1.msra.mxu0 %v2117
  %2617 = vmatprep.subr.mxu0 0.0
  %2618 = vmatpush1.msra.mxu0 %v2118
  %2619 = vmatprep.subr.mxu0 0.0
  %2620 = vmatpush1.msra.mxu0 0.0
  %2621 = vmatprep.subr.mxu0 0.0
  %2622 = vmatpush1.msra.mxu0 0.0
  %2623 = vmatprep.subr.mxu0 0.0
  %2624 = vmatpush1.msra.mxu0 0.0
  %2625 = vmatprep.subr.mxu0 0.0
  %2626 = vmatpush1.msra.mxu0 0.0
  %2627 = vmatprep.subr.mxu0 0.0
  %2628 = vmatpush1.msra.mxu0 0.0
  %2629 = vmatprep.subr.mxu0 0.0
  %2630 = vmatpush1.msra.mxu0 0.0
  %2631 = vmatprep.subr.mxu0 0.0
  %2632 = vmatpush1.msra.mxu0 0.0
  %2633 = vmatprep.subr.mxu0 0.0
  %2634 = vmatpush1.msra.mxu0 0.0
  %2635 = vmatprep.subr.mxu0 0.0
  %2636 = vmatpush1.msra.mxu0 0.0
  %2637 = vmatprep.subr.mxu0 0.0
  %2638 = vmatpush1.msra.mxu0 0.0
  %2639 = vmatprep.subr.mxu0 0.0
  %2640 = vmatpush1.msra.mxu0 0.0
  %2641 = vmatprep.subr.mxu0 0.0
  %2642 = vmatpush1.msra.mxu0 0.0
  %2643 = vmatprep.subr.mxu0 0.0
  %2644 = vmatpush1.msra.mxu0 0.0
  %2645 = vmatprep.subr.mxu0 0.0
  %2646 = vmatpush1.msra.mxu0 0.0
  %2647 = vmatprep.subr.mxu0 0.0
  %2648 = vmatpush1.msra.mxu0 0.0
  %2649 = vmatprep.subr.mxu0 0.0
  %2650 = vmatpush1.msra.mxu0 0.0
  %2651 = vmatprep.subr.mxu0 0.0
  %2652 = vmatpush1.msra.mxu0 0.0
  %2653 = vmatprep.subr.mxu0 0.0
  %2654 = vmatpush1.msra.mxu0 0.0
  %2655 = vmatprep.subr.mxu0 0.0
  %2656 = vmatpush1.msra.mxu0 0.0
  %2657 = vmatprep.subr.mxu0 0.0
  %2658 = vmatpush1.msra.mxu0 0.0
  %2659 = vmatprep.subr.mxu0 0.0
  %2660 = vmatpush1.msra.mxu0 0.0
  %2661 = vmatprep.subr.mxu0 0.0
  %2662 = vmatpush1.msra.mxu0 0.0
  %2663 = vmatprep.subr.mxu0 0.0
  %2664 = vmatpush1.msra.mxu0 0.0
  %2665 = vmatprep.subr.mxu0 0.0
  %2666 = vmatpush1.msra.mxu0 0.0
  %2667 = vmatprep.subr.mxu0 0.0
  %2668 = vmatpush1.msra.mxu0 0.0
  %2669 = vmatprep.subr.mxu0 0.0
  %2670 = vmatpush1.msra.mxu0 0.0
  %2671 = vmatprep.subr.mxu0 0.0
  %2672 = vmatpush1.msra.mxu0 0.0
  %2673 = vmatprep.subr.mxu0 0.0
  %2674 = vmatpush1.msra.mxu0 0.0
  %2675 = vmatprep.mubr.f32.mxu0 0.0
  %2676 = vmatmul.mubr.f32.gmra.mrb[0].mxu0 %v2609
  %v2677 = vpop.f32.mrb[0].mxu0
  %v2678 = vadd.f32 0.0, %v2677
  %v2679 = vpop.f32.mrb[0].mxu0
  %2680 = vdwg.mxu0
  %v2682 = vrot.slane %v2678, 6
  %v2684 = vadd.f32 %v2110, %v2682
  %v2685 = vxor.u32 %v2604, 2147483648
  %v2686 = vmul.f32 %v2685, 1.442695
  %v2687 = vpow.pop %v2686
  %v2688 = vadd.f32 %v2687, 1.0
  %v2689 = vrcp.pop %v2688
  %v2690 = vmul.f32 1.0, %v2689
  %v2691 = vtanh.pop %v2604
  %v2693 = vrot.slane %v2491, 6
  %v2695 = vmul.f32 %v2690, %v2693
  %2697 = vrot.lane.b32.xlu0 %v2691, 64
  %v2698 = vpop.permute.xlu0 %2697
  %v2700 = vmul.f32 %v2690, %v2698
  %2702 = vrot.lane.b32.xlu0 %v2700, 32
  %v2703 = vpop.permute.xlu0 %2702
  %v2705 = vadd.f32 %v2695, %v2703
  %v2706 = vtanh.pop %v2705
  %2708 = vrot.lane.b32.xlu0 %v2706, 64
  %v2709 = vpop.permute.xlu0 %2708
  %v2711 = vmul.f32 %v2690, %v2709
  %v2712 = vxor.u32 %v2684, 2147483648
  %v2713 = vmul.f32 %v2712, 1.442695
  %v2714 = vpow.pop %v2713
  %v2715 = vadd.f32 %v2714, 1.0
  %v2716 = vrcp.pop %v2715
  %v2717 = vmul.f32 1.0, %v2716
  %v2718 = vtanh.pop %v2684
  %v2720 = vrot.slane %v2518, 2
  %v2722 = vmul.f32 %v2717, %v2720
  %2724 = vrot.lane.b32.xlu0 %v2718, 64
  %v2725 = vpop.permute.xlu0 %2724
  %v2727 = vmul.f32 %v2717, %v2725
  %2729 = vrot.lane.b32.xlu0 %v2727, 32
  %v2730 = vpop.permute.xlu0 %2729
  %v2732 = vadd.f32 %v2722, %v2730
  %v2733 = vtanh.pop %v2732
  %2735 = vrot.lane.b32.xlu0 %v2733, 64
  %v2736 = vpop.permute.xlu0 %2735
  %v2738 = vmul.f32 %v2717, %v2736
  %v2740 = vrot.slane %v2711, 4
  %2741 = vrot.lane.b32.xlu0 %v2740, 32
  %v2742 = vpop.permute.xlu0 %2741
  %v2743 = vsel %vm206, %v2742, 0
  %2745 = vmatprep.subr.mxu0 0.0
  %2746 = vmatpush1.msra.mxu0 %v2111
  %2747 = vmatprep.subr.mxu0 0.0
  %2748 = vmatpush1.msra.mxu0 %v2112
  %2749 = vmatprep.subr.mxu0 0.0
  %2750 = vmatpush1.msra.mxu0 %v2113
  %2751 = vmatprep.subr.mxu0 0.0
  %2752 = vmatpush1.msra.mxu0 %v2114
  %2753 = vmatprep.subr.mxu0 0.0
  %2754 = vmatpush1.msra.mxu0 0.0
  %2755 = vmatprep.subr.mxu0 0.0
  %2756 = vmatpush1.msra.mxu0 0.0
  %2757 = vmatprep.subr.mxu0 0.0
  %2758 = vmatpush1.msra.mxu0 0.0
  %2759 = vmatprep.subr.mxu0 0.0
  %2760 = vmatpush1.msra.mxu0 0.0
  %2761 = vmatprep.subr.mxu0 0.0
  %2762 = vmatpush1.msra.mxu0 0.0
  %2763 = vmatprep.subr.mxu0 0.0
  %2764 = vmatpush1.msra.mxu0 0.0
  %2765 = vmatprep.subr.mxu0 0.0
  %2766 = vmatpush1.msra.mxu0 0.0
  %2767 = vmatprep.subr.mxu0 0.0
  %2768 = vmatpush1.msra.mxu0 0.0
  %2769 = vmatprep.subr.mxu0 0.0
  %2770 = vmatpush1.msra.mxu0 0.0
  %2771 = vmatprep.subr.mxu0 0.0
  %2772 = vmatpush1.msra.mxu0 0.0
  %2773 = vmatprep.subr.mxu0 0.0
  %2774 = vmatpush1.msra.mxu0 0.0
  %2775 = vmatprep.subr.mxu0 0.0
  %2776 = vmatpush1.msra.mxu0 0.0
  %2777 = vmatprep.subr.mxu0 0.0
  %2778 = vmatpush1.msra.mxu0 0.0
  %2779 = vmatprep.subr.mxu0 0.0
  %2780 = vmatpush1.msra.mxu0 0.0
  %2781 = vmatprep.subr.mxu0 0.0
  %2782 = vmatpush1.msra.mxu0 0.0
  %2783 = vmatprep.subr.mxu0 0.0
  %2784 = vmatpush1.msra.mxu0 0.0
  %2785 = vmatprep.subr.mxu0 0.0
  %2786 = vmatpush1.msra.mxu0 0.0
  %2787 = vmatprep.subr.mxu0 0.0
  %2788 = vmatpush1.msra.mxu0 0.0
  %2789 = vmatprep.subr.mxu0 0.0
  %2790 = vmatpush1.msra.mxu0 0.0
  %2791 = vmatprep.subr.mxu0 0.0
  %2792 = vmatpush1.msra.mxu0 0.0
  %2793 = vmatprep.subr.mxu0 0.0
  %2794 = vmatpush1.msra.mxu0 0.0
  %2795 = vmatprep.subr.mxu0 0.0
  %2796 = vmatpush1.msra.mxu0 0.0
  %2797 = vmatprep.subr.mxu0 0.0
  %2798 = vmatpush1.msra.mxu0 0.0
  %2799 = vmatprep.subr.mxu0 0.0
  %2800 = vmatpush1.msra.mxu0 0.0
  %2801 = vmatprep.subr.mxu0 0.0
  %2802 = vmatpush1.msra.mxu0 0.0
  %2803 = vmatprep.subr.mxu0 0.0
  %2804 = vmatpush1.msra.mxu0 0.0
  %2805 = vmatprep.subr.mxu0 0.0
  %2806 = vmatpush1.msra.mxu0 0.0
  %2807 = vmatprep.subr.mxu0 0.0
  %2808 = vmatpush1.msra.mxu0 0.0
  %2809 = vmatprep.mubr.f32.mxu0 0.0
  %2810 = vmatmul.mubr.f32.gmra.mrb[0].mxu0 %v2743
  %v2811 = vpop.f32.mrb[0].mxu0
  %v2812 = vadd.f32 0.0, %v2811
  %v2813 = vpop.f32.mrb[0].mxu0
  %2814 = vdwg.mxu0
  %v2816 = vrot.slane %v2812, 2
  %v2818 = vadd.f32 %v2107, %v2816
  %v2820 = vrot.slane %v2738, 2
  %2821 = vrot.lane.b32.xlu0 %v2820, 32
  %v2822 = vpop.permute.xlu0 %2821
  %v2823 = vsel %vm206, %v2822, 0
  %2825 = vmatprep.subr.mxu0 0.0
  %2826 = vmatpush1.msra.mxu0 %v2115
  %2827 = vmatprep.subr.mxu0 0.0
  %2828 = vmatpush1.msra.mxu0 %v2116
  %2829 = vmatprep.subr.mxu0 0.0
  %2830 = vmatpush1.msra.mxu0 %v2117
  %2831 = vmatprep.subr.mxu0 0.0
  %2832 = vmatpush1.msra.mxu0 %v2118
  %2833 = vmatprep.subr.mxu0 0.0
  %2834 = vmatpush1.msra.mxu0 0.0
  %2835 = vmatprep.subr.mxu0 0.0
  %2836 = vmatpush1.msra.mxu0 0.0
  %2837 = vmatprep.subr.mxu0 0.0
  %2838 = vmatpush1.msra.mxu0 0.0
  %2839 = vmatprep.subr.mxu0 0.0
  %2840 = vmatpush1.msra.mxu0 0.0
  %2841 = vmatprep.subr.mxu0 0.0
  %2842 = vmatpush1.msra.mxu0 0.0
  %2843 = vmatprep.subr.mxu0 0.0
  %2844 = vmatpush1.msra.mxu0 0.0
  %2845 = vmatprep.subr.mxu0 0.0
  %2846 = vmatpush1.msra.mxu0 0.0
  %2847 = vmatprep.subr.mxu0 0.0
  %2848 = vmatpush1.msra.mxu0 0.0
  %2849 = vmatprep.subr.mxu0 0.0
  %2850 = vmatpush1.msra.mxu0 0.0
  %2851 = vmatprep.subr.mxu0 0.0
  %2852 = vmatpush1.msra.mxu0 0.0
  %2853 = vmatprep.subr.mxu0 0.0
  %2854 = vmatpush1.msra.mxu0 0.0
  %2855 = vmatprep.subr.mxu0 0.0
  %2856 = vmatpush1.msra.mxu0 0.0
  %2857 = vmatprep.subr.mxu0 0.0
  %2858 = vmatpush1.msra.mxu0 0.0
  %2859 = vmatprep.subr.mxu0 0.0
  %2860 = vmatpush1.msra.mxu0 0.0
  %2861 = vmatprep.subr.mxu0 0.0
  %2862 = vmatpush1.msra.mxu0 0.0
  %2863 = vmatprep.subr.mxu0 0.0
  %2864 = vmatpush1.msra.mxu0 0.0
  %2865 = vmatprep.subr.mxu0 0.0
  %2866 = vmatpush1.msra.mxu0 0.0
  %2867 = vmatprep.subr.mxu0 0.0
  %2868 = vmatpush1.msra.mxu0 0.0
  %2869 = vmatprep.subr.mxu0 0.0
  %2870 = vmatpush1.msra.mxu0 0.0
  %2871 = vmatprep.subr.mxu0 0.0
  %2872 = vmatpush1.msra.mxu0 0.0
  %2873 = vmatprep.subr.mxu0 0.0
  %2874 = vmatpush1.msra.mxu0 0.0
  %2875 = vmatprep.subr.mxu0 0.0
  %2876 = vmatpush1.msra.mxu0 0.0
  %2877 = vmatprep.subr.mxu0 0.0
  %2878 = vmatpush1.msra.mxu0 0.0
  %2879 = vmatprep.subr.mxu0 0.0
  %2880 = vmatpush1.msra.mxu0 0.0
  %2881 = vmatprep.subr.mxu0 0.0
  %2882 = vmatpush1.msra.mxu0 0.0
  %2883 = vmatprep.subr.mxu0 0.0
  %2884 = vmatpush1.msra.mxu0 0.0
  %2885 = vmatprep.subr.mxu0 0.0
  %2886 = vmatpush1.msra.mxu0 0.0
  %2887 = vmatprep.subr.mxu0 0.0
  %2888 = vmatpush1.msra.mxu0 0.0
  %2889 = vmatprep.mubr.f32.mxu0 0.0
  %2890 = vmatmul.mubr.f32.gmra.mrb[0].mxu0 %v2823
  %v2891 = vpop.f32.mrb[0].mxu0
  %v2892 = vadd.f32 0.0, %v2891
  %v2893 = vpop.f32.mrb[0].mxu0
  %2894 = vdwg.mxu0
  %v2895 = vadd.f32 %v2110, %v2892
  %v2896 = vxor.u32 %v2818, 2147483648
  %v2897 = vmul.f32 %v2896, 1.442695
  %v2898 = vpow.pop %v2897
  %v2899 = vadd.f32 %v2898, 1.0
  %v2900 = vrcp.pop %v2899
  %v2901 = vmul.f32 1.0, %v2900
  %v2902 = vtanh.pop %v2818
  %v2904 = vrot.slane %v2705, 6
  %v2906 = vmul.f32 %v2901, %v2904
  %2908 = vrot.lane.b32.xlu0 %v2902, 64
  %v2909 = vpop.permute.xlu0 %2908
  %v2911 = vmul.f32 %v2901, %v2909
  %2913 = vrot.lane.b32.xlu0 %v2911, 32
  %v2914 = vpop.permute.xlu0 %2913
  %v2916 = vadd.f32 %v2906, %v2914
  %v2917 = vtanh.pop %v2916
  %2919 = vrot.lane.b32.xlu0 %v2917, 64
  %v2920 = vpop.permute.xlu0 %2919
  %v2922 = vmul.f32 %v2901, %v2920
  %v2923 = vxor.u32 %v2895, 2147483648
  %v2924 = vmul.f32 %v2923, 1.442695
  %v2925 = vpow.pop %v2924
  %v2926 = vadd.f32 %v2925, 1.0
  %v2927 = vrcp.pop %v2926
  %v2928 = vmul.f32 1.0, %v2927
  %v2929 = vtanh.pop %v2895
  %v2931 = vrot.slane %v2732, 2
  %v2933 = vmul.f32 %v2928, %v2931
  %2935 = vrot.lane.b32.xlu0 %v2929, 64
  %v2936 = vpop.permute.xlu0 %2935
  %v2938 = vmul.f32 %v2928, %v2936
  %2940 = vrot.lane.b32.xlu0 %v2938, 32
  %v2941 = vpop.permute.xlu0 %2940
  %v2943 = vadd.f32 %v2933, %v2941
  %v2944 = vtanh.pop %v2943
  %2946 = vrot.lane.b32.xlu0 %v2944, 64
  %v2947 = vpop.permute.xlu0 %2946
  %v2949 = vmul.f32 %v2928, %v2947
  %v2951 = vrot.slane %v2922, 6
  %2952 = vrot.lane.b32.xlu0 %v2951, 32
  %v2953 = vpop.permute.xlu0 %2952
  %v2954 = vsel %vm206, %v2953, 0
  %2956 = vmatprep.subr.mxu0 0.0
  %2957 = vmatpush1.msra.mxu0 %v2111
  %2958 = vmatprep.subr.mxu0 0.0
  %2959 = vmatpush1.msra.mxu0 %v2112
  %2960 = vmatprep.subr.mxu0 0.0
  %2961 = vmatpush1.msra.mxu0 %v2113
  %2962 = vmatprep.subr.mxu0 0.0
  %2963 = vmatpush1.msra.mxu0 %v2114
  %2964 = vmatprep.subr.mxu0 0.0
  %2965 = vmatpush1.msra.mxu0 0.0
  %2966 = vmatprep.subr.mxu0 0.0
  %2967 = vmatpush1.msra.mxu0 0.0
  %2968 = vmatprep.subr.mxu0 0.0
  %2969 = vmatpush1.msra.mxu0 0.0
  %2970 = vmatprep.subr.mxu0 0.0
  %2971 = vmatpush1.msra.mxu0 0.0
  %2972 = vmatprep.subr.mxu0 0.0
  %2973 = vmatpush1.msra.mxu0 0.0
  %2974 = vmatprep.subr.mxu0 0.0
  %2975 = vmatpush1.msra.mxu0 0.0
  %2976 = vmatprep.subr.mxu0 0.0
  %2977 = vmatpush1.msra.mxu0 0.0
  %2978 = vmatprep.subr.mxu0 0.0
  %2979 = vmatpush1.msra.mxu0 0.0
  %2980 = vmatprep.subr.mxu0 0.0
  %2981 = vmatpush1.msra.mxu0 0.0
  %2982 = vmatprep.subr.mxu0 0.0
  %2983 = vmatpush1.msra.mxu0 0.0
  %2984 = vmatprep.subr.mxu0 0.0
  %2985 = vmatpush1.msra.mxu0 0.0
  %2986 = vmatprep.subr.mxu0 0.0
  %2987 = vmatpush1.msra.mxu0 0.0
  %2988 = vmatprep.subr.mxu0 0.0
  %2989 = vmatpush1.msra.mxu0 0.0
  %2990 = vmatprep.subr.mxu0 0.0
  %2991 = vmatpush1.msra.mxu0 0.0
  %2992 = vmatprep.subr.mxu0 0.0
  %2993 = vmatpush1.msra.mxu0 0.0
  %2994 = vmatprep.subr.mxu0 0.0
  %2995 = vmatpush1.msra.mxu0 0.0
  %2996 = vmatprep.subr.mxu0 0.0
  %2997 = vmatpush1.msra.mxu0 0.0
  %2998 = vmatprep.subr.mxu0 0.0
  %2999 = vmatpush1.msra.mxu0 0.0
  %3000 = vmatprep.subr.mxu0 0.0
  %3001 = vmatpush1.msra.mxu0 0.0
  %3002 = vmatprep.subr.mxu0 0.0
  %3003 = vmatpush1.msra.mxu0 0.0
  %3004 = vmatprep.subr.mxu0 0.0
  %3005 = vmatpush1.msra.mxu0 0.0
  %3006 = vmatprep.subr.mxu0 0.0
  %3007 = vmatpush1.msra.mxu0 0.0
  %3008 = vmatprep.subr.mxu0 0.0
  %3009 = vmatpush1.msra.mxu0 0.0
  %3010 = vmatprep.subr.mxu0 0.0
  %3011 = vmatpush1.msra.mxu0 0.0
  %3012 = vmatprep.subr.mxu0 0.0
  %3013 = vmatpush1.msra.mxu0 0.0
  %3014 = vmatprep.subr.mxu0 0.0
  %3015 = vmatpush1.msra.mxu0 0.0
  %3016 = vmatprep.subr.mxu0 0.0
  %3017 = vmatpush1.msra.mxu0 0.0
  %3018 = vmatprep.subr.mxu0 0.0
  %3019 = vmatpush1.msra.mxu0 0.0
  %3020 = vmatprep.mubr.f32.mxu0 0.0
  %3021 = vmatmul.mubr.f32.gmra.mrb[0].mxu0 %v2954
  %v3022 = vpop.f32.mrb[0].mxu0
  %v3023 = vadd.f32 0.0, %v3022
  %v3024 = vpop.f32.mrb[0].mxu0
  %3025 = vdwg.mxu0
  %v3026 = vadd.f32 %v2109, %v3023
  %3028 = vrot.lane.b32.xlu0 %v2949, 32
  %v3029 = vpop.permute.xlu0 %3028
  %v3030 = vsel %vm206, %v3029, 0
  %3032 = vmatprep.subr.mxu0 0.0
  %3033 = vmatpush1.msra.mxu0 %v2115
  %3034 = vmatprep.subr.mxu0 0.0
  %3035 = vmatpush1.msra.mxu0 %v2116
  %3036 = vmatprep.subr.mxu0 0.0
  %3037 = vmatpush1.msra.mxu0 %v2117
  %3038 = vmatprep.subr.mxu0 0.0
  %3039 = vmatpush1.msra.mxu0 %v2118
  %3040 = vmatprep.subr.mxu0 0.0
  %3041 = vmatpush1.msra.mxu0 0.0
  %3042 = vmatprep.subr.mxu0 0.0
  %3043 = vmatpush1.msra.mxu0 0.0
  %3044 = vmatprep.subr.mxu0 0.0
  %3045 = vmatpush1.msra.mxu0 0.0
  %3046 = vmatprep.subr.mxu0 0.0
  %3047 = vmatpush1.msra.mxu0 0.0
  %3048 = vmatprep.subr.mxu0 0.0
  %3049 = vmatpush1.msra.mxu0 0.0
  %3050 = vmatprep.subr.mxu0 0.0
  %3051 = vmatpush1.msra.mxu0 0.0
  %3052 = vmatprep.subr.mxu0 0.0
  %3053 = vmatpush1.msra.mxu0 0.0
  %3054 = vmatprep.subr.mxu0 0.0
  %3055 = vmatpush1.msra.mxu0 0.0
  %3056 = vmatprep.subr.mxu0 0.0
  %3057 = vmatpush1.msra.mxu0 0.0
  %3058 = vmatprep.subr.mxu0 0.0
  %3059 = vmatpush1.msra.mxu0 0.0
  %3060 = vmatprep.subr.mxu0 0.0
  %3061 = vmatpush1.msra.mxu0 0.0
  %3062 = vmatprep.subr.mxu0 0.0
  %3063 = vmatpush1.msra.mxu0 0.0
  %3064 = vmatprep.subr.mxu0 0.0
  %3065 = vmatpush1.msra.mxu0 0.0
  %3066 = vmatprep.subr.mxu0 0.0
  %3067 = vmatpush1.msra.mxu0 0.0
  %3068 = vmatprep.subr.mxu0 0.0
  %3069 = vmatpush1.msra.mxu0 0.0
  %3070 = vmatprep.subr.mxu0 0.0
  %3071 = vmatpush1.msra.mxu0 0.0
  %3072 = vmatprep.subr.mxu0 0.0
  %3073 = vmatpush1.msra.mxu0 0.0
  %3074 = vmatprep.subr.mxu0 0.0
  %3075 = vmatpush1.msra.mxu0 0.0
  %3076 = vmatprep.subr.mxu0 0.0
  %3077 = vmatpush1.msra.mxu0 0.0
  %3078 = vmatprep.subr.mxu0 0.0
  %3079 = vmatpush1.msra.mxu0 0.0
  %3080 = vmatprep.subr.mxu0 0.0
  %3081 = vmatpush1.msra.mxu0 0.0
  %3082 = vmatprep.subr.mxu0 0.0
  %3083 = vmatpush1.msra.mxu0 0.0
  %3084 = vmatprep.subr.mxu0 0.0
  %3085 = vmatpush1.msra.mxu0 0.0
  %3086 = vmatprep.subr.mxu0 0.0
  %3087 = vmatpush1.msra.mxu0 0.0
  %3088 = vmatprep.subr.mxu0 0.0
  %3089 = vmatpush1.msra.mxu0 0.0
  %3090 = vmatprep.subr.mxu0 0.0
  %3091 = vmatpush1.msra.mxu0 0.0
  %3092 = vmatprep.subr.mxu0 0.0
  %3093 = vmatpush1.msra.mxu0 0.0
  %3094 = vmatprep.subr.mxu0 0.0
  %3095 = vmatpush1.msra.mxu0 0.0
  %3096 = vmatprep.mubr.f32.mxu0 0.0
  %3097 = vmatmul.mubr.f32.gmra.mrb[0].mxu0 %v3030
  %v3098 = vpop.f32.mrb[0].mxu0
  %v3099 = vadd.f32 0.0, %v3098
  %v3100 = vpop.f32.mrb[0].mxu0
  %3101 = vdwg.mxu0
  %v3103 = vrot.slane %v3099, 2
  %v3105 = vadd.f32 %v2108, %v3103
  %v3106 = vxor.u32 %v3026, 2147483648
  %v3107 = vmul.f32 %v3106, 1.442695
  %v3108 = vpow.pop %v3107
  %v3109 = vadd.f32 %v3108, 1.0
  %v3110 = vrcp.pop %v3109
  %v3111 = vmul.f32 1.0, %v3110
  %v3112 = vtanh.pop %v3026
  %v3114 = vrot.slane %v2916, 6
  %v3116 = vmul.f32 %v3111, %v3114
  %3118 = vrot.lane.b32.xlu0 %v3112, 64
  %v3119 = vpop.permute.xlu0 %3118
  %v3121 = vmul.f32 %v3111, %v3119
  %3123 = vrot.lane.b32.xlu0 %v3121, 32
  %v3124 = vpop.permute.xlu0 %3123
  %v3126 = vadd.f32 %v3116, %v3124
  %v3127 = vtanh.pop %v3126
  %3129 = vrot.lane.b32.xlu0 %v3127, 64
  %v3130 = vpop.permute.xlu0 %3129
  %v3132 = vmul.f32 %v3111, %v3130
  %v3133 = vxor.u32 %v3105, 2147483648
  %v3134 = vmul.f32 %v3133, 1.442695
  %v3135 = vpow.pop %v3134
  %v3136 = vadd.f32 %v3135, 1.0
  %v3137 = vrcp.pop %v3136
  %v3138 = vmul.f32 1.0, %v3137
  %v3139 = vtanh.pop %v3105
  %v3141 = vrot.slane %v2943, 2
  %v3143 = vmul.f32 %v3138, %v3141
  %3145 = vrot.lane.b32.xlu0 %v3139, 64
  %v3146 = vpop.permute.xlu0 %3145
  %v3148 = vmul.f32 %v3138, %v3146
  %3150 = vrot.lane.b32.xlu0 %v3148, 32
  %v3151 = vpop.permute.xlu0 %3150
  %v3153 = vadd.f32 %v3143, %v3151
  %v3154 = vtanh.pop %v3153
  %3156 = vrot.lane.b32.xlu0 %v3154, 64
  %v3157 = vpop.permute.xlu0 %3156
  %v3159 = vmul.f32 %v3138, %v3157
  %3161 = vrot.lane.b32.xlu0 %v3132, 32
  %v3162 = vpop.permute.xlu0 %3161
  %v3163 = vsel %vm206, %v3162, 0
  %3165 = vmatprep.subr.mxu0 0.0
  %3166 = vmatpush1.msra.mxu0 %v2111
  %3167 = vmatprep.subr.mxu0 0.0
  %3168 = vmatpush1.msra.mxu0 %v2112
  %3169 = vmatprep.subr.mxu0 0.0
  %3170 = vmatpush1.msra.mxu0 %v2113
  %3171 = vmatprep.subr.mxu0 0.0
  %3172 = vmatpush1.msra.mxu0 %v2114
  %3173 = vmatprep.subr.mxu0 0.0
  %3174 = vmatpush1.msra.mxu0 0.0
  %3175 = vmatprep.subr.mxu0 0.0
  %3176 = vmatpush1.msra.mxu0 0.0
  %3177 = vmatprep.subr.mxu0 0.0
  %3178 = vmatpush1.msra.mxu0 0.0
  %3179 = vmatprep.subr.mxu0 0.0
  %3180 = vmatpush1.msra.mxu0 0.0
  %3181 = vmatprep.subr.mxu0 0.0
  %3182 = vmatpush1.msra.mxu0 0.0
  %3183 = vmatprep.subr.mxu0 0.0
  %3184 = vmatpush1.msra.mxu0 0.0
  %3185 = vmatprep.subr.mxu0 0.0
  %3186 = vmatpush1.msra.mxu0 0.0
  %3187 = vmatprep.subr.mxu0 0.0
  %3188 = vmatpush1.msra.mxu0 0.0
  %3189 = vmatprep.subr.mxu0 0.0
  %3190 = vmatpush1.msra.mxu0 0.0
  %3191 = vmatprep.subr.mxu0 0.0
  %3192 = vmatpush1.msra.mxu0 0.0
  %3193 = vmatprep.subr.mxu0 0.0
  %3194 = vmatpush1.msra.mxu0 0.0
  %3195 = vmatprep.subr.mxu0 0.0
  %3196 = vmatpush1.msra.mxu0 0.0
  %3197 = vmatprep.subr.mxu0 0.0
  %3198 = vmatpush1.msra.mxu0 0.0
  %3199 = vmatprep.subr.mxu0 0.0
  %3200 = vmatpush1.msra.mxu0 0.0
  %3201 = vmatprep.subr.mxu0 0.0
  %3202 = vmatpush1.msra.mxu0 0.0
  %3203 = vmatprep.subr.mxu0 0.0
  %3204 = vmatpush1.msra.mxu0 0.0
  %3205 = vmatprep.subr.mxu0 0.0
  %3206 = vmatpush1.msra.mxu0 0.0
  %3207 = vmatprep.subr.mxu0 0.0
  %3208 = vmatpush1.msra.mxu0 0.0
  %3209 = vmatprep.subr.mxu0 0.0
  %3210 = vmatpush1.msra.mxu0 0.0
  %3211 = vmatprep.subr.mxu0 0.0
  %3212 = vmatpush1.msra.mxu0 0.0
  %3213 = vmatprep.subr.mxu0 0.0
  %3214 = vmatpush1.msra.mxu0 0.0
  %3215 = vmatprep.subr.mxu0 0.0
  %3216 = vmatpush1.msra.mxu0 0.0
  %3217 = vmatprep.subr.mxu0 0.0
  %3218 = vmatpush1.msra.mxu0 0.0
  %3219 = vmatprep.subr.mxu0 0.0
  %3220 = vmatpush1.msra.mxu0 0.0
  %3221 = vmatprep.subr.mxu0 0.0
  %3222 = vmatpush1.msra.mxu0 0.0
  %3223 = vmatprep.subr.mxu0 0.0
  %3224 = vmatpush1.msra.mxu0 0.0
  %3225 = vmatprep.subr.mxu0 0.0
  %3226 = vmatpush1.msra.mxu0 0.0
  %3227 = vmatprep.subr.mxu0 0.0
  %3228 = vmatpush1.msra.mxu0 0.0
  %3229 = vmatprep.mubr.f32.mxu0 0.0
  %3230 = vmatmul.mubr.f32.gmra.mrb[0].mxu0 %v3163
  %v3231 = vpop.f32.mrb[0].mxu0
  %v3232 = vadd.f32 0.0, %v3231
  %v3233 = vpop.f32.mrb[0].mxu0
  %3234 = vdwg.mxu0
  %v3236 = vrot.slane %v3232, 6
  %v3238 = vadd.f32 %v2109, %v3236
  %v3240 = vrot.slane %v3159, 6
  %3241 = vrot.lane.b32.xlu0 %v3240, 32
  %v3242 = vpop.permute.xlu0 %3241
  %v3243 = vsel %vm206, %v3242, 0
  %3245 = vmatprep.subr.mxu0 0.0
  %3246 = vmatpush1.msra.mxu0 %v2115
  %3247 = vmatprep.subr.mxu0 0.0
  %3248 = vmatpush1.msra.mxu0 %v2116
  %3249 = vmatprep.subr.mxu0 0.0
  %3250 = vmatpush1.msra.mxu0 %v2117
  %3251 = vmatprep.subr.mxu0 0.0
  %3252 = vmatpush1.msra.mxu0 %v2118
  %3253 = vmatprep.subr.mxu0 0.0
  %3254 = vmatpush1.msra.mxu0 0.0
  %3255 = vmatprep.subr.mxu0 0.0
  %3256 = vmatpush1.msra.mxu0 0.0
  %3257 = vmatprep.subr.mxu0 0.0
  %3258 = vmatpush1.msra.mxu0 0.0
  %3259 = vmatprep.subr.mxu0 0.0
  %3260 = vmatpush1.msra.mxu0 0.0
  %3261 = vmatprep.subr.mxu0 0.0
  %3262 = vmatpush1.msra.mxu0 0.0
  %3263 = vmatprep.subr.mxu0 0.0
  %3264 = vmatpush1.msra.mxu0 0.0
  %3265 = vmatprep.subr.mxu0 0.0
  %3266 = vmatpush1.msra.mxu0 0.0
  %3267 = vmatprep.subr.mxu0 0.0
  %3268 = vmatpush1.msra.mxu0 0.0
  %3269 = vmatprep.subr.mxu0 0.0
  %3270 = vmatpush1.msra.mxu0 0.0
  %3271 = vmatprep.subr.mxu0 0.0
  %3272 = vmatpush1.msra.mxu0 0.0
  %3273 = vmatprep.subr.mxu0 0.0
  %3274 = vmatpush1.msra.mxu0 0.0
  %3275 = vmatprep.subr.mxu0 0.0
  %3276 = vmatpush1.msra.mxu0 0.0
  %3277 = vmatprep.subr.mxu0 0.0
  %3278 = vmatpush1.msra.mxu0 0.0
  %3279 = vmatprep.subr.mxu0 0.0
  %3280 = vmatpush1.msra.mxu0 0.0
  %3281 = vmatprep.subr.mxu0 0.0
  %3282 = vmatpush1.msra.mxu0 0.0
  %3283 = vmatprep.subr.mxu0 0.0
  %3284 = vmatpush1.msra.mxu0 0.0
  %3285 = vmatprep.subr.mxu0 0.0
  %3286 = vmatpush1.msra.mxu0 0.0
  %3287 = vmatprep.subr.mxu0 0.0
  %3288 = vmatpush1.msra.mxu0 0.0
  %3289 = vmatprep.subr.mxu0 0.0
  %3290 = vmatpush1.msra.mxu0 0.0
  %3291 = vmatprep.subr.mxu0 0.0
  %3292 = vmatpush1.msra.mxu0 0.0
  %3293 = vmatprep.subr.mxu0 0.0
  %3294 = vmatpush1.msra.mxu0 0.0
  %3295 = vmatprep.subr.mxu0 0.0
  %3296 = vmatpush1.msra.mxu0 0.0
  %3297 = vmatprep.subr.mxu0 0.0
  %3298 = vmatpush1.msra.mxu0 0.0
  %3299 = vmatprep.subr.mxu0 0.0
  %3300 = vmatpush1.msra.mxu0 0.0
  %3301 = vmatprep.subr.mxu0 0.0
  %3302 = vmatpush1.msra.mxu0 0.0
  %3303 = vmatprep.subr.mxu0 0.0
  %3304 = vmatpush1.msra.mxu0 0.0
  %3305 = vmatprep.subr.mxu0 0.0
  %3306 = vmatpush1.msra.mxu0 0.0
  %3307 = vmatprep.subr.mxu0 0.0
  %3308 = vmatpush1.msra.mxu0 0.0
  %3309 = vmatprep.mubr.f32.mxu0 0.0
  %3310 = vmatmul.mubr.f32.gmra.mrb[0].mxu0 %v3243
  %v3311 = vpop.f32.mrb[0].mxu0
  %v3312 = vadd.f32 0.0, %v3311
  %v3313 = vpop.f32.mrb[0].mxu0
  %3314 = vdwg.mxu0
  %v3316 = vrot.slane %v3312, 4
  %v3318 = vadd.f32 %v2108, %v3316
  %v3319 = vxor.u32 %v3238, 2147483648
  %v3320 = vmul.f32 %v3319, 1.442695
  %v3321 = vpow.pop %v3320
  %v3322 = vadd.f32 %v3321, 1.0
  %v3323 = vrcp.pop %v3322
  %v3324 = vmul.f32 1.0, %v3323
  %v3325 = vtanh.pop %v3238
  %v3327 = vrot.slane %v3126, 6
  %v3329 = vmul.f32 %v3324, %v3327
  %3331 = vrot.lane.b32.xlu0 %v3325, 64
  %v3332 = vpop.permute.xlu0 %3331
  %v3334 = vmul.f32 %v3324, %v3332
  %3336 = vrot.lane.b32.xlu0 %v3334, 32
  %v3337 = vpop.permute.xlu0 %3336
  %v3339 = vadd.f32 %v3329, %v3337
  %v3340 = vtanh.pop %v3339
  %3342 = vrot.lane.b32.xlu0 %v3340, 64
  %v3343 = vpop.permute.xlu0 %3342
  %v3345 = vmul.f32 %v3324, %v3343
  %v3346 = vxor.u32 %v3318, 2147483648
  %v3347 = vmul.f32 %v3346, 1.442695
  %v3348 = vpow.pop %v3347
  %v3349 = vadd.f32 %v3348, 1.0
  %v3350 = vrcp.pop %v3349
  %v3351 = vmul.f32 1.0, %v3350
  %v3352 = vtanh.pop %v3318
  %v3354 = vrot.slane %v3153, 2
  %v3356 = vmul.f32 %v3351, %v3354
  %3358 = vrot.lane.b32.xlu0 %v3352, 64
  %v3359 = vpop.permute.xlu0 %3358
  %v3361 = vmul.f32 %v3351, %v3359
  %3363 = vrot.lane.b32.xlu0 %v3361, 32
  %v3364 = vpop.permute.xlu0 %3363
  %v3366 = vadd.f32 %v3356, %v3364
  %v3367 = vtanh.pop %v3366
  %3369 = vrot.lane.b32.xlu0 %v3367, 64
  %v3370 = vpop.permute.xlu0 %3369
  %v3372 = vmul.f32 %v3351, %v3370
  %v3374 = vrot.slane %v3345, 2
  %3375 = vrot.lane.b32.xlu0 %v3374, 32
  %v3376 = vpop.permute.xlu0 %3375
  %v3377 = vsel %vm206, %v3376, 0
  %3379 = vmatprep.subr.mxu0 0.0
  %3380 = vmatpush1.msra.mxu0 %v2111
  %3381 = vmatprep.subr.mxu0 0.0
  %3382 = vmatpush1.msra.mxu0 %v2112
  %3383 = vmatprep.subr.mxu0 0.0
  %3384 = vmatpush1.msra.mxu0 %v2113
  %3385 = vmatprep.subr.mxu0 0.0
  %3386 = vmatpush1.msra.mxu0 %v2114
  %3387 = vmatprep.subr.mxu0 0.0
  %3388 = vmatpush1.msra.mxu0 0.0
  %3389 = vmatprep.subr.mxu0 0.0
  %3390 = vmatpush1.msra.mxu0 0.0
  %3391 = vmatprep.subr.mxu0 0.0
  %3392 = vmatpush1.msra.mxu0 0.0
  %3393 = vmatprep.subr.mxu0 0.0
  %3394 = vmatpush1.msra.mxu0 0.0
  %3395 = vmatprep.subr.mxu0 0.0
  %3396 = vmatpush1.msra.mxu0 0.0
  %3397 = vmatprep.subr.mxu0 0.0
  %3398 = vmatpush1.msra.mxu0 0.0
  %3399 = vmatprep.subr.mxu0 0.0
  %3400 = vmatpush1.msra.mxu0 0.0
  %3401 = vmatprep.subr.mxu0 0.0
  %3402 = vmatpush1.msra.mxu0 0.0
  %3403 = vmatprep.subr.mxu0 0.0
  %3404 = vmatpush1.msra.mxu0 0.0
  %3405 = vmatprep.subr.mxu0 0.0
  %3406 = vmatpush1.msra.mxu0 0.0
  %3407 = vmatprep.subr.mxu0 0.0
  %3408 = vmatpush1.msra.mxu0 0.0
  %3409 = vmatprep.subr.mxu0 0.0
  %3410 = vmatpush1.msra.mxu0 0.0
  %3411 = vmatprep.subr.mxu0 0.0
  %3412 = vmatpush1.msra.mxu0 0.0
  %3413 = vmatprep.subr.mxu0 0.0
  %3414 = vmatpush1.msra.mxu0 0.0
  %3415 = vmatprep.subr.mxu0 0.0
  %3416 = vmatpush1.msra.mxu0 0.0
  %3417 = vmatprep.subr.mxu0 0.0
  %3418 = vmatpush1.msra.mxu0 0.0
  %3419 = vmatprep.subr.mxu0 0.0
  %3420 = vmatpush1.msra.mxu0 0.0
  %3421 = vmatprep.subr.mxu0 0.0
  %3422 = vmatpush1.msra.mxu0 0.0
  %3423 = vmatprep.subr.mxu0 0.0
  %3424 = vmatpush1.msra.mxu0 0.0
  %3425 = vmatprep.subr.mxu0 0.0
  %3426 = vmatpush1.msra.mxu0 0.0
  %3427 = vmatprep.subr.mxu0 0.0
  %3428 = vmatpush1.msra.mxu0 0.0
  %3429 = vmatprep.subr.mxu0 0.0
  %3430 = vmatpush1.msra.mxu0 0.0
  %3431 = vmatprep.subr.mxu0 0.0
  %3432 = vmatpush1.msra.mxu0 0.0
  %3433 = vmatprep.subr.mxu0 0.0
  %3434 = vmatpush1.msra.mxu0 0.0
  %3435 = vmatprep.subr.mxu0 0.0
  %3436 = vmatpush1.msra.mxu0 0.0
  %3437 = vmatprep.subr.mxu0 0.0
  %3438 = vmatpush1.msra.mxu0 0.0
  %3439 = vmatprep.subr.mxu0 0.0
  %3440 = vmatpush1.msra.mxu0 0.0
  %3441 = vmatprep.subr.mxu0 0.0
  %3442 = vmatpush1.msra.mxu0 0.0
  %3443 = vmatprep.mubr.f32.mxu0 0.0
  %3444 = vmatmul.mubr.f32.gmra.mrb[0].mxu0 %v3377
  %v3445 = vpop.f32.mrb[0].mxu0
  %v3446 = vadd.f32 0.0, %v3445
  %v3447 = vpop.f32.mrb[0].mxu0
  %3448 = vdwg.mxu0
  %v3450 = vrot.slane %v3446, 4
  %v3452 = vadd.f32 %v2109, %v3450
  %v3454 = vrot.slane %v3372, 4
  %3455 = vrot.lane.b32.xlu0 %v3454, 32
  %v3456 = vpop.permute.xlu0 %3455
  %v3457 = vsel %vm206, %v3456, 0
  %3459 = vmatprep.subr.mxu0 0.0
  %3460 = vmatpush1.msra.mxu0 %v2115
  %3461 = vmatprep.subr.mxu0 0.0
  %3462 = vmatpush1.msra.mxu0 %v2116
  %3463 = vmatprep.subr.mxu0 0.0
  %3464 = vmatpush1.msra.mxu0 %v2117
  %3465 = vmatprep.subr.mxu0 0.0
  %3466 = vmatpush1.msra.mxu0 %v2118
  %3467 = vmatprep.subr.mxu0 0.0
  %3468 = vmatpush1.msra.mxu0 0.0
  %3469 = vmatprep.subr.mxu0 0.0
  %3470 = vmatpush1.msra.mxu0 0.0
  %3471 = vmatprep.subr.mxu0 0.0
  %3472 = vmatpush1.msra.mxu0 0.0
  %3473 = vmatprep.subr.mxu0 0.0
  %3474 = vmatpush1.msra.mxu0 0.0
  %3475 = vmatprep.subr.mxu0 0.0
  %3476 = vmatpush1.msra.mxu0 0.0
  %3477 = vmatprep.subr.mxu0 0.0
  %3478 = vmatpush1.msra.mxu0 0.0
  %3479 = vmatprep.subr.mxu0 0.0
  %3480 = vmatpush1.msra.mxu0 0.0
  %3481 = vmatprep.subr.mxu0 0.0
  %3482 = vmatpush1.msra.mxu0 0.0
  %3483 = vmatprep.subr.mxu0 0.0
  %3484 = vmatpush1.msra.mxu0 0.0
  %3485 = vmatprep.subr.mxu0 0.0
  %3486 = vmatpush1.msra.mxu0 0.0
  %3487 = vmatprep.subr.mxu0 0.0
  %3488 = vmatpush1.msra.mxu0 0.0
  %3489 = vmatprep.subr.mxu0 0.0
  %3490 = vmatpush1.msra.mxu0 0.0
  %3491 = vmatprep.subr.mxu0 0.0
  %3492 = vmatpush1.msra.mxu0 0.0
  %3493 = vmatprep.subr.mxu0 0.0
  %3494 = vmatpush1.msra.mxu0 0.0
  %3495 = vmatprep.subr.mxu0 0.0
  %3496 = vmatpush1.msra.mxu0 0.0
  %3497 = vmatprep.subr.mxu0 0.0
  %3498 = vmatpush1.msra.mxu0 0.0
  %3499 = vmatprep.subr.mxu0 0.0
  %3500 = vmatpush1.msra.mxu0 0.0
  %3501 = vmatprep.subr.mxu0 0.0
  %3502 = vmatpush1.msra.mxu0 0.0
  %3503 = vmatprep.subr.mxu0 0.0
  %3504 = vmatpush1.msra.mxu0 0.0
  %3505 = vmatprep.subr.mxu0 0.0
  %3506 = vmatpush1.msra.mxu0 0.0
  %3507 = vmatprep.subr.mxu0 0.0
  %3508 = vmatpush1.msra.mxu0 0.0
  %3509 = vmatprep.subr.mxu0 0.0
  %3510 = vmatpush1.msra.mxu0 0.0
  %3511 = vmatprep.subr.mxu0 0.0
  %3512 = vmatpush1.msra.mxu0 0.0
  %3513 = vmatprep.subr.mxu0 0.0
  %3514 = vmatpush1.msra.mxu0 0.0
  %3515 = vmatprep.subr.mxu0 0.0
  %3516 = vmatpush1.msra.mxu0 0.0
  %3517 = vmatprep.subr.mxu0 0.0
  %3518 = vmatpush1.msra.mxu0 0.0
  %3519 = vmatprep.subr.mxu0 0.0
  %3520 = vmatpush1.msra.mxu0 0.0
  %3521 = vmatprep.subr.mxu0 0.0
  %3522 = vmatpush1.msra.mxu0 0.0
  %3523 = vmatprep.mubr.f32.mxu0 0.0
  %3524 = vmatmul.mubr.f32.gmra.mrb[0].mxu0 %v3457
  %v3525 = vpop.f32.mrb[0].mxu0
  %v3526 = vadd.f32 0.0, %v3525
  %v3527 = vpop.f32.mrb[0].mxu0
  %3528 = vdwg.mxu0
  %v3530 = vrot.slane %v3526, 6
  %v3532 = vadd.f32 %v2108, %v3530
  %v3533 = vxor.u32 %v3452, 2147483648
  %v3534 = vmul.f32 %v3533, 1.442695
  %v3535 = vpow.pop %v3534
  %v3536 = vadd.f32 %v3535, 1.0
  %v3537 = vrcp.pop %v3536
  %v3538 = vmul.f32 1.0, %v3537
  %v3539 = vtanh.pop %v3452
  %v3541 = vrot.slane %v3339, 6
  %v3543 = vmul.f32 %v3538, %v3541
  %3545 = vrot.lane.b32.xlu0 %v3539, 64
  %v3546 = vpop.permute.xlu0 %3545
  %v3548 = vmul.f32 %v3538, %v3546
  %3550 = vrot.lane.b32.xlu0 %v3548, 32
  %v3551 = vpop.permute.xlu0 %3550
  %v3553 = vadd.f32 %v3543, %v3551
  %v3554 = vtanh.pop %v3553
  %3556 = vrot.lane.b32.xlu0 %v3554, 64
  %v3557 = vpop.permute.xlu0 %3556
  %v3559 = vmul.f32 %v3538, %v3557
  %v3560 = vxor.u32 %v3532, 2147483648
  %v3561 = vmul.f32 %v3560, 1.442695
  %v3562 = vpow.pop %v3561
  %v3563 = vadd.f32 %v3562, 1.0
  %v3564 = vrcp.pop %v3563
  %v3565 = vmul.f32 1.0, %v3564
  %v3566 = vtanh.pop %v3532
  %v3568 = vrot.slane %v3366, 2
  %v3570 = vmul.f32 %v3565, %v3568
  %3572 = vrot.lane.b32.xlu0 %v3566, 64
  %v3573 = vpop.permute.xlu0 %3572
  %v3575 = vmul.f32 %v3565, %v3573
  %3577 = vrot.lane.b32.xlu0 %v3575, 32
  %v3578 = vpop.permute.xlu0 %3577
  %v3580 = vadd.f32 %v3570, %v3578
  %v3581 = vtanh.pop %v3580
  %3583 = vrot.lane.b32.xlu0 %v3581, 64
  %v3584 = vpop.permute.xlu0 %3583
  %v3586 = vmul.f32 %v3565, %v3584
  %v3588 = vrot.slane %v3559, 4
  %3589 = vrot.lane.b32.xlu0 %v3588, 32
  %v3590 = vpop.permute.xlu0 %3589
  %v3591 = vsel %vm206, %v3590, 0
  %3593 = vmatprep.subr.mxu0 0.0
  %3594 = vmatpush1.msra.mxu0 %v2111
  %3595 = vmatprep.subr.mxu0 0.0
  %3596 = vmatpush1.msra.mxu0 %v2112
  %3597 = vmatprep.subr.mxu0 0.0
  %3598 = vmatpush1.msra.mxu0 %v2113
  %3599 = vmatprep.subr.mxu0 0.0
  %3600 = vmatpush1.msra.mxu0 %v2114
  %3601 = vmatprep.subr.mxu0 0.0
  %3602 = vmatpush1.msra.mxu0 0.0
  %3603 = vmatprep.subr.mxu0 0.0
  %3604 = vmatpush1.msra.mxu0 0.0
  %3605 = vmatprep.subr.mxu0 0.0
  %3606 = vmatpush1.msra.mxu0 0.0
  %3607 = vmatprep.subr.mxu0 0.0
  %3608 = vmatpush1.msra.mxu0 0.0
  %3609 = vmatprep.subr.mxu0 0.0
  %3610 = vmatpush1.msra.mxu0 0.0
  %3611 = vmatprep.subr.mxu0 0.0
  %3612 = vmatpush1.msra.mxu0 0.0
  %3613 = vmatprep.subr.mxu0 0.0
  %3614 = vmatpush1.msra.mxu0 0.0
  %3615 = vmatprep.subr.mxu0 0.0
  %3616 = vmatpush1.msra.mxu0 0.0
  %3617 = vmatprep.subr.mxu0 0.0
  %3618 = vmatpush1.msra.mxu0 0.0
  %3619 = vmatprep.subr.mxu0 0.0
  %3620 = vmatpush1.msra.mxu0 0.0
  %3621 = vmatprep.subr.mxu0 0.0
  %3622 = vmatpush1.msra.mxu0 0.0
  %3623 = vmatprep.subr.mxu0 0.0
  %3624 = vmatpush1.msra.mxu0 0.0
  %3625 = vmatprep.subr.mxu0 0.0
  %3626 = vmatpush1.msra.mxu0 0.0
  %3627 = vmatprep.subr.mxu0 0.0
  %3628 = vmatpush1.msra.mxu0 0.0
  %3629 = vmatprep.subr.mxu0 0.0
  %3630 = vmatpush1.msra.mxu0 0.0
  %3631 = vmatprep.subr.mxu0 0.0
  %3632 = vmatpush1.msra.mxu0 0.0
  %3633 = vmatprep.subr.mxu0 0.0
  %3634 = vmatpush1.msra.mxu0 0.0
  %3635 = vmatprep.subr.mxu0 0.0
  %3636 = vmatpush1.msra.mxu0 0.0
  %3637 = vmatprep.subr.mxu0 0.0
  %3638 = vmatpush1.msra.mxu0 0.0
  %3639 = vmatprep.subr.mxu0 0.0
  %3640 = vmatpush1.msra.mxu0 0.0
  %3641 = vmatprep.subr.mxu0 0.0
  %3642 = vmatpush1.msra.mxu0 0.0
  %3643 = vmatprep.subr.mxu0 0.0
  %3644 = vmatpush1.msra.mxu0 0.0
  %3645 = vmatprep.subr.mxu0 0.0
  %3646 = vmatpush1.msra.mxu0 0.0
  %3647 = vmatprep.subr.mxu0 0.0
  %3648 = vmatpush1.msra.mxu0 0.0
  %3649 = vmatprep.subr.mxu0 0.0
  %3650 = vmatpush1.msra.mxu0 0.0
  %3651 = vmatprep.subr.mxu0 0.0
  %3652 = vmatpush1.msra.mxu0 0.0
  %3653 = vmatprep.subr.mxu0 0.0
  %3654 = vmatpush1.msra.mxu0 0.0
  %3655 = vmatprep.subr.mxu0 0.0
  %3656 = vmatpush1.msra.mxu0 0.0
  %3657 = vmatprep.mubr.f32.mxu0 0.0
  %3658 = vmatmul.mubr.f32.gmra.mrb[0].mxu0 %v3591
  %v3659 = vpop.f32.mrb[0].mxu0
  %v3660 = vadd.f32 0.0, %v3659
  %v3661 = vpop.f32.mrb[0].mxu0
  %3662 = vdwg.mxu0
  %v3664 = vrot.slane %v3660, 2
  %v3666 = vadd.f32 %v2109, %v3664
  %v3668 = vrot.slane %v3586, 2
  %3669 = vrot.lane.b32.xlu0 %v3668, 32
  %v3670 = vpop.permute.xlu0 %3669
  %v3671 = vsel %vm206, %v3670, 0
  %3673 = vmatprep.subr.mxu0 0.0
  %3674 = vmatpush1.msra.mxu0 %v2115
  %3675 = vmatprep.subr.mxu0 0.0
  %3676 = vmatpush1.msra.mxu0 %v2116
  %3677 = vmatprep.subr.mxu0 0.0
  %3678 = vmatpush1.msra.mxu0 %v2117
  %3679 = vmatprep.subr.mxu0 0.0
  %3680 = vmatpush1.msra.mxu0 %v2118
  %3681 = vmatprep.subr.mxu0 0.0
  %3682 = vmatpush1.msra.mxu0 0.0
  %3683 = vmatprep.subr.mxu0 0.0
  %3684 = vmatpush1.msra.mxu0 0.0
  %3685 = vmatprep.subr.mxu0 0.0
  %3686 = vmatpush1.msra.mxu0 0.0
  %3687 = vmatprep.subr.mxu0 0.0
  %3688 = vmatpush1.msra.mxu0 0.0
  %3689 = vmatprep.subr.mxu0 0.0
  %3690 = vmatpush1.msra.mxu0 0.0
  %3691 = vmatprep.subr.mxu0 0.0
  %3692 = vmatpush1.msra.mxu0 0.0
  %3693 = vmatprep.subr.mxu0 0.0
  %3694 = vmatpush1.msra.mxu0 0.0
  %3695 = vmatprep.subr.mxu0 0.0
  %3696 = vmatpush1.msra.mxu0 0.0
  %3697 = vmatprep.subr.mxu0 0.0
  %3698 = vmatpush1.msra.mxu0 0.0
  %3699 = vmatprep.subr.mxu0 0.0
  %3700 = vmatpush1.msra.mxu0 0.0
  %3701 = vmatprep.subr.mxu0 0.0
  %3702 = vmatpush1.msra.mxu0 0.0
  %3703 = vmatprep.subr.mxu0 0.0
  %3704 = vmatpush1.msra.mxu0 0.0
  %3705 = vmatprep.subr.mxu0 0.0
  %3706 = vmatpush1.msra.mxu0 0.0
  %3707 = vmatprep.subr.mxu0 0.0
  %3708 = vmatpush1.msra.mxu0 0.0
  %3709 = vmatprep.subr.mxu0 0.0
  %3710 = vmatpush1.msra.mxu0 0.0
  %3711 = vmatprep.subr.mxu0 0.0
  %3712 = vmatpush1.msra.mxu0 0.0
  %3713 = vmatprep.subr.mxu0 0.0
  %3714 = vmatpush1.msra.mxu0 0.0
  %3715 = vmatprep.subr.mxu0 0.0
  %3716 = vmatpush1.msra.mxu0 0.0
  %3717 = vmatprep.subr.mxu0 0.0
  %3718 = vmatpush1.msra.mxu0 0.0
  %3719 = vmatprep.subr.mxu0 0.0
  %3720 = vmatpush1.msra.mxu0 0.0
  %3721 = vmatprep.subr.mxu0 0.0
  %3722 = vmatpush1.msra.mxu0 0.0
  %3723 = vmatprep.subr.mxu0 0.0
  %3724 = vmatpush1.msra.mxu0 0.0
  %3725 = vmatprep.subr.mxu0 0.0
  %3726 = vmatpush1.msra.mxu0 0.0
  %3727 = vmatprep.subr.mxu0 0.0
  %3728 = vmatpush1.msra.mxu0 0.0
  %3729 = vmatprep.subr.mxu0 0.0
  %3730 = vmatpush1.msra.mxu0 0.0
  %3731 = vmatprep.subr.mxu0 0.0
  %3732 = vmatpush1.msra.mxu0 0.0
  %3733 = vmatprep.subr.mxu0 0.0
  %3734 = vmatpush1.msra.mxu0 0.0
  %3735 = vmatprep.subr.mxu0 0.0
  %3736 = vmatpush1.msra.mxu0 0.0
  %3737 = vmatprep.mubr.f32.mxu0 0.0
  %3738 = vmatmul.mubr.f32.gmra.mrb[0].mxu0 %v3671
  %v3739 = vpop.f32.mrb[0].mxu0
  %v3740 = vadd.f32 0.0, %v3739
  %v3741 = vpop.f32.mrb[0].mxu0
  %3742 = vdwg.mxu0
  %v3743 = vadd.f32 %v2108, %v3740
  %v3744 = vxor.u32 %v3666, 2147483648
  %v3745 = vmul.f32 %v3744, 1.442695
  %v3746 = vpow.pop %v3745
  %v3747 = vadd.f32 %v3746, 1.0
  %v3748 = vrcp.pop %v3747
  %v3749 = vmul.f32 1.0, %v3748
  %v3750 = vtanh.pop %v3666
  %v3752 = vrot.slane %v3553, 6
  %v3754 = vmul.f32 %v3749, %v3752
  %3756 = vrot.lane.b32.xlu0 %v3750, 64
  %v3757 = vpop.permute.xlu0 %3756
  %v3759 = vmul.f32 %v3749, %v3757
  %3761 = vrot.lane.b32.xlu0 %v3759, 32
  %v3762 = vpop.permute.xlu0 %3761
  %v3764 = vadd.f32 %v3754, %v3762
  %v3765 = vtanh.pop %v3764
  %3767 = vrot.lane.b32.xlu0 %v3765, 64
  %v3768 = vpop.permute.xlu0 %3767
  %v3770 = vmul.f32 %v3749, %v3768
  %v3771 = vxor.u32 %v3743, 2147483648
  %v3772 = vmul.f32 %v3771, 1.442695
  %v3773 = vpow.pop %v3772
  %v3774 = vadd.f32 %v3773, 1.0
  %v3775 = vrcp.pop %v3774
  %v3776 = vmul.f32 1.0, %v3775
  %v3777 = vtanh.pop %v3743
  %v3779 = vrot.slane %v3580, 2
  %v3781 = vmul.f32 %v3776, %v3779
  %3783 = vrot.lane.b32.xlu0 %v3777, 64
  %v3784 = vpop.permute.xlu0 %3783
  %v3786 = vmul.f32 %v3776, %v3784
  %3788 = vrot.lane.b32.xlu0 %v3786, 32
  %v3789 = vpop.permute.xlu0 %3788
  %v3791 = vadd.f32 %v3781, %v3789
  %v3792 = vtanh.pop %v3791
  %3794 = vrot.lane.b32.xlu0 %v3792, 64
  %v3795 = vpop.permute.xlu0 %3794
  %v3797 = vmul.f32 %v3776, %v3795
  %v3798 = vsel %vm1889, %v2287, %v2497
  %v3799 = vsel %vm1891, %v3798, %v2711
  %v3800 = vsel %vm1893, %v3799, %v2922
  %v3801 = vsel %vm1889, %v3132, %v3345
  %v3802 = vsel %vm1891, %v3801, %v3559
  %v3803 = vsel %vm1893, %v3802, %v3770
  %v3804 = vsel %vm1889, %v3797, %v3586
  %v3805 = vsel %vm1891, %v3804, %v3372
  %v3806 = vsel %vm1893, %v3805, %v3159
  %v3807 = vsel %vm1889, %v2949, %v2738
  %v3808 = vsel %vm1891, %v3807, %v2524
  %v3809 = vsel %vm1893, %v3808, %v2311
  %v3810 = vld [vmem:[%s1 + $0x1f0] sm:$0xff]
  %v3811 = vld [vmem:[%s1 + $0x200] sm:$0xff]
  %v3812 = vld [vmem:[%s1 + $0x210] sm:$0xff]
  %v3813 = vld [vmem:[%s1 + $0x220] sm:$0xff]
  %v3814 = vld [vmem:[%s1 + $0x230] sm:$0xff]
  %v3815 = vld [vmem:[%s1 + $0x240] sm:$0xff]
  %v3816 = vld [vmem:[%s1 + $0x250] sm:$0xff]
  %v3817 = vld [vmem:[%s1 + $0x260] sm:$0xff]
  %3820 = vrot.lane.b32.xlu0 %v3806, 32
  %v3821 = vpop.permute.xlu0 %3820
  %3822 = vrot.lane.b32.xlu0 %v3809, 32
  %v3823 = vpop.permute.xlu0 %3822
  %v3824 = vsel %vm206, %v3821, 0
  %v3826 = vsel %vm206, %v3823, 0
  %3828 = vmatprep.subr.mxu0 0.0
  %3829 = vmatpush1.msra.mxu0 %v3814
  %3830 = vmatprep.subr.mxu0 0.0
  %3831 = vmatpush1.msra.mxu0 %v3815
  %3832 = vmatprep.subr.mxu0 0.0
  %3833 = vmatpush1.msra.mxu0 %v3816
  %3834 = vmatprep.subr.mxu0 0.0
  %3835 = vmatpush1.msra.mxu0 %v3817
  %3836 = vmatprep.subr.mxu0 0.0
  %3837 = vmatpush1.msra.mxu0 0.0
  %3838 = vmatprep.subr.mxu0 0.0
  %3839 = vmatpush1.msra.mxu0 0.0
  %3840 = vmatprep.subr.mxu0 0.0
  %3841 = vmatpush1.msra.mxu0 0.0
  %3842 = vmatprep.subr.mxu0 0.0
  %3843 = vmatpush1.msra.mxu0 0.0
  %3844 = vmatprep.subr.mxu0 0.0
  %3845 = vmatpush1.msra.mxu0 0.0
  %3846 = vmatprep.subr.mxu0 0.0
  %3847 = vmatpush1.msra.mxu0 0.0
  %3848 = vmatprep.subr.mxu0 0.0
  %3849 = vmatpush1.msra.mxu0 0.0
  %3850 = vmatprep.subr.mxu0 0.0
  %3851 = vmatpush1.msra.mxu0 0.0
  %3852 = vmatprep.subr.mxu0 0.0
  %3853 = vmatpush1.msra.mxu0 0.0
  %3854 = vmatprep.subr.mxu0 0.0
  %3855 = vmatpush1.msra.mxu0 0.0
  %3856 = vmatprep.subr.mxu0 0.0
  %3857 = vmatpush1.msra.mxu0 0.0
  %3858 = vmatprep.subr.mxu0 0.0
  %3859 = vmatpush1.msra.mxu0 0.0
  %3860 = vmatprep.subr.mxu0 0.0
  %3861 = vmatpush1.msra.mxu0 0.0
  %3862 = vmatprep.subr.mxu0 0.0
  %3863 = vmatpush1.msra.mxu0 0.0
  %3864 = vmatprep.subr.mxu0 0.0
  %3865 = vmatpush1.msra.mxu0 0.0
  %3866 = vmatprep.subr.mxu0 0.0
  %3867 = vmatpush1.msra.mxu0 0.0
  %3868 = vmatprep.subr.mxu0 0.0
  %3869 = vmatpush1.msra.mxu0 0.0
  %3870 = vmatprep.subr.mxu0 0.0
  %3871 = vmatpush1.msra.mxu0 0.0
  %3872 = vmatprep.subr.mxu0 0.0
  %3873 = vmatpush1.msra.mxu0 0.0
  %3874 = vmatprep.subr.mxu0 0.0
  %3875 = vmatpush1.msra.mxu0 0.0
  %3876 = vmatprep.subr.mxu0 0.0
  %3877 = vmatpush1.msra.mxu0 0.0
  %3878 = vmatprep.subr.mxu0 0.0
  %3879 = vmatpush1.msra.mxu0 0.0
  %3880 = vmatprep.subr.mxu0 0.0
  %3881 = vmatpush1.msra.mxu0 0.0
  %3882 = vmatprep.subr.mxu0 0.0
  %3883 = vmatpush1.msra.mxu0 0.0
  %3884 = vmatprep.subr.mxu0 0.0
  %3885 = vmatpush1.msra.mxu0 0.0
  %3886 = vmatprep.subr.mxu0 0.0
  %3887 = vmatpush1.msra.mxu0 0.0
  %3888 = vmatprep.subr.mxu0 0.0
  %3889 = vmatpush1.msra.mxu0 0.0
  %3890 = vmatprep.subr.mxu0 0.0
  %3891 = vmatpush1.msra.mxu0 0.0
  %3892 = vmatprep.mubr.f32.mxu0 0.0
  %3893 = vmatmul.mubr.f32.gmra.mrb[0].mxu0 %v3824
  %v3894 = vpop.f32.mrb[0].mxu0
  %v3895 = vadd.f32 0.0, %v3894
  %v3896 = vpop.f32.mrb[0].mxu0
  %3897 = vmatprep.mubr.f32.mxu0 0.0
  %3898 = vmatmul.mubr.f32.gmra.mrb[0].mxu0 %v3826
  %v3899 = vpop.f32.mrb[0].mxu0
  %v3900 = vadd.f32 0.0, %v3899
  %v3901 = vpop.f32.mrb[0].mxu0
  %3902 = vdwg.mxu0
  %3905 = vrot.lane.b32.xlu0 %v3800, 32
  %v3906 = vpop.permute.xlu0 %3905
  %3907 = vrot.lane.b32.xlu0 %v3803, 32
  %v3908 = vpop.permute.xlu0 %3907
  %v3909 = vsel %vm206, %v3906, 0
  %v3911 = vsel %vm206, %v3908, 0
  %3913 = vmatprep.subr.mxu0 0.0
  %3914 = vmatpush1.msra.mxu0 %v3810
  %3915 = vmatprep.subr.mxu0 0.0
  %3916 = vmatpush1.msra.mxu0 %v3811
  %3917 = vmatprep.subr.mxu0 0.0
  %3918 = vmatpush1.msra.mxu0 %v3812
  %3919 = vmatprep.subr.mxu0 0.0
  %3920 = vmatpush1.msra.mxu0 %v3813
  %3921 = vmatprep.subr.mxu0 0.0
  %3922 = vmatpush1.msra.mxu0 0.0
  %3923 = vmatprep.subr.mxu0 0.0
  %3924 = vmatpush1.msra.mxu0 0.0
  %3925 = vmatprep.subr.mxu0 0.0
  %3926 = vmatpush1.msra.mxu0 0.0
  %3927 = vmatprep.subr.mxu0 0.0
  %3928 = vmatpush1.msra.mxu0 0.0
  %3929 = vmatprep.subr.mxu0 0.0
  %3930 = vmatpush1.msra.mxu0 0.0
  %3931 = vmatprep.subr.mxu0 0.0
  %3932 = vmatpush1.msra.mxu0 0.0
  %3933 = vmatprep.subr.mxu0 0.0
  %3934 = vmatpush1.msra.mxu0 0.0
  %3935 = vmatprep.subr.mxu0 0.0
  %3936 = vmatpush1.msra.mxu0 0.0
  %3937 = vmatprep.subr.mxu0 0.0
  %3938 = vmatpush1.msra.mxu0 0.0
  %3939 = vmatprep.subr.mxu0 0.0
  %3940 = vmatpush1.msra.mxu0 0.0
  %3941 = vmatprep.subr.mxu0 0.0
  %3942 = vmatpush1.msra.mxu0 0.0
  %3943 = vmatprep.subr.mxu0 0.0
  %3944 = vmatpush1.msra.mxu0 0.0
  %3945 = vmatprep.subr.mxu0 0.0
  %3946 = vmatpush1.msra.mxu0 0.0
  %3947 = vmatprep.subr.mxu0 0.0
  %3948 = vmatpush1.msra.mxu0 0.0
  %3949 = vmatprep.subr.mxu0 0.0
  %3950 = vmatpush1.msra.mxu0 0.0
  %3951 = vmatprep.subr.mxu0 0.0
  %3952 = vmatpush1.msra.mxu0 0.0
  %3953 = vmatprep.subr.mxu0 0.0
  %3954 = vmatpush1.msra.mxu0 0.0
  %3955 = vmatprep.subr.mxu0 0.0
  %3956 = vmatpush1.msra.mxu0 0.0
  %3957 = vmatprep.subr.mxu0 0.0
  %3958 = vmatpush1.msra.mxu0 0.0
  %3959 = vmatprep.subr.mxu0 0.0
  %3960 = vmatpush1.msra.mxu0 0.0
  %3961 = vmatprep.subr.mxu0 0.0
  %3962 = vmatpush1.msra.mxu0 0.0
  %3963 = vmatprep.subr.mxu0 0.0
  %3964 = vmatpush1.msra.mxu0 0.0
  %3965 = vmatprep.subr.mxu0 0.0
  %3966 = vmatpush1.msra.mxu0 0.0
  %3967 = vmatprep.subr.mxu0 0.0
  %3968 = vmatpush1.msra.mxu0 0.0
  %3969 = vmatprep.subr.mxu0 0.0
  %3970 = vmatpush1.msra.mxu0 0.0
  %3971 = vmatprep.subr.mxu0 0.0
  %3972 = vmatpush1.msra.mxu0 0.0
  %3973 = vmatprep.subr.mxu0 0.0
  %3974 = vmatpush1.msra.mxu0 0.0
  %3975 = vmatprep.subr.mxu0 0.0
  %3976 = vmatpush1.msra.mxu0 0.0
  %3977 = vmatprep.mubr.f32.mxu0 0.0
  %3978 = vmatmul.mubr.f32.gmra.mrb[0].mxu0 %v3909
  %v3979 = vpop.f32.mrb[0].mxu0
  %v3980 = vadd.f32 %v3895, %v3979
  %v3981 = vpop.f32.mrb[0].mxu0
  %3982 = vmatprep.mubr.f32.mxu0 0.0
  %3983 = vmatmul.mubr.f32.gmra.mrb[0].mxu0 %v3911
  %v3984 = vpop.f32.mrb[0].mxu0
  %v3985 = vadd.f32 %v3900, %v3984
  %v3986 = vpop.f32.mrb[0].mxu0
  %3987 = vdwg.mxu0
  %v3988 = vld [vmem:[%s1 + $0x270] ss:$0 sm:$0xff]
  %v3989 = vadd.f32 %v3980, %v3988
  %v3990 = vadd.f32 %v3985, %v3988
  %3991 = vst [vmem:[%s2] sm:$0xff] %v3989
  %3992 = vst [vmem:[%s2 + $0x8] sm:$0xff] %v3990
  // Predicated region
  $region10: #{bi_rnn_forward.1} parent=0 // pred_check
    _
  $region11: #{bi_rnn_forward.1} parent=0 // pred_check_branch
    %3994 = sbr.rel (0) target = $region13
  $region12: #{bi_rnn_forward.1} parent=0 // pred_region
    _
  $region13: #{bi_rnn_forward.1} parent=0 // pred_fallthru
    _
  // Predicated region
  $region14: #{bi_rnn_forward.1} parent=0 // pred_check
    _
  $region15: #{bi_rnn_forward.1} parent=0 // pred_check_branch
    %3996 = sbr.rel (0) target = $region17
  $region16: #{bi_rnn_forward.1} parent=0 // pred_region
    _
  $region17: #{bi_rnn_forward.1} parent=0 // pred_fallthru
    _

</llo_original>
